<compile_context>
chip_gen: v5e
topology: v5e:2x2
jax: 0.10.0
libtpu: 0.0.40
codegen_flags: <defaults>
</compile_context>

<pallas_src>
import functools

import jax
import jax.numpy as jnp
from jax import lax
from jax.experimental import pallas as pl
from jax.experimental.pallas import tpu as pltpu


def _ceil8(n):
    return max(8, -(-int(n) // 8) * 8)


def _tensorcores_per_device():
    """Best-effort TensorCores per JAX device (v7x / v4 megacore expose 2)."""
    try:
        kind = jax.devices()[0].device_kind.lower()
    except Exception:
        return 1
    return 2 if any(tag in kind for tag in ("v7", "7x", "v4")) else 1


def _choose_images_per_block(n_images, pixels_per_image, min_blocks,
                             max_block_lanes=4096):
    """How many images to merge into one lane-dense block.

    Bigger blocks => denser vld/vst and fewer ~0.35us grid steps, but keep at
    least `min_blocks` grid steps so every TensorCore gets work, and cap the
    block lane width so activations stay comfortably in vregs/VMEM.
    """
    nb = max(1, min(n_images, max_block_lanes // max(pixels_per_image, 1)))
    while nb > 1 and (n_images % nb != 0
                      or n_images // nb < min(min_blocks, n_images)):
        nb -= 1
    return nb


def _dncnn_fused_kernel(x_ref, w0_ref, wm_ref, wl_ref, b0_ref, bm_ref, bl_ref,
                        a_ref, m_ref, o_ref, *, n_mid, img_w, compute_dtype):
    """Fused DnCNN forward for one lane-merged block of images.

    x_ref:  (1, Cin_pad, Lb)     input block, Lb = images_per_block * H * W
    w0_ref: (9, C, Cin_pad)      layer-0 weights, one (Cout, Cin) matrix per tap
    wm_ref: (max(n_mid,1)*9,C,C) mid-layer weights (row index = l*9 + ky*3 + kx)
    wl_ref: (9, Cout_pad, C)     last-layer weights
    b0_ref: (C, 1)               layer-0 bias
    bm_ref: (max(n_mid,1), C, 1) mid-layer biases
    bl_ref: (Cout_pad, 1)        last-layer bias
    a_ref:  (depth-1, C, 1)      PReLU slopes for layers 0..depth-2
    m_ref:  (4, Lb)              border masks [col_left, col_right, row_top, row_bot]
    o_ref:  (1, Cout_pad, Lb)    output of the last layer
    """
    lb = x_ref.shape[-1]
    cdt = jnp.dtype(compute_dtype)

    # Hoisted out of the layer loop: one mask load per grid step.  Column
    # masks multiply (compute-dtype) inputs; row masks multiply f32 partial
    # sums -- masking by a per-lane scalar commutes with the channel matmul.
    m = m_ref[...]
    cm_l = m[0:1].astype(cdt)
    cm_r = m[1:2].astype(cdt)
    rm_t = m[2:3]
    rm_b = m[3:4]

    def conv3x3(act, get_w, bias):
        """'same' 3x3 conv: 9 per-tap MXU matmuls accumulated in registers."""
        x = act if act.dtype == cdt else act.astype(cdt)
        # Column-shifted + column-masked variants (kx = 0, 1, 2).  The masks
        # also zero every lane where a roll wraps across an image boundary
        # inside the merged block, so zero "same" padding stays exact.
        cols = (pltpu.roll(x, shift=1, axis=1) * cm_l,        # x[q-1]
                x,                                            # x[q]
                pltpu.roll(x, shift=lb - 1, axis=1) * cm_r)   # x[q+1]
        row_plan = ((img_w % lb, rm_t), (0, None), ((lb - img_w) % lb, rm_b))
        acc = None
        for ky, (rshift, rmask) in enumerate(row_plan):
            part = None
            for kx in range(3):
                src = (cols[kx] if rshift == 0
                       else pltpu.roll(cols[kx], shift=rshift, axis=1))
                d = jnp.dot(get_w(ky * 3 + kx), src,
                            preferred_element_type=jnp.float32)
                part = d if part is None else part + d
            if rmask is not None:
                part = part * rmask                 # (1, Lb) row mask on f32 sum
            acc = part if acc is None else acc + part
        return acc + bias                           # (Cout, 1) lane-broadcast

    def prelu(v, alpha):
        return jnp.where(v >= 0.0, v, alpha * v)

    # Layer 0: Cin_pad -> C, PReLU.
    act = prelu(conv3x3(x_ref[0], lambda t: w0_ref[t], b0_ref[...]), a_ref[0])
    # Mid layers: C -> C, PReLU.  Unrolled (fine for depth <= ~4); for deep
    # nets (DnCNN depth ~17) switch to lax.fori_loop + a VMEM ping-pong.
    for l in range(n_mid):
        act = prelu(conv3x3(act, lambda t, l=l: wm_ref[l * 9 + t], bm_ref[l]),
                    a_ref[l + 1])
    # Last layer: C -> Cout_pad, no PReLU.  Output stays lane-dense (Lb wide).
    o_ref[0] = conv3x3(act, lambda t: wl_ref[t], bl_ref[...]).astype(o_ref.dtype)


def _pack_params(params, C, cin_pad, cout_pad, compute_dtype):
    """Pack per-layer weights into slim first/last + uniform mid tensors."""
    depth = len(params)
    assert depth >= 2, "InitCG always has at least first + last conv"

    def taps(w, co_pad, ci_pad):
        # (3,3,Cin,Cout) -> (9, co_pad, ci_pad), taps[t][co,ci] = w[ky,kx,ci,co]
        cin, cout = w.shape[2], w.shape[3]
        wp = jnp.zeros((3, 3, ci_pad, co_pad), jnp.float32)
        wp = wp.at[:, :, :cin, :cout].set(w)
        return (jnp.transpose(wp, (0, 1, 3, 2))
                .reshape(9, co_pad, ci_pad).astype(compute_dtype))

    def pad_vec(v, n):
        return jnp.zeros((n,), jnp.float32).at[:v.shape[0]].set(v)

    w0, b0, _ = params[0]
    W0 = taps(w0, C, cin_pad)                           # (9, C, Cin_pad)
    B0 = pad_vec(b0, C)[:, None]                        # (C, 1)

    n_mid = depth - 2
    if n_mid > 0:
        Wm = jnp.concatenate(
            [taps(params[i][0], C, C) for i in range(1, depth - 1)], axis=0)
        Bm = jnp.stack(
            [pad_vec(params[i][1], C) for i in range(1, depth - 1)])[:, :, None]
    else:  # dummies, never read (layer loop is static on n_mid)
        Wm = jnp.zeros((9, C, C), compute_dtype)
        Bm = jnp.zeros((1, C, 1), jnp.float32)

    wl, bl, _ = params[-1]
    Wl = taps(wl, cout_pad, C)                          # (9, Cout_pad, C)
    Bl = pad_vec(bl, cout_pad)[:, None]                 # (Cout_pad, 1)

    A = jnp.stack([pad_vec(params[i][2], C)
                   for i in range(depth - 1)])[:, :, None]  # (depth-1, C, 1)
    return W0, Wm, Wl, B0, Bm, Bl, A


def init_cg_forward(x_nchw, params, compute_dtype=jnp.float32):
    """Full InitCG forward: depth 3x3 'same' convs, PReLU after all but last."""
    N, in_chan, H, Wimg = x_nchw.shape
    depth = len(params)
    out_chan = params[-1][0].shape[-1]
    n_mid = depth - 2

    cin_pad = _ceil8(in_chan)
    cout_pad = _ceil8(out_chan)
    C = _ceil8(max(p[0].shape[-1] for p in params[:-1]))   # internal width
    L = H * Wimg

    # Merge images into the lane axis (fewer grid steps, lane-dense blocks),
    # but keep >= 1 grid step per TensorCore on 2-TC chips.
    nb = _choose_images_per_block(N, L, min_blocks=_tensorcores_per_device())
    nblk = N // nb
    Lb = nb * L

    W0, Wm, Wl, B0, Bm, Bl, A = _pack_params(params, C, cin_pad, cout_pad,
                                             compute_dtype)

    # Border masks (pure functions of the output pixel position): column
    # masks gate the +/-1 lane shifts, row masks gate the +/-W shifts.
    q = jnp.arange(Lb, dtype=jnp.int32)
    xx = q % Wimg
    yy = (q // Wimg) % H
    Mk = jnp.stack([(xx >= 1), (xx <= Wimg - 2),
                    (yy >= 1), (yy <= H - 2)]).astype(jnp.float32)   # (4, Lb)

    # NCHW -> channel-padded, batch-merged (nblk, Cin_pad, Lb).
    x_flat = x_nchw.astype(jnp.float32).reshape(N, in_chan, L)
    x_p = jnp.zeros((N, cin_pad, L), jnp.float32).at[:, :in_chan].set(x_flat)
    x_p = (x_p.reshape(nblk, nb, cin_pad, L)
               .transpose(0, 2, 1, 3)
               .reshape(nblk, cin_pad, Lb))

    kern = functools.partial(_dncnn_fused_kernel, n_mid=n_mid, img_w=Wimg,
                             compute_dtype=compute_dtype)

    out_flat = pl.pallas_call(
        kern,
        out_shape=jax.ShapeDtypeStruct((nblk, cout_pad, Lb), jnp.float32),
        grid=(nblk,),
        in_specs=[
            pl.BlockSpec((1, cin_pad, Lb), lambda n: (n, 0, 0)),   # x block
            pl.BlockSpec(W0.shape, lambda n: (0, 0, 0)),           # layer-0 W
            pl.BlockSpec(Wm.shape, lambda n: (0, 0, 0)),           # mid W
            pl.BlockSpec(Wl.shape, lambda n: (0, 0, 0)),           # last W
            pl.BlockSpec(B0.shape, lambda n: (0, 0)),              # layer-0 b
            pl.BlockSpec(Bm.shape, lambda n: (0, 0, 0)),           # mid b
            pl.BlockSpec(Bl.shape, lambda n: (0, 0)),              # last b
            pl.BlockSpec(A.shape, lambda n: (0, 0, 0)),            # PReLU a
            pl.BlockSpec(Mk.shape, lambda n: (0, 0)),              # masks
        ],
        out_specs=pl.BlockSpec((1, cout_pad, Lb), lambda n: (n, 0, 0)),
        compiler_params=pltpu.CompilerParams(
            dimension_semantics=("parallel",)),                    # v7x: 2 TCs
    )(x_p, W0, Wm, Wl, B0, Bm, Bl, A, Mk)

    # Un-merge the batch, drop channel padding.
    out = (out_flat.reshape(nblk, cout_pad, nb, H, Wimg)
                   .transpose(0, 2, 1, 3, 4)
                   .reshape(N, cout_pad, H, Wimg)[:, :out_chan])
    return out


def init_params(key, depth, n_channels, in_chan, out_chan):
    """Synthetic parameters matching the PyTorch module's shapes.

    Conv weight/bias ~ uniform(-1/sqrt(fan_in), 1/sqrt(fan_in)); PReLU slope
    is the constant init=0.025.  Weights stored as (3, 3, Cin, Cout).
    """
    chans = [in_chan] + [n_channels] * (depth - 1) + [out_chan]
    params = []
    for i in range(depth):
        cin, cout = chans[i], chans[i + 1]
        key, kw, kb = jax.random.split(key, 3)
        fan_in = cin * 3 * 3
        bound = 1.0 / float(fan_in) ** 0.5
        w = jax.random.uniform(kw, (3, 3, cin, cout), jnp.float32,
                               minval=-bound, maxval=bound)
        b = jax.random.uniform(kb, (cout,), jnp.float32,
                               minval=-bound, maxval=bound)
        a = jnp.full((cout,), 0.025, jnp.float32)
        params.append((w, b, a))
    return params


def ref_forward(x_nchw, params):
    """Pure-JAX reference (lax.conv) for correctness checking."""
    x = x_nchw
    depth = len(params)
    for i, (w, b, a) in enumerate(params):
        w_oihw = jnp.transpose(w, (3, 2, 0, 1))      # (3,3,Cin,Cout)->(O,I,3,3)
        x = lax.conv_general_dilated(
            x, w_oihw, window_strides=(1, 1), padding=((1, 1), (1, 1)),
            dimension_numbers=("NCHW", "OIHW", "NCHW"))
        x = x + b[None, :, None, None]
        if i < depth - 1:
            alpha = a[None, :, None, None]
            x = jnp.where(x >= 0, x, alpha * x)
    return x


if __name__ == "__main__":
    key = jax.random.PRNGKey(0)

    # Test 1: small shapes consistent with the module (NCHW, in_chan=1).
    depth, n_channels, in_chan, out_chan = 4, 16, 1, 1
    N, H, W = 2, 16, 16
    key, kx, kp = jax.random.split(key, 3)
    x = jax.random.normal(kx, (N, in_chan, H, W), jnp.float32)
    params = init_params(kp, depth, n_channels, in_chan, out_chan)

    out = jax.block_until_ready(init_cg_forward(x, params))
    ref = jax.block_until_ready(ref_forward(x, params))
    assert out.shape == (N, out_chan, H, W)
    err = float(jnp.max(jnp.abs(out - ref)))
    assert jnp.allclose(out, ref, rtol=1e-4, atol=1e-4), err

    # Test 2: N > 1 with non-square images and multi-channel in/out, to lock
    # in the batch-merged roll+mask "same" padding.
    depth2, n_ch2, in2, out2 = 3, 8, 2, 3
    N2, H2, W2 = 3, 8, 16
    key, kx2, kp2 = jax.random.split(key, 3)
    x2 = jax.random.normal(kx2, (N2, in2, H2, W2), jnp.float32)
    params2 = init_params(kp2, depth2, n_ch2, in2, out2)

    out2_ = jax.block_until_ready(init_cg_forward(x2, params2))
    ref2 = jax.block_until_ready(ref_forward(x2, params2))
    assert out2_.shape == (N2, out2, H2, W2)
    err2 = float(jnp.max(jnp.abs(out2_ - ref2)))
    assert jnp.allclose(out2_, ref2, rtol=1e-4, atol=1e-4), err2

    print("KERNEL_OK")
</pallas_src>

<mosaic_0001>
module attributes {stable_mosaic.version = 11 : i64} {
  func.func @_dncnn_fused_kernel(%arg0: i32, %arg1: memref<1x8x512xf32, #tpu.memory_space<vmem>>, %arg2: memref<9x16x8xf32, #tpu.memory_space<vmem>>, %arg3: memref<18x16x16xf32, #tpu.memory_space<vmem>>, %arg4: memref<9x8x16xf32, #tpu.memory_space<vmem>>, %arg5: memref<16x1xf32, #tpu.memory_space<vmem>>, %arg6: memref<2x16x1xf32, #tpu.memory_space<vmem>>, %arg7: memref<8x1xf32, #tpu.memory_space<vmem>>, %arg8: memref<3x16x1xf32, #tpu.memory_space<vmem>>, %arg9: memref<4x512xf32, #tpu.memory_space<vmem>>, %arg10: memref<1x8x512xf32, #tpu.memory_space<vmem>>) attributes {dimension_semantics = [#tpu.dimension_semantics<parallel>], iteration_bounds = array<i64: 1>, scalar_prefetch = 0 : i64, scratch_operands = 0 : i64, tpu.core_type = #tpu.core_type<tc>, window_params = [{transform_indices = @transform_0, window_bounds = array<i64: 1, 8, 512>}, {pipeline_mode = #tpu.pipeline_mode<synchronous>, transform_indices = @transform_1, window_bounds = array<i64: 9, 16, 8>}, {pipeline_mode = #tpu.pipeline_mode<synchronous>, transform_indices = @transform_2, window_bounds = array<i64: 18, 16, 16>}, {pipeline_mode = #tpu.pipeline_mode<synchronous>, transform_indices = @transform_3, window_bounds = array<i64: 9, 8, 16>}, {pipeline_mode = #tpu.pipeline_mode<synchronous>, transform_indices = @transform_4, window_bounds = array<i64: 16, 1>}, {pipeline_mode = #tpu.pipeline_mode<synchronous>, transform_indices = @transform_5, window_bounds = array<i64: 2, 16, 1>}, {pipeline_mode = #tpu.pipeline_mode<synchronous>, transform_indices = @transform_6, window_bounds = array<i64: 8, 1>}, {pipeline_mode = #tpu.pipeline_mode<synchronous>, transform_indices = @transform_7, window_bounds = array<i64: 3, 16, 1>}, {pipeline_mode = #tpu.pipeline_mode<synchronous>, transform_indices = @transform_8, window_bounds = array<i64: 4, 512>}, {transform_indices = @transform_9, window_bounds = array<i64: 1, 8, 512>}]} {
    %c0 = arith.constant 0 : index
    %c0_0 = arith.constant 0 : index
    %0 = vector.load %arg9[%c0, %c0_0] : memref<4x512xf32, #tpu.memory_space<vmem>>, vector<4x512xf32>
    %1 = vector.extract_strided_slice %0 {offsets = [0, 0], sizes = [1, 512], strides = [1, 1]} : vector<4x512xf32> to vector<1x512xf32>
    %2 = vector.extract_strided_slice %0 {offsets = [1, 0], sizes = [1, 512], strides = [1, 1]} : vector<4x512xf32> to vector<1x512xf32>
    %3 = vector.extract_strided_slice %0 {offsets = [2, 0], sizes = [1, 512], strides = [1, 1]} : vector<4x512xf32> to vector<1x512xf32>
    %4 = vector.extract_strided_slice %0 {offsets = [3, 0], sizes = [1, 512], strides = [1, 1]} : vector<4x512xf32> to vector<1x512xf32>
    %c0_1 = arith.constant 0 : index
    %c0_2 = arith.constant 0 : index
    %c0_3 = arith.constant 0 : index
    %5 = vector.load %arg1[%c0_1, %c0_2, %c0_3] : memref<1x8x512xf32, #tpu.memory_space<vmem>>, vector<1x8x512xf32>
    %6 = vector.shape_cast %5 : vector<1x8x512xf32> to vector<8x512xf32>
    %c0_4 = arith.constant 0 : index
    %c0_5 = arith.constant 0 : index
    %7 = vector.load %arg5[%c0_4, %c0_5] : memref<16x1xf32, #tpu.memory_space<vmem>>, vector<16x1xf32>
    %c1_i32 = arith.constant 1 : i32
    %8 = tpu.dynamic_rotate %6 by %c1_i32 dim 1 : vector<8x512xf32>, i32 -> vector<8x512xf32>
    %9 = vector.broadcast %1 : vector<1x512xf32> to vector<8x512xf32>
    %10 = arith.mulf %8, %9 : vector<8x512xf32>
    %c511_i32 = arith.constant 511 : i32
    %11 = tpu.dynamic_rotate %6 by %c511_i32 dim 1 : vector<8x512xf32>, i32 -> vector<8x512xf32>
    %12 = vector.broadcast %2 : vector<1x512xf32> to vector<8x512xf32>
    %13 = arith.mulf %11, %12 : vector<8x512xf32>
    %c16_i32 = arith.constant 16 : i32
    %14 = tpu.dynamic_rotate %10 by %c16_i32 dim 1 : vector<8x512xf32>, i32 -> vector<8x512xf32>
    %c0_6 = arith.constant 0 : index
    %c0_7 = arith.constant 0 : index
    %c0_8 = arith.constant 0 : index
    %15 = vector.load %arg2[%c0_6, %c0_7, %c0_8] : memref<9x16x8xf32, #tpu.memory_space<vmem>>, vector<1x16x8xf32>
    %16 = vector.shape_cast %15 : vector<1x16x8xf32> to vector<16x8xf32>
    %cst = arith.constant dense<0.000000e+00> : vector<16x512xf32>
    %17 = tpu.matmul %16, %14, %cst {dimension_numbers = #tpu.dot_dimension_numbers<[1], [0], [0], [1], [0, 0, 1, 1], [], []>} : vector<16x8xf32>, vector<8x512xf32>, vector<16x512xf32> -> vector<16x512xf32>
    %c16_i32_9 = arith.constant 16 : i32
    %18 = tpu.dynamic_rotate %6 by %c16_i32_9 dim 1 : vector<8x512xf32>, i32 -> vector<8x512xf32>
    %c1 = arith.constant 1 : index
    %c0_10 = arith.constant 0 : index
    %c0_11 = arith.constant 0 : index
    %19 = vector.load %arg2[%c1, %c0_10, %c0_11] : memref<9x16x8xf32, #tpu.memory_space<vmem>>, vector<1x16x8xf32>
    %20 = vector.shape_cast %19 : vector<1x16x8xf32> to vector<16x8xf32>
    %cst_12 = arith.constant dense<0.000000e+00> : vector<16x512xf32>
    %21 = tpu.matmul %20, %18, %cst_12 {dimension_numbers = #tpu.dot_dimension_numbers<[1], [0], [0], [1], [0, 0, 1, 1], [], []>} : vector<16x8xf32>, vector<8x512xf32>, vector<16x512xf32> -> vector<16x512xf32>
    %22 = arith.addf %17, %21 : vector<16x512xf32>
    %c16_i32_13 = arith.constant 16 : i32
    %23 = tpu.dynamic_rotate %13 by %c16_i32_13 dim 1 : vector<8x512xf32>, i32 -> vector<8x512xf32>
    %c2 = arith.constant 2 : index
    %c0_14 = arith.constant 0 : index
    %c0_15 = arith.constant 0 : index
    %24 = vector.load %arg2[%c2, %c0_14, %c0_15] : memref<9x16x8xf32, #tpu.memory_space<vmem>>, vector<1x16x8xf32>
    %25 = vector.shape_cast %24 : vector<1x16x8xf32> to vector<16x8xf32>
    %cst_16 = arith.constant dense<0.000000e+00> : vector<16x512xf32>
    %26 = tpu.matmul %25, %23, %cst_16 {dimension_numbers = #tpu.dot_dimension_numbers<[1], [0], [0], [1], [0, 0, 1, 1], [], []>} : vector<16x8xf32>, vector<8x512xf32>, vector<16x512xf32> -> vector<16x512xf32>
    %27 = arith.addf %22, %26 : vector<16x512xf32>
    %28 = vector.broadcast %3 : vector<1x512xf32> to vector<16x512xf32>
    %29 = arith.mulf %27, %28 : vector<16x512xf32>
    %c3 = arith.constant 3 : index
    %c0_17 = arith.constant 0 : index
    %c0_18 = arith.constant 0 : index
    %30 = vector.load %arg2[%c3, %c0_17, %c0_18] : memref<9x16x8xf32, #tpu.memory_space<vmem>>, vector<1x16x8xf32>
    %31 = vector.shape_cast %30 : vector<1x16x8xf32> to vector<16x8xf32>
    %cst_19 = arith.constant dense<0.000000e+00> : vector<16x512xf32>
    %32 = tpu.matmul %31, %10, %cst_19 {dimension_numbers = #tpu.dot_dimension_numbers<[1], [0], [0], [1], [0, 0, 1, 1], [], []>} : vector<16x8xf32>, vector<8x512xf32>, vector<16x512xf32> -> vector<16x512xf32>
    %c4 = arith.constant 4 : index
    %c0_20 = arith.constant 0 : index
    %c0_21 = arith.constant 0 : index
    %33 = vector.load %arg2[%c4, %c0_20, %c0_21] : memref<9x16x8xf32, #tpu.memory_space<vmem>>, vector<1x16x8xf32>
    %34 = vector.shape_cast %33 : vector<1x16x8xf32> to vector<16x8xf32>
    %cst_22 = arith.constant dense<0.000000e+00> : vector<16x512xf32>
    %35 = tpu.matmul %34, %6, %cst_22 {dimension_numbers = #tpu.dot_dimension_numbers<[1], [0], [0], [1], [0, 0, 1, 1], [], []>} : vector<16x8xf32>, vector<8x512xf32>, vector<16x512xf32> -> vector<16x512xf32>
    %36 = arith.addf %32, %35 : vector<16x512xf32>
    %c5 = arith.constant 5 : index
    %c0_23 = arith.constant 0 : index
    %c0_24 = arith.constant 0 : index
    %37 = vector.load %arg2[%c5, %c0_23, %c0_24] : memref<9x16x8xf32, #tpu.memory_space<vmem>>, vector<1x16x8xf32>
    %38 = vector.shape_cast %37 : vector<1x16x8xf32> to vector<16x8xf32>
    %cst_25 = arith.constant dense<0.000000e+00> : vector<16x512xf32>
    %39 = tpu.matmul %38, %13, %cst_25 {dimension_numbers = #tpu.dot_dimension_numbers<[1], [0], [0], [1], [0, 0, 1, 1], [], []>} : vector<16x8xf32>, vector<8x512xf32>, vector<16x512xf32> -> vector<16x512xf32>
    %40 = arith.addf %36, %39 : vector<16x512xf32>
    %41 = arith.addf %29, %40 : vector<16x512xf32>
    %c496_i32 = arith.constant 496 : i32
    %42 = tpu.dynamic_rotate %10 by %c496_i32 dim 1 : vector<8x512xf32>, i32 -> vector<8x512xf32>
    %c6 = arith.constant 6 : index
    %c0_26 = arith.constant 0 : index
    %c0_27 = arith.constant 0 : index
    %43 = vector.load %arg2[%c6, %c0_26, %c0_27] : memref<9x16x8xf32, #tpu.memory_space<vmem>>, vector<1x16x8xf32>
    %44 = vector.shape_cast %43 : vector<1x16x8xf32> to vector<16x8xf32>
    %cst_28 = arith.constant dense<0.000000e+00> : vector<16x512xf32>
    %45 = tpu.matmul %44, %42, %cst_28 {dimension_numbers = #tpu.dot_dimension_numbers<[1], [0], [0], [1], [0, 0, 1, 1], [], []>} : vector<16x8xf32>, vector<8x512xf32>, vector<16x512xf32> -> vector<16x512xf32>
    %c496_i32_29 = arith.constant 496 : i32
    %46 = tpu.dynamic_rotate %6 by %c496_i32_29 dim 1 : vector<8x512xf32>, i32 -> vector<8x512xf32>
    %c7 = arith.constant 7 : index
    %c0_30 = arith.constant 0 : index
    %c0_31 = arith.constant 0 : index
    %47 = vector.load %arg2[%c7, %c0_30, %c0_31] : memref<9x16x8xf32, #tpu.memory_space<vmem>>, vector<1x16x8xf32>
    %48 = vector.shape_cast %47 : vector<1x16x8xf32> to vector<16x8xf32>
    %cst_32 = arith.constant dense<0.000000e+00> : vector<16x512xf32>
    %49 = tpu.matmul %48, %46, %cst_32 {dimension_numbers = #tpu.dot_dimension_numbers<[1], [0], [0], [1], [0, 0, 1, 1], [], []>} : vector<16x8xf32>, vector<8x512xf32>, vector<16x512xf32> -> vector<16x512xf32>
    %50 = arith.addf %45, %49 : vector<16x512xf32>
    %c496_i32_33 = arith.constant 496 : i32
    %51 = tpu.dynamic_rotate %13 by %c496_i32_33 dim 1 : vector<8x512xf32>, i32 -> vector<8x512xf32>
    %c8 = arith.constant 8 : index
    %c0_34 = arith.constant 0 : index
    %c0_35 = arith.constant 0 : index
    %52 = vector.load %arg2[%c8, %c0_34, %c0_35] : memref<9x16x8xf32, #tpu.memory_space<vmem>>, vector<1x16x8xf32>
    %53 = vector.shape_cast %52 : vector<1x16x8xf32> to vector<16x8xf32>
    %cst_36 = arith.constant dense<0.000000e+00> : vector<16x512xf32>
    %54 = tpu.matmul %53, %51, %cst_36 {dimension_numbers = #tpu.dot_dimension_numbers<[1], [0], [0], [1], [0, 0, 1, 1], [], []>} : vector<16x8xf32>, vector<8x512xf32>, vector<16x512xf32> -> vector<16x512xf32>
    %55 = arith.addf %50, %54 : vector<16x512xf32>
    %56 = vector.broadcast %4 : vector<1x512xf32> to vector<16x512xf32>
    %57 = arith.mulf %55, %56 : vector<16x512xf32>
    %58 = arith.addf %41, %57 : vector<16x512xf32>
    %59 = vector.broadcast %7 : vector<16x1xf32> to vector<16x512xf32>
    %60 = arith.addf %58, %59 : vector<16x512xf32>
    %c0_37 = arith.constant 0 : index
    %c0_38 = arith.constant 0 : index
    %c0_39 = arith.constant 0 : index
    %61 = vector.load %arg8[%c0_37, %c0_38, %c0_39] : memref<3x16x1xf32, #tpu.memory_space<vmem>>, vector<1x16x1xf32>
    %62 = vector.shape_cast %61 : vector<1x16x1xf32> to vector<16x1xf32>
    %cst_40 = arith.constant 0.000000e+00 : f32
    %63 = vector.broadcast %cst_40 : f32 to vector<16x512xf32>
    %64 = arith.cmpf oge, %60, %63 : vector<16x512xf32>
    %65 = vector.broadcast %62 : vector<16x1xf32> to vector<16x512xf32>
    %66 = arith.mulf %65, %60 : vector<16x512xf32>
    %67 = arith.select %64, %60, %66 : vector<16x512xi1>, vector<16x512xf32>
    %c0_41 = arith.constant 0 : index
    %c0_42 = arith.constant 0 : index
    %c0_43 = arith.constant 0 : index
    %68 = vector.load %arg6[%c0_41, %c0_42, %c0_43] : memref<2x16x1xf32, #tpu.memory_space<vmem>>, vector<1x16x1xf32>
    %69 = vector.shape_cast %68 : vector<1x16x1xf32> to vector<16x1xf32>
    %c1_i32_44 = arith.constant 1 : i32
    %70 = tpu.dynamic_rotate %67 by %c1_i32_44 dim 1 : vector<16x512xf32>, i32 -> vector<16x512xf32>
    %71 = vector.broadcast %1 : vector<1x512xf32> to vector<16x512xf32>
    %72 = arith.mulf %70, %71 : vector<16x512xf32>
    %c511_i32_45 = arith.constant 511 : i32
    %73 = tpu.dynamic_rotate %67 by %c511_i32_45 dim 1 : vector<16x512xf32>, i32 -> vector<16x512xf32>
    %74 = vector.broadcast %2 : vector<1x512xf32> to vector<16x512xf32>
    %75 = arith.mulf %73, %74 : vector<16x512xf32>
    %c16_i32_46 = arith.constant 16 : i32
    %76 = tpu.dynamic_rotate %72 by %c16_i32_46 dim 1 : vector<16x512xf32>, i32 -> vector<16x512xf32>
    %c0_47 = arith.constant 0 : index
    %c0_48 = arith.constant 0 : index
    %c0_49 = arith.constant 0 : index
    %77 = vector.load %arg3[%c0_47, %c0_48, %c0_49] : memref<18x16x16xf32, #tpu.memory_space<vmem>>, vector<1x16x16xf32>
    %78 = vector.shape_cast %77 : vector<1x16x16xf32> to vector<16x16xf32>
    %cst_50 = arith.constant dense<0.000000e+00> : vector<16x512xf32>
    %79 = tpu.matmul %78, %76, %cst_50 {dimension_numbers = #tpu.dot_dimension_numbers<[1], [0], [0], [1], [0, 0, 1, 1], [], []>} : vector<16x16xf32>, vector<16x512xf32>, vector<16x512xf32> -> vector<16x512xf32>
    %c16_i32_51 = arith.constant 16 : i32
    %80 = tpu.dynamic_rotate %67 by %c16_i32_51 dim 1 : vector<16x512xf32>, i32 -> vector<16x512xf32>
    %c1_52 = arith.constant 1 : index
    %c0_53 = arith.constant 0 : index
    %c0_54 = arith.constant 0 : index
    %81 = vector.load %arg3[%c1_52, %c0_53, %c0_54] : memref<18x16x16xf32, #tpu.memory_space<vmem>>, vector<1x16x16xf32>
    %82 = vector.shape_cast %81 : vector<1x16x16xf32> to vector<16x16xf32>
    %cst_55 = arith.constant dense<0.000000e+00> : vector<16x512xf32>
    %83 = tpu.matmul %82, %80, %cst_55 {dimension_numbers = #tpu.dot_dimension_numbers<[1], [0], [0], [1], [0, 0, 1, 1], [], []>} : vector<16x16xf32>, vector<16x512xf32>, vector<16x512xf32> -> vector<16x512xf32>
    %84 = arith.addf %79, %83 : vector<16x512xf32>
    %c16_i32_56 = arith.constant 16 : i32
    %85 = tpu.dynamic_rotate %75 by %c16_i32_56 dim 1 : vector<16x512xf32>, i32 -> vector<16x512xf32>
    %c2_57 = arith.constant 2 : index
    %c0_58 = arith.constant 0 : index
    %c0_59 = arith.constant 0 : index
    %86 = vector.load %arg3[%c2_57, %c0_58, %c0_59] : memref<18x16x16xf32, #tpu.memory_space<vmem>>, vector<1x16x16xf32>
    %87 = vector.shape_cast %86 : vector<1x16x16xf32> to vector<16x16xf32>
    %cst_60 = arith.constant dense<0.000000e+00> : vector<16x512xf32>
    %88 = tpu.matmul %87, %85, %cst_60 {dimension_numbers = #tpu.dot_dimension_numbers<[1], [0], [0], [1], [0, 0, 1, 1], [], []>} : vector<16x16xf32>, vector<16x512xf32>, vector<16x512xf32> -> vector<16x512xf32>
    %89 = arith.addf %84, %88 : vector<16x512xf32>
    %90 = vector.broadcast %3 : vector<1x512xf32> to vector<16x512xf32>
    %91 = arith.mulf %89, %90 : vector<16x512xf32>
    %c3_61 = arith.constant 3 : index
    %c0_62 = arith.constant 0 : index
    %c0_63 = arith.constant 0 : index
    %92 = vector.load %arg3[%c3_61, %c0_62, %c0_63] : memref<18x16x16xf32, #tpu.memory_space<vmem>>, vector<1x16x16xf32>
    %93 = vector.shape_cast %92 : vector<1x16x16xf32> to vector<16x16xf32>
    %cst_64 = arith.constant dense<0.000000e+00> : vector<16x512xf32>
    %94 = tpu.matmul %93, %72, %cst_64 {dimension_numbers = #tpu.dot_dimension_numbers<[1], [0], [0], [1], [0, 0, 1, 1], [], []>} : vector<16x16xf32>, vector<16x512xf32>, vector<16x512xf32> -> vector<16x512xf32>
    %c4_65 = arith.constant 4 : index
    %c0_66 = arith.constant 0 : index
    %c0_67 = arith.constant 0 : index
    %95 = vector.load %arg3[%c4_65, %c0_66, %c0_67] : memref<18x16x16xf32, #tpu.memory_space<vmem>>, vector<1x16x16xf32>
    %96 = vector.shape_cast %95 : vector<1x16x16xf32> to vector<16x16xf32>
    %cst_68 = arith.constant dense<0.000000e+00> : vector<16x512xf32>
    %97 = tpu.matmul %96, %67, %cst_68 {dimension_numbers = #tpu.dot_dimension_numbers<[1], [0], [0], [1], [0, 0, 1, 1], [], []>} : vector<16x16xf32>, vector<16x512xf32>, vector<16x512xf32> -> vector<16x512xf32>
    %98 = arith.addf %94, %97 : vector<16x512xf32>
    %c5_69 = arith.constant 5 : index
    %c0_70 = arith.constant 0 : index
    %c0_71 = arith.constant 0 : index
    %99 = vector.load %arg3[%c5_69, %c0_70, %c0_71] : memref<18x16x16xf32, #tpu.memory_space<vmem>>, vector<1x16x16xf32>
    %100 = vector.shape_cast %99 : vector<1x16x16xf32> to vector<16x16xf32>
    %cst_72 = arith.constant dense<0.000000e+00> : vector<16x512xf32>
    %101 = tpu.matmul %100, %75, %cst_72 {dimension_numbers = #tpu.dot_dimension_numbers<[1], [0], [0], [1], [0, 0, 1, 1], [], []>} : vector<16x16xf32>, vector<16x512xf32>, vector<16x512xf32> -> vector<16x512xf32>
    %102 = arith.addf %98, %101 : vector<16x512xf32>
    %103 = arith.addf %91, %102 : vector<16x512xf32>
    %c496_i32_73 = arith.constant 496 : i32
    %104 = tpu.dynamic_rotate %72 by %c496_i32_73 dim 1 : vector<16x512xf32>, i32 -> vector<16x512xf32>
    %c6_74 = arith.constant 6 : index
    %c0_75 = arith.constant 0 : index
    %c0_76 = arith.constant 0 : index
    %105 = vector.load %arg3[%c6_74, %c0_75, %c0_76] : memref<18x16x16xf32, #tpu.memory_space<vmem>>, vector<1x16x16xf32>
    %106 = vector.shape_cast %105 : vector<1x16x16xf32> to vector<16x16xf32>
    %cst_77 = arith.constant dense<0.000000e+00> : vector<16x512xf32>
    %107 = tpu.matmul %106, %104, %cst_77 {dimension_numbers = #tpu.dot_dimension_numbers<[1], [0], [0], [1], [0, 0, 1, 1], [], []>} : vector<16x16xf32>, vector<16x512xf32>, vector<16x512xf32> -> vector<16x512xf32>
    %c496_i32_78 = arith.constant 496 : i32
    %108 = tpu.dynamic_rotate %67 by %c496_i32_78 dim 1 : vector<16x512xf32>, i32 -> vector<16x512xf32>
    %c7_79 = arith.constant 7 : index
    %c0_80 = arith.constant 0 : index
    %c0_81 = arith.constant 0 : index
    %109 = vector.load %arg3[%c7_79, %c0_80, %c0_81] : memref<18x16x16xf32, #tpu.memory_space<vmem>>, vector<1x16x16xf32>
    %110 = vector.shape_cast %109 : vector<1x16x16xf32> to vector<16x16xf32>
    %cst_82 = arith.constant dense<0.000000e+00> : vector<16x512xf32>
    %111 = tpu.matmul %110, %108, %cst_82 {dimension_numbers = #tpu.dot_dimension_numbers<[1], [0], [0], [1], [0, 0, 1, 1], [], []>} : vector<16x16xf32>, vector<16x512xf32>, vector<16x512xf32> -> vector<16x512xf32>
    %112 = arith.addf %107, %111 : vector<16x512xf32>
    %c496_i32_83 = arith.constant 496 : i32
    %113 = tpu.dynamic_rotate %75 by %c496_i32_83 dim 1 : vector<16x512xf32>, i32 -> vector<16x512xf32>
    %c8_84 = arith.constant 8 : index
    %c0_85 = arith.constant 0 : index
    %c0_86 = arith.constant 0 : index
    %114 = vector.load %arg3[%c8_84, %c0_85, %c0_86] : memref<18x16x16xf32, #tpu.memory_space<vmem>>, vector<1x16x16xf32>
    %115 = vector.shape_cast %114 : vector<1x16x16xf32> to vector<16x16xf32>
    %cst_87 = arith.constant dense<0.000000e+00> : vector<16x512xf32>
    %116 = tpu.matmul %115, %113, %cst_87 {dimension_numbers = #tpu.dot_dimension_numbers<[1], [0], [0], [1], [0, 0, 1, 1], [], []>} : vector<16x16xf32>, vector<16x512xf32>, vector<16x512xf32> -> vector<16x512xf32>
    %117 = arith.addf %112, %116 : vector<16x512xf32>
    %118 = vector.broadcast %4 : vector<1x512xf32> to vector<16x512xf32>
    %119 = arith.mulf %117, %118 : vector<16x512xf32>
    %120 = arith.addf %103, %119 : vector<16x512xf32>
    %121 = vector.broadcast %69 : vector<16x1xf32> to vector<16x512xf32>
    %122 = arith.addf %120, %121 : vector<16x512xf32>
    %c1_88 = arith.constant 1 : index
    %c0_89 = arith.constant 0 : index
    %c0_90 = arith.constant 0 : index
    %123 = vector.load %arg8[%c1_88, %c0_89, %c0_90] : memref<3x16x1xf32, #tpu.memory_space<vmem>>, vector<1x16x1xf32>
    %124 = vector.shape_cast %123 : vector<1x16x1xf32> to vector<16x1xf32>
    %cst_91 = arith.constant 0.000000e+00 : f32
    %125 = vector.broadcast %cst_91 : f32 to vector<16x512xf32>
    %126 = arith.cmpf oge, %122, %125 : vector<16x512xf32>
    %127 = vector.broadcast %124 : vector<16x1xf32> to vector<16x512xf32>
    %128 = arith.mulf %127, %122 : vector<16x512xf32>
    %129 = arith.select %126, %122, %128 : vector<16x512xi1>, vector<16x512xf32>
    %c1_92 = arith.constant 1 : index
    %c0_93 = arith.constant 0 : index
    %c0_94 = arith.constant 0 : index
    %130 = vector.load %arg6[%c1_92, %c0_93, %c0_94] : memref<2x16x1xf32, #tpu.memory_space<vmem>>, vector<1x16x1xf32>
    %131 = vector.shape_cast %130 : vector<1x16x1xf32> to vector<16x1xf32>
    %c1_i32_95 = arith.constant 1 : i32
    %132 = tpu.dynamic_rotate %129 by %c1_i32_95 dim 1 : vector<16x512xf32>, i32 -> vector<16x512xf32>
    %133 = vector.broadcast %1 : vector<1x512xf32> to vector<16x512xf32>
    %134 = arith.mulf %132, %133 : vector<16x512xf32>
    %c511_i32_96 = arith.constant 511 : i32
    %135 = tpu.dynamic_rotate %129 by %c511_i32_96 dim 1 : vector<16x512xf32>, i32 -> vector<16x512xf32>
    %136 = vector.broadcast %2 : vector<1x512xf32> to vector<16x512xf32>
    %137 = arith.mulf %135, %136 : vector<16x512xf32>
    %c16_i32_97 = arith.constant 16 : i32
    %138 = tpu.dynamic_rotate %134 by %c16_i32_97 dim 1 : vector<16x512xf32>, i32 -> vector<16x512xf32>
    %c9 = arith.constant 9 : index
    %c0_98 = arith.constant 0 : index
    %c0_99 = arith.constant 0 : index
    %139 = vector.load %arg3[%c9, %c0_98, %c0_99] : memref<18x16x16xf32, #tpu.memory_space<vmem>>, vector<1x16x16xf32>
    %140 = vector.shape_cast %139 : vector<1x16x16xf32> to vector<16x16xf32>
    %cst_100 = arith.constant dense<0.000000e+00> : vector<16x512xf32>
    %141 = tpu.matmul %140, %138, %cst_100 {dimension_numbers = #tpu.dot_dimension_numbers<[1], [0], [0], [1], [0, 0, 1, 1], [], []>} : vector<16x16xf32>, vector<16x512xf32>, vector<16x512xf32> -> vector<16x512xf32>
    %c16_i32_101 = arith.constant 16 : i32
    %142 = tpu.dynamic_rotate %129 by %c16_i32_101 dim 1 : vector<16x512xf32>, i32 -> vector<16x512xf32>
    %c10 = arith.constant 10 : index
    %c0_102 = arith.constant 0 : index
    %c0_103 = arith.constant 0 : index
    %143 = vector.load %arg3[%c10, %c0_102, %c0_103] : memref<18x16x16xf32, #tpu.memory_space<vmem>>, vector<1x16x16xf32>
    %144 = vector.shape_cast %143 : vector<1x16x16xf32> to vector<16x16xf32>
    %cst_104 = arith.constant dense<0.000000e+00> : vector<16x512xf32>
    %145 = tpu.matmul %144, %142, %cst_104 {dimension_numbers = #tpu.dot_dimension_numbers<[1], [0], [0], [1], [0, 0, 1, 1], [], []>} : vector<16x16xf32>, vector<16x512xf32>, vector<16x512xf32> -> vector<16x512xf32>
    %146 = arith.addf %141, %145 : vector<16x512xf32>
    %c16_i32_105 = arith.constant 16 : i32
    %147 = tpu.dynamic_rotate %137 by %c16_i32_105 dim 1 : vector<16x512xf32>, i32 -> vector<16x512xf32>
    %c11 = arith.constant 11 : index
    %c0_106 = arith.constant 0 : index
    %c0_107 = arith.constant 0 : index
    %148 = vector.load %arg3[%c11, %c0_106, %c0_107] : memref<18x16x16xf32, #tpu.memory_space<vmem>>, vector<1x16x16xf32>
    %149 = vector.shape_cast %148 : vector<1x16x16xf32> to vector<16x16xf32>
    %cst_108 = arith.constant dense<0.000000e+00> : vector<16x512xf32>
    %150 = tpu.matmul %149, %147, %cst_108 {dimension_numbers = #tpu.dot_dimension_numbers<[1], [0], [0], [1], [0, 0, 1, 1], [], []>} : vector<16x16xf32>, vector<16x512xf32>, vector<16x512xf32> -> vector<16x512xf32>
    %151 = arith.addf %146, %150 : vector<16x512xf32>
    %152 = vector.broadcast %3 : vector<1x512xf32> to vector<16x512xf32>
    %153 = arith.mulf %151, %152 : vector<16x512xf32>
    %c12 = arith.constant 12 : index
    %c0_109 = arith.constant 0 : index
    %c0_110 = arith.constant 0 : index
    %154 = vector.load %arg3[%c12, %c0_109, %c0_110] : memref<18x16x16xf32, #tpu.memory_space<vmem>>, vector<1x16x16xf32>
    %155 = vector.shape_cast %154 : vector<1x16x16xf32> to vector<16x16xf32>
    %cst_111 = arith.constant dense<0.000000e+00> : vector<16x512xf32>
    %156 = tpu.matmul %155, %134, %cst_111 {dimension_numbers = #tpu.dot_dimension_numbers<[1], [0], [0], [1], [0, 0, 1, 1], [], []>} : vector<16x16xf32>, vector<16x512xf32>, vector<16x512xf32> -> vector<16x512xf32>
    %c13 = arith.constant 13 : index
    %c0_112 = arith.constant 0 : index
    %c0_113 = arith.constant 0 : index
    %157 = vector.load %arg3[%c13, %c0_112, %c0_113] : memref<18x16x16xf32, #tpu.memory_space<vmem>>, vector<1x16x16xf32>
    %158 = vector.shape_cast %157 : vector<1x16x16xf32> to vector<16x16xf32>
    %cst_114 = arith.constant dense<0.000000e+00> : vector<16x512xf32>
    %159 = tpu.matmul %158, %129, %cst_114 {dimension_numbers = #tpu.dot_dimension_numbers<[1], [0], [0], [1], [0, 0, 1, 1], [], []>} : vector<16x16xf32>, vector<16x512xf32>, vector<16x512xf32> -> vector<16x512xf32>
    %160 = arith.addf %156, %159 : vector<16x512xf32>
    %c14 = arith.constant 14 : index
    %c0_115 = arith.constant 0 : index
    %c0_116 = arith.constant 0 : index
    %161 = vector.load %arg3[%c14, %c0_115, %c0_116] : memref<18x16x16xf32, #tpu.memory_space<vmem>>, vector<1x16x16xf32>
    %162 = vector.shape_cast %161 : vector<1x16x16xf32> to vector<16x16xf32>
    %cst_117 = arith.constant dense<0.000000e+00> : vector<16x512xf32>
    %163 = tpu.matmul %162, %137, %cst_117 {dimension_numbers = #tpu.dot_dimension_numbers<[1], [0], [0], [1], [0, 0, 1, 1], [], []>} : vector<16x16xf32>, vector<16x512xf32>, vector<16x512xf32> -> vector<16x512xf32>
    %164 = arith.addf %160, %163 : vector<16x512xf32>
    %165 = arith.addf %153, %164 : vector<16x512xf32>
    %c496_i32_118 = arith.constant 496 : i32
    %166 = tpu.dynamic_rotate %134 by %c496_i32_118 dim 1 : vector<16x512xf32>, i32 -> vector<16x512xf32>
    %c15 = arith.constant 15 : index
    %c0_119 = arith.constant 0 : index
    %c0_120 = arith.constant 0 : index
    %167 = vector.load %arg3[%c15, %c0_119, %c0_120] : memref<18x16x16xf32, #tpu.memory_space<vmem>>, vector<1x16x16xf32>
    %168 = vector.shape_cast %167 : vector<1x16x16xf32> to vector<16x16xf32>
    %cst_121 = arith.constant dense<0.000000e+00> : vector<16x512xf32>
    %169 = tpu.matmul %168, %166, %cst_121 {dimension_numbers = #tpu.dot_dimension_numbers<[1], [0], [0], [1], [0, 0, 1, 1], [], []>} : vector<16x16xf32>, vector<16x512xf32>, vector<16x512xf32> -> vector<16x512xf32>
    %c496_i32_122 = arith.constant 496 : i32
    %170 = tpu.dynamic_rotate %129 by %c496_i32_122 dim 1 : vector<16x512xf32>, i32 -> vector<16x512xf32>
    %c16 = arith.constant 16 : index
    %c0_123 = arith.constant 0 : index
    %c0_124 = arith.constant 0 : index
    %171 = vector.load %arg3[%c16, %c0_123, %c0_124] : memref<18x16x16xf32, #tpu.memory_space<vmem>>, vector<1x16x16xf32>
    %172 = vector.shape_cast %171 : vector<1x16x16xf32> to vector<16x16xf32>
    %cst_125 = arith.constant dense<0.000000e+00> : vector<16x512xf32>
    %173 = tpu.matmul %172, %170, %cst_125 {dimension_numbers = #tpu.dot_dimension_numbers<[1], [0], [0], [1], [0, 0, 1, 1], [], []>} : vector<16x16xf32>, vector<16x512xf32>, vector<16x512xf32> -> vector<16x512xf32>
    %174 = arith.addf %169, %173 : vector<16x512xf32>
    %c496_i32_126 = arith.constant 496 : i32
    %175 = tpu.dynamic_rotate %137 by %c496_i32_126 dim 1 : vector<16x512xf32>, i32 -> vector<16x512xf32>
    %c17 = arith.constant 17 : index
    %c0_127 = arith.constant 0 : index
    %c0_128 = arith.constant 0 : index
    %176 = vector.load %arg3[%c17, %c0_127, %c0_128] : memref<18x16x16xf32, #tpu.memory_space<vmem>>, vector<1x16x16xf32>
    %177 = vector.shape_cast %176 : vector<1x16x16xf32> to vector<16x16xf32>
    %cst_129 = arith.constant dense<0.000000e+00> : vector<16x512xf32>
    %178 = tpu.matmul %177, %175, %cst_129 {dimension_numbers = #tpu.dot_dimension_numbers<[1], [0], [0], [1], [0, 0, 1, 1], [], []>} : vector<16x16xf32>, vector<16x512xf32>, vector<16x512xf32> -> vector<16x512xf32>
    %179 = arith.addf %174, %178 : vector<16x512xf32>
    %180 = vector.broadcast %4 : vector<1x512xf32> to vector<16x512xf32>
    %181 = arith.mulf %179, %180 : vector<16x512xf32>
    %182 = arith.addf %165, %181 : vector<16x512xf32>
    %183 = vector.broadcast %131 : vector<16x1xf32> to vector<16x512xf32>
    %184 = arith.addf %182, %183 : vector<16x512xf32>
    %c2_130 = arith.constant 2 : index
    %c0_131 = arith.constant 0 : index
    %c0_132 = arith.constant 0 : index
    %185 = vector.load %arg8[%c2_130, %c0_131, %c0_132] : memref<3x16x1xf32, #tpu.memory_space<vmem>>, vector<1x16x1xf32>
    %186 = vector.shape_cast %185 : vector<1x16x1xf32> to vector<16x1xf32>
    %cst_133 = arith.constant 0.000000e+00 : f32
    %187 = vector.broadcast %cst_133 : f32 to vector<16x512xf32>
    %188 = arith.cmpf oge, %184, %187 : vector<16x512xf32>
    %189 = vector.broadcast %186 : vector<16x1xf32> to vector<16x512xf32>
    %190 = arith.mulf %189, %184 : vector<16x512xf32>
    %191 = arith.select %188, %184, %190 : vector<16x512xi1>, vector<16x512xf32>
    %c0_134 = arith.constant 0 : index
    %c0_135 = arith.constant 0 : index
    %192 = vector.load %arg7[%c0_134, %c0_135] : memref<8x1xf32, #tpu.memory_space<vmem>>, vector<8x1xf32>
    %c1_i32_136 = arith.constant 1 : i32
    %193 = tpu.dynamic_rotate %191 by %c1_i32_136 dim 1 : vector<16x512xf32>, i32 -> vector<16x512xf32>
    %194 = vector.broadcast %1 : vector<1x512xf32> to vector<16x512xf32>
    %195 = arith.mulf %193, %194 : vector<16x512xf32>
    %c511_i32_137 = arith.constant 511 : i32
    %196 = tpu.dynamic_rotate %191 by %c511_i32_137 dim 1 : vector<16x512xf32>, i32 -> vector<16x512xf32>
    %197 = vector.broadcast %2 : vector<1x512xf32> to vector<16x512xf32>
    %198 = arith.mulf %196, %197 : vector<16x512xf32>
    %c16_i32_138 = arith.constant 16 : i32
    %199 = tpu.dynamic_rotate %195 by %c16_i32_138 dim 1 : vector<16x512xf32>, i32 -> vector<16x512xf32>
    %c0_139 = arith.constant 0 : index
    %c0_140 = arith.constant 0 : index
    %c0_141 = arith.constant 0 : index
    %200 = vector.load %arg4[%c0_139, %c0_140, %c0_141] : memref<9x8x16xf32, #tpu.memory_space<vmem>>, vector<1x8x16xf32>
    %201 = vector.shape_cast %200 : vector<1x8x16xf32> to vector<8x16xf32>
    %cst_142 = arith.constant dense<0.000000e+00> : vector<8x512xf32>
    %202 = tpu.matmul %201, %199, %cst_142 {dimension_numbers = #tpu.dot_dimension_numbers<[1], [0], [0], [1], [0, 0, 1, 1], [], []>} : vector<8x16xf32>, vector<16x512xf32>, vector<8x512xf32> -> vector<8x512xf32>
    %c16_i32_143 = arith.constant 16 : i32
    %203 = tpu.dynamic_rotate %191 by %c16_i32_143 dim 1 : vector<16x512xf32>, i32 -> vector<16x512xf32>
    %c1_144 = arith.constant 1 : index
    %c0_145 = arith.constant 0 : index
    %c0_146 = arith.constant 0 : index
    %204 = vector.load %arg4[%c1_144, %c0_145, %c0_146] : memref<9x8x16xf32, #tpu.memory_space<vmem>>, vector<1x8x16xf32>
    %205 = vector.shape_cast %204 : vector<1x8x16xf32> to vector<8x16xf32>
    %cst_147 = arith.constant dense<0.000000e+00> : vector<8x512xf32>
    %206 = tpu.matmul %205, %203, %cst_147 {dimension_numbers = #tpu.dot_dimension_numbers<[1], [0], [0], [1], [0, 0, 1, 1], [], []>} : vector<8x16xf32>, vector<16x512xf32>, vector<8x512xf32> -> vector<8x512xf32>
    %207 = arith.addf %202, %206 : vector<8x512xf32>
    %c16_i32_148 = arith.constant 16 : i32
    %208 = tpu.dynamic_rotate %198 by %c16_i32_148 dim 1 : vector<16x512xf32>, i32 -> vector<16x512xf32>
    %c2_149 = arith.constant 2 : index
    %c0_150 = arith.constant 0 : index
    %c0_151 = arith.constant 0 : index
    %209 = vector.load %arg4[%c2_149, %c0_150, %c0_151] : memref<9x8x16xf32, #tpu.memory_space<vmem>>, vector<1x8x16xf32>
    %210 = vector.shape_cast %209 : vector<1x8x16xf32> to vector<8x16xf32>
    %cst_152 = arith.constant dense<0.000000e+00> : vector<8x512xf32>
    %211 = tpu.matmul %210, %208, %cst_152 {dimension_numbers = #tpu.dot_dimension_numbers<[1], [0], [0], [1], [0, 0, 1, 1], [], []>} : vector<8x16xf32>, vector<16x512xf32>, vector<8x512xf32> -> vector<8x512xf32>
    %212 = arith.addf %207, %211 : vector<8x512xf32>
    %213 = vector.broadcast %3 : vector<1x512xf32> to vector<8x512xf32>
    %214 = arith.mulf %212, %213 : vector<8x512xf32>
    %c3_153 = arith.constant 3 : index
    %c0_154 = arith.constant 0 : index
    %c0_155 = arith.constant 0 : index
    %215 = vector.load %arg4[%c3_153, %c0_154, %c0_155] : memref<9x8x16xf32, #tpu.memory_space<vmem>>, vector<1x8x16xf32>
    %216 = vector.shape_cast %215 : vector<1x8x16xf32> to vector<8x16xf32>
    %cst_156 = arith.constant dense<0.000000e+00> : vector<8x512xf32>
    %217 = tpu.matmul %216, %195, %cst_156 {dimension_numbers = #tpu.dot_dimension_numbers<[1], [0], [0], [1], [0, 0, 1, 1], [], []>} : vector<8x16xf32>, vector<16x512xf32>, vector<8x512xf32> -> vector<8x512xf32>
    %c4_157 = arith.constant 4 : index
    %c0_158 = arith.constant 0 : index
    %c0_159 = arith.constant 0 : index
    %218 = vector.load %arg4[%c4_157, %c0_158, %c0_159] : memref<9x8x16xf32, #tpu.memory_space<vmem>>, vector<1x8x16xf32>
    %219 = vector.shape_cast %218 : vector<1x8x16xf32> to vector<8x16xf32>
    %cst_160 = arith.constant dense<0.000000e+00> : vector<8x512xf32>
    %220 = tpu.matmul %219, %191, %cst_160 {dimension_numbers = #tpu.dot_dimension_numbers<[1], [0], [0], [1], [0, 0, 1, 1], [], []>} : vector<8x16xf32>, vector<16x512xf32>, vector<8x512xf32> -> vector<8x512xf32>
    %221 = arith.addf %217, %220 : vector<8x512xf32>
    %c5_161 = arith.constant 5 : index
    %c0_162 = arith.constant 0 : index
    %c0_163 = arith.constant 0 : index
    %222 = vector.load %arg4[%c5_161, %c0_162, %c0_163] : memref<9x8x16xf32, #tpu.memory_space<vmem>>, vector<1x8x16xf32>
    %223 = vector.shape_cast %222 : vector<1x8x16xf32> to vector<8x16xf32>
    %cst_164 = arith.constant dense<0.000000e+00> : vector<8x512xf32>
    %224 = tpu.matmul %223, %198, %cst_164 {dimension_numbers = #tpu.dot_dimension_numbers<[1], [0], [0], [1], [0, 0, 1, 1], [], []>} : vector<8x16xf32>, vector<16x512xf32>, vector<8x512xf32> -> vector<8x512xf32>
    %225 = arith.addf %221, %224 : vector<8x512xf32>
    %226 = arith.addf %214, %225 : vector<8x512xf32>
    %c496_i32_165 = arith.constant 496 : i32
    %227 = tpu.dynamic_rotate %195 by %c496_i32_165 dim 1 : vector<16x512xf32>, i32 -> vector<16x512xf32>
    %c6_166 = arith.constant 6 : index
    %c0_167 = arith.constant 0 : index
    %c0_168 = arith.constant 0 : index
    %228 = vector.load %arg4[%c6_166, %c0_167, %c0_168] : memref<9x8x16xf32, #tpu.memory_space<vmem>>, vector<1x8x16xf32>
    %229 = vector.shape_cast %228 : vector<1x8x16xf32> to vector<8x16xf32>
    %cst_169 = arith.constant dense<0.000000e+00> : vector<8x512xf32>
    %230 = tpu.matmul %229, %227, %cst_169 {dimension_numbers = #tpu.dot_dimension_numbers<[1], [0], [0], [1], [0, 0, 1, 1], [], []>} : vector<8x16xf32>, vector<16x512xf32>, vector<8x512xf32> -> vector<8x512xf32>
    %c496_i32_170 = arith.constant 496 : i32
    %231 = tpu.dynamic_rotate %191 by %c496_i32_170 dim 1 : vector<16x512xf32>, i32 -> vector<16x512xf32>
    %c7_171 = arith.constant 7 : index
    %c0_172 = arith.constant 0 : index
    %c0_173 = arith.constant 0 : index
    %232 = vector.load %arg4[%c7_171, %c0_172, %c0_173] : memref<9x8x16xf32, #tpu.memory_space<vmem>>, vector<1x8x16xf32>
    %233 = vector.shape_cast %232 : vector<1x8x16xf32> to vector<8x16xf32>
    %cst_174 = arith.constant dense<0.000000e+00> : vector<8x512xf32>
    %234 = tpu.matmul %233, %231, %cst_174 {dimension_numbers = #tpu.dot_dimension_numbers<[1], [0], [0], [1], [0, 0, 1, 1], [], []>} : vector<8x16xf32>, vector<16x512xf32>, vector<8x512xf32> -> vector<8x512xf32>
    %235 = arith.addf %230, %234 : vector<8x512xf32>
    %c496_i32_175 = arith.constant 496 : i32
    %236 = tpu.dynamic_rotate %198 by %c496_i32_175 dim 1 : vector<16x512xf32>, i32 -> vector<16x512xf32>
    %c8_176 = arith.constant 8 : index
    %c0_177 = arith.constant 0 : index
    %c0_178 = arith.constant 0 : index
    %237 = vector.load %arg4[%c8_176, %c0_177, %c0_178] : memref<9x8x16xf32, #tpu.memory_space<vmem>>, vector<1x8x16xf32>
    %238 = vector.shape_cast %237 : vector<1x8x16xf32> to vector<8x16xf32>
    %cst_179 = arith.constant dense<0.000000e+00> : vector<8x512xf32>
    %239 = tpu.matmul %238, %236, %cst_179 {dimension_numbers = #tpu.dot_dimension_numbers<[1], [0], [0], [1], [0, 0, 1, 1], [], []>} : vector<8x16xf32>, vector<16x512xf32>, vector<8x512xf32> -> vector<8x512xf32>
    %240 = arith.addf %235, %239 : vector<8x512xf32>
    %241 = vector.broadcast %4 : vector<1x512xf32> to vector<8x512xf32>
    %242 = arith.mulf %240, %241 : vector<8x512xf32>
    %243 = arith.addf %226, %242 : vector<8x512xf32>
    %244 = vector.broadcast %192 : vector<8x1xf32> to vector<8x512xf32>
    %245 = arith.addf %243, %244 : vector<8x512xf32>
    %c0_180 = arith.constant 0 : index
    %c0_181 = arith.constant 0 : index
    %c0_182 = arith.constant 0 : index
    %246 = vector.load %arg10[%c0_180, %c0_181, %c0_182] : memref<1x8x512xf32, #tpu.memory_space<vmem>>, vector<1x8x512xf32>
    %247 = vector.shape_cast %246 : vector<1x8x512xf32> to vector<8x512xf32>
    %248 = vector.shape_cast %245 : vector<8x512xf32> to vector<1x8x512xf32>
    tpu.vector_store %arg10[%c0_180, %c0_181, %c0_182], %248 {strides = array<i32>} : memref<1x8x512xf32, #tpu.memory_space<vmem>>, vector<1x8x512xf32>,
    return
  }
  func.func @transform_0(%arg0: i32) -> (i32, i32, i32) {
    %c0_i32 = arith.constant 0 : i32
    %c0_i32_0 = arith.constant 0 : i32
    %c0_i32_1 = arith.constant 0 : i32
    return %arg0, %c0_i32, %c0_i32_0 : i32, i32, i32
  }
  func.func @transform_1(%arg0: i32) -> (i32, i32, i32) {
    %c0_i32 = arith.constant 0 : i32
    %c0_i32_0 = arith.constant 0 : i32
    %c0_i32_1 = arith.constant 0 : i32
    %c0_i32_2 = arith.constant 0 : i32
    return %c0_i32, %c0_i32_0, %c0_i32_1 : i32, i32, i32
  }
  func.func @transform_2(%arg0: i32) -> (i32, i32, i32) {
    %c0_i32 = arith.constant 0 : i32
    %c0_i32_0 = arith.constant 0 : i32
    %c0_i32_1 = arith.constant 0 : i32
    %c0_i32_2 = arith.constant 0 : i32
    return %c0_i32, %c0_i32_0, %c0_i32_1 : i32, i32, i32
  }
  func.func @transform_3(%arg0: i32) -> (i32, i32, i32) {
    %c0_i32 = arith.constant 0 : i32
    %c0_i32_0 = arith.constant 0 : i32
    %c0_i32_1 = arith.constant 0 : i32
    %c0_i32_2 = arith.constant 0 : i32
    return %c0_i32, %c0_i32_0, %c0_i32_1 : i32, i32, i32
  }
  func.func @transform_4(%arg0: i32) -> (i32, i32) {
    %c0_i32 = arith.constant 0 : i32
    %c0_i32_0 = arith.constant 0 : i32
    %c0_i32_1 = arith.constant 0 : i32
    return %c0_i32, %c0_i32_0 : i32, i32
  }
  func.func @transform_5(%arg0: i32) -> (i32, i32, i32) {
    %c0_i32 = arith.constant 0 : i32
    %c0_i32_0 = arith.constant 0 : i32
    %c0_i32_1 = arith.constant 0 : i32
    %c0_i32_2 = arith.constant 0 : i32
    return %c0_i32, %c0_i32_0, %c0_i32_1 : i32, i32, i32
  }
  func.func @transform_6(%arg0: i32) -> (i32, i32) {
    %c0_i32 = arith.constant 0 : i32
    %c0_i32_0 = arith.constant 0 : i32
    %c0_i32_1 = arith.constant 0 : i32
    return %c0_i32, %c0_i32_0 : i32, i32
  }
  func.func @transform_7(%arg0: i32) -> (i32, i32, i32) {
    %c0_i32 = arith.constant 0 : i32
    %c0_i32_0 = arith.constant 0 : i32
    %c0_i32_1 = arith.constant 0 : i32
    %c0_i32_2 = arith.constant 0 : i32
    return %c0_i32, %c0_i32_0, %c0_i32_1 : i32, i32, i32
  }
  func.func @transform_8(%arg0: i32) -> (i32, i32) {
    %c0_i32 = arith.constant 0 : i32
    %c0_i32_0 = arith.constant 0 : i32
    %c0_i32_1 = arith.constant 0 : i32
    return %c0_i32, %c0_i32_0 : i32, i32
  }
  func.func @transform_9(%arg0: i32) -> (i32, i32, i32) {
    %c0_i32 = arith.constant 0 : i32
    %c0_i32_0 = arith.constant 0 : i32
    %c0_i32_1 = arith.constant 0 : i32
    return %arg0, %c0_i32, %c0_i32_0 : i32, i32, i32
  }
}

</mosaic_0001>

<llo_original>
// kernel: tpu_custom_call.1
$region0: #{tpu_custom_call.1}
  #allocation0 [shape = 'u32[]', space=smem, size = 0x4, offset = 0x4, fixed_abs, tag = 'smem constant byte address 0x4 - core index']
  #allocation1 [shape = 'u32[72,128]{1,0:T(1,128)}', space=vmem, size = 0x9000, scoped, tag = 'internal scratch']
  %s0 = inlined_call_operand.vmem [shape: f32[1,8,512], index: 0, kind: input, shape index: {}]
  %s1 = inlined_call_operand.vmem [shape: f32[9,16,8], index: 1, kind: input, shape index: {}]
  %s2 = inlined_call_operand.vmem [shape: f32[18,16,16], index: 2, kind: input, shape index: {}]
  %s3 = inlined_call_operand.vmem [shape: f32[9,8,16], index: 3, kind: input, shape index: {}]
  %s4 = inlined_call_operand.vmem [shape: f32[16,1], index: 4, kind: input, shape index: {}]
  %s5 = inlined_call_operand.vmem [shape: f32[2,16,1], index: 5, kind: input, shape index: {}]
  %s6 = inlined_call_operand.vmem [shape: f32[8,1], index: 6, kind: input, shape index: {}]
  %s7 = inlined_call_operand.vmem [shape: f32[3,16,1], index: 7, kind: input, shape index: {}]
  %s8 = inlined_call_operand.vmem [shape: f32[4,512], index: 8, kind: input, shape index: {}]
  %s9 = inlined_call_operand.hbm [shape: f32[1,8,512], index: 9, kind: output, shape index: {}]
  %s10 = sld [smem:[#allocation0]]
  $region46: #{tpu_custom_call.1} parent=0
    _
  %s12 = ssub.s32 1, %s10
  %s13 = scalar_select 0, %s12, %s10
  $region1: #{tpu_custom_call.1} parent=0
    #allocation2 [shape = 'u8[16384]{0}', space=vmem, size = 0x4000, scoped, tag = 'output window, operand 0, single buffered']
    #allocation3 [shape = 's32[1]{0}', space=sflag, size = 0x4, scoped, tag = 'scoped memory for tpu_custom_call.1']
    %14 = vsyncpa [#allocation3], 0
    // Predicated region
    $region2: #{tpu_custom_call.1} parent=1 // pred_check
      _
    $region3: #{tpu_custom_call.1} parent=1 // pred_check_branch
      %16 = sbr.rel (0) target = $region5
    $region4: #{tpu_custom_call.1} parent=1 // pred_region
      _
    $region5: #{tpu_custom_call.1} parent=1 // pred_fallthru
      _
    // Predicated region
    $region6: #{tpu_custom_call.1} parent=1 // pred_check
      _
    $region7: #{tpu_custom_call.1} parent=1 // pred_check_branch
      %18 = sbr.rel (0) target = $region9
    $region8: #{tpu_custom_call.1} parent=1 // pred_region
      _
    $region9: #{tpu_custom_call.1} parent=1 // pred_fallthru
      _
    // Predicated region
    $region10: #{tpu_custom_call.1} parent=1 // pred_check
      _
    $region11: #{tpu_custom_call.1} parent=1 // pred_check_branch
      %20 = sbr.rel (0) target = $region13
    $region12: #{tpu_custom_call.1} parent=1 // pred_region
      _
    $region13: #{tpu_custom_call.1} parent=1 // pred_fallthru
      _
    // Predicated region
    $region14: #{tpu_custom_call.1} parent=1 // pred_check
      _
    $region15: #{tpu_custom_call.1} parent=1 // pred_check_branch
      %22 = sbr.rel (0) target = $region17
    $region16: #{tpu_custom_call.1} parent=1 // pred_region
      _
    $region17: #{tpu_custom_call.1} parent=1 // pred_fallthru
      _
    // Predicated region
    $region18: #{tpu_custom_call.1} parent=1 // pred_check
      _
    $region19: #{tpu_custom_call.1} parent=1 // pred_check_branch
      %24 = sbr.rel (0) target = $region21
    $region20: #{tpu_custom_call.1} parent=1 // pred_region
      _
    $region21: #{tpu_custom_call.1} parent=1 // pred_fallthru
      _
    // Predicated region
    $region22: #{tpu_custom_call.1} parent=1 // pred_check
      _
    $region23: #{tpu_custom_call.1} parent=1 // pred_check_branch
      %26 = sbr.rel (0) target = $region25
    $region24: #{tpu_custom_call.1} parent=1 // pred_region
      _
    $region25: #{tpu_custom_call.1} parent=1 // pred_fallthru
      _
    // Predicated region
    $region26: #{tpu_custom_call.1} parent=1 // pred_check
      _
    $region27: #{tpu_custom_call.1} parent=1 // pred_check_branch
      %28 = sbr.rel (0) target = $region29
    $region28: #{tpu_custom_call.1} parent=1 // pred_region
      _
    $region29: #{tpu_custom_call.1} parent=1 // pred_fallthru
      _
    // Predicated region
    $region30: #{tpu_custom_call.1} parent=1 // pred_check
      _
    $region31: #{tpu_custom_call.1} parent=1 // pred_check_branch
      %30 = sbr.rel (0) target = $region33
    $region32: #{tpu_custom_call.1} parent=1 // pred_region
      _
    $region33: #{tpu_custom_call.1} parent=1 // pred_fallthru
      _
    // Predicated region
    $region34: #{tpu_custom_call.1} parent=1 // pred_check
      _
    $region35: #{tpu_custom_call.1} parent=1 // pred_check_branch
      %32 = sbr.rel (0) target = $region37
    $region36: #{tpu_custom_call.1} parent=1 // pred_region
      _
    $region37: #{tpu_custom_call.1} parent=1 // pred_fallthru
      _
    %v33 = vld [vmem:[%s8] sm:$0xff]
    %v34 = vld [vmem:[%s8 + $0x8] sm:$0xff]
    %v35 = vld [vmem:[%s0] sm:$0xff]
    %v36 = vld [vmem:[%s0 + $0x8] sm:$0xff]
    %v37 = vld [vmem:[%s0 + $0x10] sm:$0xff]
    %v38 = vld [vmem:[%s0 + $0x18] sm:$0xff]
    %v39 = vld [vmem:[%s4] sm:$0xff]
    %v40 = vld [vmem:[%s4 + $0x8] sm:$0xff]
    %41 = vrot.lane.b32.xlu0 %v35, 1
    %v42 = vpop.permute.xlu0 %41
    %43 = vrot.lane.b32.xlu0 %v36, 1
    %v44 = vpop.permute.xlu0 %43
    %45 = vrot.lane.b32.xlu0 %v37, 1
    %v46 = vpop.permute.xlu0 %45
    %47 = vrot.lane.b32.xlu0 %v38, 1
    %v48 = vpop.permute.xlu0 %47
    %v49 = vlaneseq
    %v50 = vand.u32 %v49, 127
    %vm51 = vcmp.lt.s32.totalorder %v50, 1
    %v52 = vsel %vm51, %v46, %v48
    %v53 = vsel %vm51, %v44, %v46
    %v54 = vsel %vm51, %v42, %v44
    %v55 = vsel %vm51, %v48, %v42
    %v58 = vperm.slane %v33, 0
    %v59 = vperm.slane %v33, 4
    %v60 = vperm.slane %v34, 0
    %v61 = vperm.slane %v34, 4
    %v66 = vperm.slane %v58, 0
    %v67 = vperm.slane %v59, 0
    %v68 = vperm.slane %v60, 0
    %v69 = vperm.slane %v61, 0
    %v70 = vmul.f32 %v55, %v66
    %v71 = vmul.f32 %v54, %v67
    %v72 = vmul.f32 %v53, %v68
    %v73 = vmul.f32 %v52, %v69
    %74 = vrot.lane.b32.xlu0 %v35, 127
    %v75 = vpop.permute.xlu0 %74
    %76 = vrot.lane.b32.xlu0 %v36, 127
    %v77 = vpop.permute.xlu0 %76
    %78 = vrot.lane.b32.xlu0 %v37, 127
    %v79 = vpop.permute.xlu0 %78
    %80 = vrot.lane.b32.xlu0 %v38, 127
    %v81 = vpop.permute.xlu0 %80
    %vm82 = vcmp.lt.s32.totalorder %v50, 127
    %v83 = vsel %vm82, %v79, %v81
    %v84 = vsel %vm82, %v77, %v79
    %v85 = vsel %vm82, %v75, %v77
    %v86 = vsel %vm82, %v81, %v75
    %v87 = vperm.slane %v33, 1
    %v88 = vperm.slane %v33, 5
    %v89 = vperm.slane %v34, 1
    %v90 = vperm.slane %v34, 5
    %v95 = vperm.slane %v87, 1
    %v96 = vperm.slane %v88, 1
    %v97 = vperm.slane %v89, 1
    %v98 = vperm.slane %v90, 1
    %v99 = vmul.f32 %v85, %v95
    %v100 = vmul.f32 %v84, %v96
    %v101 = vmul.f32 %v83, %v97
    %v102 = vmul.f32 %v86, %v98
    %103 = vrot.lane.b32.xlu0 %v70, 16
    %v104 = vpop.permute.xlu0 %103
    %105 = vrot.lane.b32.xlu0 %v71, 16
    %v106 = vpop.permute.xlu0 %105
    %107 = vrot.lane.b32.xlu0 %v72, 16
    %v108 = vpop.permute.xlu0 %107
    %109 = vrot.lane.b32.xlu0 %v73, 16
    %v110 = vpop.permute.xlu0 %109
    %vm111 = vcmp.lt.s32.totalorder %v50, 16
    %v112 = vsel %vm111, %v108, %v110
    %v113 = vsel %vm111, %v106, %v108
    %v114 = vsel %vm111, %v104, %v106
    %v115 = vsel %vm111, %v110, %v104
    %v116 = vld [vmem:[%s1] sm:$0xff]
    %v117 = vld [vmem:[%s1 + $0x8] sm:$0xff]
    %118 = vrot.lane.b32.xlu0 %v35, 16
    %v119 = vpop.permute.xlu0 %118
    %120 = vrot.lane.b32.xlu0 %v36, 16
    %v121 = vpop.permute.xlu0 %120
    %122 = vrot.lane.b32.xlu0 %v37, 16
    %v123 = vpop.permute.xlu0 %122
    %124 = vrot.lane.b32.xlu0 %v38, 16
    %v125 = vpop.permute.xlu0 %124
    %v126 = vsel %vm111, %v123, %v125
    %v127 = vsel %vm111, %v121, %v123
    %v128 = vsel %vm111, %v119, %v121
    %v129 = vsel %vm111, %v125, %v119
    %s130 = scalar_lea.vmem %s1, 16
    %v131 = vld [vmem:[%s130] sm:$0xff]
    %v132 = vld [vmem:[%s130 + $0x8] sm:$0xff]
    %vm133 = vcmask 64512
    %v135 = vsel %vm133, %v131, 0
    %v138 = vsel %vm133, %v132, 0
    %140 = vmatpush.msra.mxu0 0.0
    %141 = vmatpush.msra.mxu0 0.0
    %142 = vmatpush.msra.mxu0 0.0
    %143 = vmatpush.msra.mxu0 0.0
    %144 = vmatpush.msra.mxu0 0.0
    %145 = vmatpush.msra.mxu0 0.0
    %146 = vmatpush.msra.mxu0 0.0
    %147 = vmatpush.msra.mxu0 0.0
    %148 = vmatpush.msra.mxu0 0.0
    %149 = vmatpush.msra.mxu0 0.0
    %150 = vmatpush.msra.mxu0 0.0
    %151 = vmatpush.msra.mxu0 0.0
    %152 = vmatpush.msra.mxu0 0.0
    %153 = vmatpush.msra.mxu0 0.0
    %154 = vmatpush.msra.mxu0 0.0
    %155 = vmatpush.msra.mxu0 %v129
    %156 = vmatmul.f32.gmra.mxu0 %v135
    %v157 = vpop.f32.mrf.mxu0
    %v158 = vadd.f32 0.0, %v157
    %159 = vmatmul.f32.gmra.mxu0 %v138
    %v160 = vpop.f32.mrf.mxu0
    %v161 = vadd.f32 0.0, %v160
    %162 = vdwg.mxu0
    %163 = vmatpush.msra.mxu0 0.0
    %164 = vmatpush.msra.mxu0 0.0
    %165 = vmatpush.msra.mxu0 0.0
    %166 = vmatpush.msra.mxu0 0.0
    %167 = vmatpush.msra.mxu0 0.0
    %168 = vmatpush.msra.mxu0 0.0
    %169 = vmatpush.msra.mxu0 0.0
    %170 = vmatpush.msra.mxu0 0.0
    %171 = vmatpush.msra.mxu0 0.0
    %172 = vmatpush.msra.mxu0 0.0
    %173 = vmatpush.msra.mxu0 0.0
    %174 = vmatpush.msra.mxu0 0.0
    %175 = vmatpush.msra.mxu0 0.0
    %176 = vmatpush.msra.mxu0 0.0
    %177 = vmatpush.msra.mxu0 0.0
    %178 = vmatpush.msra.mxu0 %v128
    %179 = vmatmul.f32.gmra.mxu0 %v135
    %v180 = vpop.f32.mrf.mxu0
    %v181 = vadd.f32 0.0, %v180
    %182 = vmatmul.f32.gmra.mxu0 %v138
    %v183 = vpop.f32.mrf.mxu0
    %v184 = vadd.f32 0.0, %v183
    %185 = vdwg.mxu0
    %186 = vmatpush.msra.mxu0 0.0
    %187 = vmatpush.msra.mxu0 0.0
    %188 = vmatpush.msra.mxu0 0.0
    %189 = vmatpush.msra.mxu0 0.0
    %190 = vmatpush.msra.mxu0 0.0
    %191 = vmatpush.msra.mxu0 0.0
    %192 = vmatpush.msra.mxu0 0.0
    %193 = vmatpush.msra.mxu0 0.0
    %194 = vmatpush.msra.mxu0 0.0
    %195 = vmatpush.msra.mxu0 0.0
    %196 = vmatpush.msra.mxu0 0.0
    %197 = vmatpush.msra.mxu0 0.0
    %198 = vmatpush.msra.mxu0 0.0
    %199 = vmatpush.msra.mxu0 0.0
    %200 = vmatpush.msra.mxu0 0.0
    %201 = vmatpush.msra.mxu0 %v127
    %202 = vmatmul.f32.gmra.mxu0 %v135
    %v203 = vpop.f32.mrf.mxu0
    %v204 = vadd.f32 0.0, %v203
    %205 = vmatmul.f32.gmra.mxu0 %v138
    %v206 = vpop.f32.mrf.mxu0
    %v207 = vadd.f32 0.0, %v206
    %208 = vdwg.mxu0
    %209 = vmatpush.msra.mxu0 0.0
    %210 = vmatpush.msra.mxu0 0.0
    %211 = vmatpush.msra.mxu0 0.0
    %212 = vmatpush.msra.mxu0 0.0
    %213 = vmatpush.msra.mxu0 0.0
    %214 = vmatpush.msra.mxu0 0.0
    %215 = vmatpush.msra.mxu0 0.0
    %216 = vmatpush.msra.mxu0 0.0
    %217 = vmatpush.msra.mxu0 0.0
    %218 = vmatpush.msra.mxu0 0.0
    %219 = vmatpush.msra.mxu0 0.0
    %220 = vmatpush.msra.mxu0 0.0
    %221 = vmatpush.msra.mxu0 0.0
    %222 = vmatpush.msra.mxu0 0.0
    %223 = vmatpush.msra.mxu0 0.0
    %224 = vmatpush.msra.mxu0 %v126
    %225 = vmatmul.f32.gmra.mxu0 %v135
    %v226 = vpop.f32.mrf.mxu0
    %v227 = vadd.f32 0.0, %v226
    %228 = vmatmul.f32.gmra.mxu0 %v138
    %v229 = vpop.f32.mrf.mxu0
    %v230 = vadd.f32 0.0, %v229
    %231 = vdwg.mxu0
    %v233 = vsel %vm133, %v116, 0
    %v236 = vsel %vm133, %v117, 0
    %238 = vmatpush.msra.mxu0 0.0
    %239 = vmatpush.msra.mxu0 0.0
    %240 = vmatpush.msra.mxu0 0.0
    %241 = vmatpush.msra.mxu0 0.0
    %242 = vmatpush.msra.mxu0 0.0
    %243 = vmatpush.msra.mxu0 0.0
    %244 = vmatpush.msra.mxu0 0.0
    %245 = vmatpush.msra.mxu0 0.0
    %246 = vmatpush.msra.mxu0 0.0
    %247 = vmatpush.msra.mxu0 0.0
    %248 = vmatpush.msra.mxu0 0.0
    %249 = vmatpush.msra.mxu0 0.0
    %250 = vmatpush.msra.mxu0 0.0
    %251 = vmatpush.msra.mxu0 0.0
    %252 = vmatpush.msra.mxu0 0.0
    %253 = vmatpush.msra.mxu0 %v115
    %254 = vmatmul.f32.gmra.mxu0 %v233
    %v255 = vpop.f32.mrf.mxu0
    %v256 = vadd.f32 %v158, %v255
    %257 = vmatmul.f32.gmra.mxu0 %v236
    %v258 = vpop.f32.mrf.mxu0
    %v259 = vadd.f32 %v161, %v258
    %260 = vdwg.mxu0
    %261 = vmatpush.msra.mxu0 0.0
    %262 = vmatpush.msra.mxu0 0.0
    %263 = vmatpush.msra.mxu0 0.0
    %264 = vmatpush.msra.mxu0 0.0
    %265 = vmatpush.msra.mxu0 0.0
    %266 = vmatpush.msra.mxu0 0.0
    %267 = vmatpush.msra.mxu0 0.0
    %268 = vmatpush.msra.mxu0 0.0
    %269 = vmatpush.msra.mxu0 0.0
    %270 = vmatpush.msra.mxu0 0.0
    %271 = vmatpush.msra.mxu0 0.0
    %272 = vmatpush.msra.mxu0 0.0
    %273 = vmatpush.msra.mxu0 0.0
    %274 = vmatpush.msra.mxu0 0.0
    %275 = vmatpush.msra.mxu0 0.0
    %276 = vmatpush.msra.mxu0 %v114
    %277 = vmatmul.f32.gmra.mxu0 %v233
    %v278 = vpop.f32.mrf.mxu0
    %v279 = vadd.f32 %v181, %v278
    %280 = vmatmul.f32.gmra.mxu0 %v236
    %v281 = vpop.f32.mrf.mxu0
    %v282 = vadd.f32 %v184, %v281
    %283 = vdwg.mxu0
    %284 = vmatpush.msra.mxu0 0.0
    %285 = vmatpush.msra.mxu0 0.0
    %286 = vmatpush.msra.mxu0 0.0
    %287 = vmatpush.msra.mxu0 0.0
    %288 = vmatpush.msra.mxu0 0.0
    %289 = vmatpush.msra.mxu0 0.0
    %290 = vmatpush.msra.mxu0 0.0
    %291 = vmatpush.msra.mxu0 0.0
    %292 = vmatpush.msra.mxu0 0.0
    %293 = vmatpush.msra.mxu0 0.0
    %294 = vmatpush.msra.mxu0 0.0
    %295 = vmatpush.msra.mxu0 0.0
    %296 = vmatpush.msra.mxu0 0.0
    %297 = vmatpush.msra.mxu0 0.0
    %298 = vmatpush.msra.mxu0 0.0
    %299 = vmatpush.msra.mxu0 %v113
    %300 = vmatmul.f32.gmra.mxu0 %v233
    %v301 = vpop.f32.mrf.mxu0
    %v302 = vadd.f32 %v204, %v301
    %303 = vmatmul.f32.gmra.mxu0 %v236
    %v304 = vpop.f32.mrf.mxu0
    %v305 = vadd.f32 %v207, %v304
    %306 = vdwg.mxu0
    %307 = vmatpush.msra.mxu0 0.0
    %308 = vmatpush.msra.mxu0 0.0
    %309 = vmatpush.msra.mxu0 0.0
    %310 = vmatpush.msra.mxu0 0.0
    %311 = vmatpush.msra.mxu0 0.0
    %312 = vmatpush.msra.mxu0 0.0
    %313 = vmatpush.msra.mxu0 0.0
    %314 = vmatpush.msra.mxu0 0.0
    %315 = vmatpush.msra.mxu0 0.0
    %316 = vmatpush.msra.mxu0 0.0
    %317 = vmatpush.msra.mxu0 0.0
    %318 = vmatpush.msra.mxu0 0.0
    %319 = vmatpush.msra.mxu0 0.0
    %320 = vmatpush.msra.mxu0 0.0
    %321 = vmatpush.msra.mxu0 0.0
    %322 = vmatpush.msra.mxu0 %v112
    %323 = vmatmul.f32.gmra.mxu0 %v233
    %v324 = vpop.f32.mrf.mxu0
    %v325 = vadd.f32 %v227, %v324
    %326 = vmatmul.f32.gmra.mxu0 %v236
    %v327 = vpop.f32.mrf.mxu0
    %v328 = vadd.f32 %v230, %v327
    %329 = vdwg.mxu0
    %330 = vrot.lane.b32.xlu0 %v99, 16
    %v331 = vpop.permute.xlu0 %330
    %332 = vrot.lane.b32.xlu0 %v100, 16
    %v333 = vpop.permute.xlu0 %332
    %334 = vrot.lane.b32.xlu0 %v101, 16
    %v335 = vpop.permute.xlu0 %334
    %336 = vrot.lane.b32.xlu0 %v102, 16
    %v337 = vpop.permute.xlu0 %336
    %v338 = vsel %vm111, %v335, %v337
    %v339 = vsel %vm111, %v333, %v335
    %v340 = vsel %vm111, %v331, %v333
    %v341 = vsel %vm111, %v337, %v331
    %s342 = scalar_lea.vmem %s1, 32
    %v343 = vld [vmem:[%s342] sm:$0xff]
    %v344 = vld [vmem:[%s342 + $0x8] sm:$0xff]
    %v346 = vsel %vm133, %v343, 0
    %v349 = vsel %vm133, %v344, 0
    %351 = vmatpush.msra.mxu0 0.0
    %352 = vmatpush.msra.mxu0 0.0
    %353 = vmatpush.msra.mxu0 0.0
    %354 = vmatpush.msra.mxu0 0.0
    %355 = vmatpush.msra.mxu0 0.0
    %356 = vmatpush.msra.mxu0 0.0
    %357 = vmatpush.msra.mxu0 0.0
    %358 = vmatpush.msra.mxu0 0.0
    %359 = vmatpush.msra.mxu0 0.0
    %360 = vmatpush.msra.mxu0 0.0
    %361 = vmatpush.msra.mxu0 0.0
    %362 = vmatpush.msra.mxu0 0.0
    %363 = vmatpush.msra.mxu0 0.0
    %364 = vmatpush.msra.mxu0 0.0
    %365 = vmatpush.msra.mxu0 0.0
    %366 = vmatpush.msra.mxu0 %v341
    %367 = vmatmul.f32.gmra.mxu0 %v346
    %v368 = vpop.f32.mrf.mxu0
    %v369 = vadd.f32 0.0, %v368
    %370 = vmatmul.f32.gmra.mxu0 %v349
    %v371 = vpop.f32.mrf.mxu0
    %v372 = vadd.f32 0.0, %v371
    %373 = vdwg.mxu0
    %374 = vmatpush.msra.mxu0 0.0
    %375 = vmatpush.msra.mxu0 0.0
    %376 = vmatpush.msra.mxu0 0.0
    %377 = vmatpush.msra.mxu0 0.0
    %378 = vmatpush.msra.mxu0 0.0
    %379 = vmatpush.msra.mxu0 0.0
    %380 = vmatpush.msra.mxu0 0.0
    %381 = vmatpush.msra.mxu0 0.0
    %382 = vmatpush.msra.mxu0 0.0
    %383 = vmatpush.msra.mxu0 0.0
    %384 = vmatpush.msra.mxu0 0.0
    %385 = vmatpush.msra.mxu0 0.0
    %386 = vmatpush.msra.mxu0 0.0
    %387 = vmatpush.msra.mxu0 0.0
    %388 = vmatpush.msra.mxu0 0.0
    %389 = vmatpush.msra.mxu0 %v340
    %390 = vmatmul.f32.gmra.mxu0 %v346
    %v391 = vpop.f32.mrf.mxu0
    %v392 = vadd.f32 0.0, %v391
    %393 = vmatmul.f32.gmra.mxu0 %v349
    %v394 = vpop.f32.mrf.mxu0
    %v395 = vadd.f32 0.0, %v394
    %396 = vdwg.mxu0
    %397 = vmatpush.msra.mxu0 0.0
    %398 = vmatpush.msra.mxu0 0.0
    %399 = vmatpush.msra.mxu0 0.0
    %400 = vmatpush.msra.mxu0 0.0
    %401 = vmatpush.msra.mxu0 0.0
    %402 = vmatpush.msra.mxu0 0.0
    %403 = vmatpush.msra.mxu0 0.0
    %404 = vmatpush.msra.mxu0 0.0
    %405 = vmatpush.msra.mxu0 0.0
    %406 = vmatpush.msra.mxu0 0.0
    %407 = vmatpush.msra.mxu0 0.0
    %408 = vmatpush.msra.mxu0 0.0
    %409 = vmatpush.msra.mxu0 0.0
    %410 = vmatpush.msra.mxu0 0.0
    %411 = vmatpush.msra.mxu0 0.0
    %412 = vmatpush.msra.mxu0 %v339
    %413 = vmatmul.f32.gmra.mxu0 %v346
    %v414 = vpop.f32.mrf.mxu0
    %v415 = vadd.f32 0.0, %v414
    %416 = vmatmul.f32.gmra.mxu0 %v349
    %v417 = vpop.f32.mrf.mxu0
    %v418 = vadd.f32 0.0, %v417
    %419 = vdwg.mxu0
    %420 = vmatpush.msra.mxu0 0.0
    %421 = vmatpush.msra.mxu0 0.0
    %422 = vmatpush.msra.mxu0 0.0
    %423 = vmatpush.msra.mxu0 0.0
    %424 = vmatpush.msra.mxu0 0.0
    %425 = vmatpush.msra.mxu0 0.0
    %426 = vmatpush.msra.mxu0 0.0
    %427 = vmatpush.msra.mxu0 0.0
    %428 = vmatpush.msra.mxu0 0.0
    %429 = vmatpush.msra.mxu0 0.0
    %430 = vmatpush.msra.mxu0 0.0
    %431 = vmatpush.msra.mxu0 0.0
    %432 = vmatpush.msra.mxu0 0.0
    %433 = vmatpush.msra.mxu0 0.0
    %434 = vmatpush.msra.mxu0 0.0
    %435 = vmatpush.msra.mxu0 %v338
    %436 = vmatmul.f32.gmra.mxu0 %v346
    %v437 = vpop.f32.mrf.mxu0
    %v438 = vadd.f32 0.0, %v437
    %439 = vmatmul.f32.gmra.mxu0 %v349
    %v440 = vpop.f32.mrf.mxu0
    %v441 = vadd.f32 0.0, %v440
    %442 = vdwg.mxu0
    %v443 = vadd.f32 %v256, %v369
    %v444 = vadd.f32 %v279, %v392
    %v445 = vadd.f32 %v302, %v415
    %v446 = vadd.f32 %v325, %v438
    %v447 = vadd.f32 %v259, %v372
    %v448 = vadd.f32 %v282, %v395
    %v449 = vadd.f32 %v305, %v418
    %v450 = vadd.f32 %v328, %v441
    %v451 = vperm.slane %v33, 2
    %v452 = vperm.slane %v33, 6
    %v453 = vperm.slane %v34, 2
    %v454 = vperm.slane %v34, 6
    %v459 = vperm.slane %v451, 2
    %v460 = vperm.slane %v452, 2
    %v461 = vperm.slane %v453, 2
    %v462 = vperm.slane %v454, 2
    %v463 = vmul.f32 %v443, %v459
    %v464 = vmul.f32 %v444, %v460
    %v465 = vmul.f32 %v445, %v461
    %v466 = vmul.f32 %v446, %v462
    %v467 = vmul.f32 %v447, %v459
    %v468 = vmul.f32 %v448, %v460
    %v469 = vmul.f32 %v449, %v461
    %v470 = vmul.f32 %v450, %v462
    %s471 = scalar_lea.vmem %s1, 48
    %v472 = vld [vmem:[%s471] sm:$0xff]
    %v473 = vld [vmem:[%s471 + $0x8] sm:$0xff]
    %s474 = scalar_lea.vmem %s1, 64
    %v475 = vld [vmem:[%s474] sm:$0xff]
    %v476 = vld [vmem:[%s474 + $0x8] sm:$0xff]
    %v478 = vsel %vm133, %v475, 0
    %v481 = vsel %vm133, %v476, 0
    %483 = vmatpush.msra.mxu0 0.0
    %484 = vmatpush.msra.mxu0 0.0
    %485 = vmatpush.msra.mxu0 0.0
    %486 = vmatpush.msra.mxu0 0.0
    %487 = vmatpush.msra.mxu0 0.0
    %488 = vmatpush.msra.mxu0 0.0
    %489 = vmatpush.msra.mxu0 0.0
    %490 = vmatpush.msra.mxu0 0.0
    %491 = vmatpush.msra.mxu0 0.0
    %492 = vmatpush.msra.mxu0 0.0
    %493 = vmatpush.msra.mxu0 0.0
    %494 = vmatpush.msra.mxu0 0.0
    %495 = vmatpush.msra.mxu0 0.0
    %496 = vmatpush.msra.mxu0 0.0
    %497 = vmatpush.msra.mxu0 0.0
    %498 = vmatpush.msra.mxu0 %v35
    %499 = vmatmul.f32.gmra.mxu0 %v478
    %v500 = vpop.f32.mrf.mxu0
    %v501 = vadd.f32 0.0, %v500
    %502 = vmatmul.f32.gmra.mxu0 %v481
    %v503 = vpop.f32.mrf.mxu0
    %v504 = vadd.f32 0.0, %v503
    %505 = vdwg.mxu0
    %506 = vmatpush.msra.mxu0 0.0
    %507 = vmatpush.msra.mxu0 0.0
    %508 = vmatpush.msra.mxu0 0.0
    %509 = vmatpush.msra.mxu0 0.0
    %510 = vmatpush.msra.mxu0 0.0
    %511 = vmatpush.msra.mxu0 0.0
    %512 = vmatpush.msra.mxu0 0.0
    %513 = vmatpush.msra.mxu0 0.0
    %514 = vmatpush.msra.mxu0 0.0
    %515 = vmatpush.msra.mxu0 0.0
    %516 = vmatpush.msra.mxu0 0.0
    %517 = vmatpush.msra.mxu0 0.0
    %518 = vmatpush.msra.mxu0 0.0
    %519 = vmatpush.msra.mxu0 0.0
    %520 = vmatpush.msra.mxu0 0.0
    %521 = vmatpush.msra.mxu0 %v36
    %522 = vmatmul.f32.gmra.mxu0 %v478
    %v523 = vpop.f32.mrf.mxu0
    %v524 = vadd.f32 0.0, %v523
    %525 = vmatmul.f32.gmra.mxu0 %v481
    %v526 = vpop.f32.mrf.mxu0
    %v527 = vadd.f32 0.0, %v526
    %528 = vdwg.mxu0
    %529 = vmatpush.msra.mxu0 0.0
    %530 = vmatpush.msra.mxu0 0.0
    %531 = vmatpush.msra.mxu0 0.0
    %532 = vmatpush.msra.mxu0 0.0
    %533 = vmatpush.msra.mxu0 0.0
    %534 = vmatpush.msra.mxu0 0.0
    %535 = vmatpush.msra.mxu0 0.0
    %536 = vmatpush.msra.mxu0 0.0
    %537 = vmatpush.msra.mxu0 0.0
    %538 = vmatpush.msra.mxu0 0.0
    %539 = vmatpush.msra.mxu0 0.0
    %540 = vmatpush.msra.mxu0 0.0
    %541 = vmatpush.msra.mxu0 0.0
    %542 = vmatpush.msra.mxu0 0.0
    %543 = vmatpush.msra.mxu0 0.0
    %544 = vmatpush.msra.mxu0 %v37
    %545 = vmatmul.f32.gmra.mxu0 %v478
    %v546 = vpop.f32.mrf.mxu0
    %v547 = vadd.f32 0.0, %v546
    %548 = vmatmul.f32.gmra.mxu0 %v481
    %v549 = vpop.f32.mrf.mxu0
    %v550 = vadd.f32 0.0, %v549
    %551 = vdwg.mxu0
    %552 = vmatpush.msra.mxu0 0.0
    %553 = vmatpush.msra.mxu0 0.0
    %554 = vmatpush.msra.mxu0 0.0
    %555 = vmatpush.msra.mxu0 0.0
    %556 = vmatpush.msra.mxu0 0.0
    %557 = vmatpush.msra.mxu0 0.0
    %558 = vmatpush.msra.mxu0 0.0
    %559 = vmatpush.msra.mxu0 0.0
    %560 = vmatpush.msra.mxu0 0.0
    %561 = vmatpush.msra.mxu0 0.0
    %562 = vmatpush.msra.mxu0 0.0
    %563 = vmatpush.msra.mxu0 0.0
    %564 = vmatpush.msra.mxu0 0.0
    %565 = vmatpush.msra.mxu0 0.0
    %566 = vmatpush.msra.mxu0 0.0
    %567 = vmatpush.msra.mxu0 %v38
    %568 = vmatmul.f32.gmra.mxu0 %v478
    %v569 = vpop.f32.mrf.mxu0
    %v570 = vadd.f32 0.0, %v569
    %571 = vmatmul.f32.gmra.mxu0 %v481
    %v572 = vpop.f32.mrf.mxu0
    %v573 = vadd.f32 0.0, %v572
    %574 = vdwg.mxu0
    %v576 = vsel %vm133, %v472, 0
    %v579 = vsel %vm133, %v473, 0
    %581 = vmatpush.msra.mxu0 0.0
    %582 = vmatpush.msra.mxu0 0.0
    %583 = vmatpush.msra.mxu0 0.0
    %584 = vmatpush.msra.mxu0 0.0
    %585 = vmatpush.msra.mxu0 0.0
    %586 = vmatpush.msra.mxu0 0.0
    %587 = vmatpush.msra.mxu0 0.0
    %588 = vmatpush.msra.mxu0 0.0
    %589 = vmatpush.msra.mxu0 0.0
    %590 = vmatpush.msra.mxu0 0.0
    %591 = vmatpush.msra.mxu0 0.0
    %592 = vmatpush.msra.mxu0 0.0
    %593 = vmatpush.msra.mxu0 0.0
    %594 = vmatpush.msra.mxu0 0.0
    %595 = vmatpush.msra.mxu0 0.0
    %596 = vmatpush.msra.mxu0 %v70
    %597 = vmatmul.f32.gmra.mxu0 %v576
    %v598 = vpop.f32.mrf.mxu0
    %v599 = vadd.f32 %v501, %v598
    %600 = vmatmul.f32.gmra.mxu0 %v579
    %v601 = vpop.f32.mrf.mxu0
    %v602 = vadd.f32 %v504, %v601
    %603 = vdwg.mxu0
    %604 = vmatpush.msra.mxu0 0.0
    %605 = vmatpush.msra.mxu0 0.0
    %606 = vmatpush.msra.mxu0 0.0
    %607 = vmatpush.msra.mxu0 0.0
    %608 = vmatpush.msra.mxu0 0.0
    %609 = vmatpush.msra.mxu0 0.0
    %610 = vmatpush.msra.mxu0 0.0
    %611 = vmatpush.msra.mxu0 0.0
    %612 = vmatpush.msra.mxu0 0.0
    %613 = vmatpush.msra.mxu0 0.0
    %614 = vmatpush.msra.mxu0 0.0
    %615 = vmatpush.msra.mxu0 0.0
    %616 = vmatpush.msra.mxu0 0.0
    %617 = vmatpush.msra.mxu0 0.0
    %618 = vmatpush.msra.mxu0 0.0
    %619 = vmatpush.msra.mxu0 %v71
    %620 = vmatmul.f32.gmra.mxu0 %v576
    %v621 = vpop.f32.mrf.mxu0
    %v622 = vadd.f32 %v524, %v621
    %623 = vmatmul.f32.gmra.mxu0 %v579
    %v624 = vpop.f32.mrf.mxu0
    %v625 = vadd.f32 %v527, %v624
    %626 = vdwg.mxu0
    %627 = vmatpush.msra.mxu0 0.0
    %628 = vmatpush.msra.mxu0 0.0
    %629 = vmatpush.msra.mxu0 0.0
    %630 = vmatpush.msra.mxu0 0.0
    %631 = vmatpush.msra.mxu0 0.0
    %632 = vmatpush.msra.mxu0 0.0
    %633 = vmatpush.msra.mxu0 0.0
    %634 = vmatpush.msra.mxu0 0.0
    %635 = vmatpush.msra.mxu0 0.0
    %636 = vmatpush.msra.mxu0 0.0
    %637 = vmatpush.msra.mxu0 0.0
    %638 = vmatpush.msra.mxu0 0.0
    %639 = vmatpush.msra.mxu0 0.0
    %640 = vmatpush.msra.mxu0 0.0
    %641 = vmatpush.msra.mxu0 0.0
    %642 = vmatpush.msra.mxu0 %v72
    %643 = vmatmul.f32.gmra.mxu0 %v576
    %v644 = vpop.f32.mrf.mxu0
    %v645 = vadd.f32 %v547, %v644
    %646 = vmatmul.f32.gmra.mxu0 %v579
    %v647 = vpop.f32.mrf.mxu0
    %v648 = vadd.f32 %v550, %v647
    %649 = vdwg.mxu0
    %650 = vmatpush.msra.mxu0 0.0
    %651 = vmatpush.msra.mxu0 0.0
    %652 = vmatpush.msra.mxu0 0.0
    %653 = vmatpush.msra.mxu0 0.0
    %654 = vmatpush.msra.mxu0 0.0
    %655 = vmatpush.msra.mxu0 0.0
    %656 = vmatpush.msra.mxu0 0.0
    %657 = vmatpush.msra.mxu0 0.0
    %658 = vmatpush.msra.mxu0 0.0
    %659 = vmatpush.msra.mxu0 0.0
    %660 = vmatpush.msra.mxu0 0.0
    %661 = vmatpush.msra.mxu0 0.0
    %662 = vmatpush.msra.mxu0 0.0
    %663 = vmatpush.msra.mxu0 0.0
    %664 = vmatpush.msra.mxu0 0.0
    %665 = vmatpush.msra.mxu0 %v73
    %666 = vmatmul.f32.gmra.mxu0 %v576
    %v667 = vpop.f32.mrf.mxu0
    %v668 = vadd.f32 %v570, %v667
    %669 = vmatmul.f32.gmra.mxu0 %v579
    %v670 = vpop.f32.mrf.mxu0
    %v671 = vadd.f32 %v573, %v670
    %672 = vdwg.mxu0
    %s673 = scalar_lea.vmem %s1, 80
    %v674 = vld [vmem:[%s673] sm:$0xff]
    %v675 = vld [vmem:[%s673 + $0x8] sm:$0xff]
    %v677 = vsel %vm133, %v674, 0
    %v680 = vsel %vm133, %v675, 0
    %682 = vmatpush.msra.mxu0 0.0
    %683 = vmatpush.msra.mxu0 0.0
    %684 = vmatpush.msra.mxu0 0.0
    %685 = vmatpush.msra.mxu0 0.0
    %686 = vmatpush.msra.mxu0 0.0
    %687 = vmatpush.msra.mxu0 0.0
    %688 = vmatpush.msra.mxu0 0.0
    %689 = vmatpush.msra.mxu0 0.0
    %690 = vmatpush.msra.mxu0 0.0
    %691 = vmatpush.msra.mxu0 0.0
    %692 = vmatpush.msra.mxu0 0.0
    %693 = vmatpush.msra.mxu0 0.0
    %694 = vmatpush.msra.mxu0 0.0
    %695 = vmatpush.msra.mxu0 0.0
    %696 = vmatpush.msra.mxu0 0.0
    %697 = vmatpush.msra.mxu0 %v99
    %698 = vmatmul.f32.gmra.mxu0 %v677
    %v699 = vpop.f32.mrf.mxu0
    %v700 = vadd.f32 0.0, %v699
    %701 = vmatmul.f32.gmra.mxu0 %v680
    %v702 = vpop.f32.mrf.mxu0
    %v703 = vadd.f32 0.0, %v702
    %704 = vdwg.mxu0
    %705 = vmatpush.msra.mxu0 0.0
    %706 = vmatpush.msra.mxu0 0.0
    %707 = vmatpush.msra.mxu0 0.0
    %708 = vmatpush.msra.mxu0 0.0
    %709 = vmatpush.msra.mxu0 0.0
    %710 = vmatpush.msra.mxu0 0.0
    %711 = vmatpush.msra.mxu0 0.0
    %712 = vmatpush.msra.mxu0 0.0
    %713 = vmatpush.msra.mxu0 0.0
    %714 = vmatpush.msra.mxu0 0.0
    %715 = vmatpush.msra.mxu0 0.0
    %716 = vmatpush.msra.mxu0 0.0
    %717 = vmatpush.msra.mxu0 0.0
    %718 = vmatpush.msra.mxu0 0.0
    %719 = vmatpush.msra.mxu0 0.0
    %720 = vmatpush.msra.mxu0 %v100
    %721 = vmatmul.f32.gmra.mxu0 %v677
    %v722 = vpop.f32.mrf.mxu0
    %v723 = vadd.f32 0.0, %v722
    %724 = vmatmul.f32.gmra.mxu0 %v680
    %v725 = vpop.f32.mrf.mxu0
    %v726 = vadd.f32 0.0, %v725
    %727 = vdwg.mxu0
    %728 = vmatpush.msra.mxu0 0.0
    %729 = vmatpush.msra.mxu0 0.0
    %730 = vmatpush.msra.mxu0 0.0
    %731 = vmatpush.msra.mxu0 0.0
    %732 = vmatpush.msra.mxu0 0.0
    %733 = vmatpush.msra.mxu0 0.0
    %734 = vmatpush.msra.mxu0 0.0
    %735 = vmatpush.msra.mxu0 0.0
    %736 = vmatpush.msra.mxu0 0.0
    %737 = vmatpush.msra.mxu0 0.0
    %738 = vmatpush.msra.mxu0 0.0
    %739 = vmatpush.msra.mxu0 0.0
    %740 = vmatpush.msra.mxu0 0.0
    %741 = vmatpush.msra.mxu0 0.0
    %742 = vmatpush.msra.mxu0 0.0
    %743 = vmatpush.msra.mxu0 %v101
    %744 = vmatmul.f32.gmra.mxu0 %v677
    %v745 = vpop.f32.mrf.mxu0
    %v746 = vadd.f32 0.0, %v745
    %747 = vmatmul.f32.gmra.mxu0 %v680
    %v748 = vpop.f32.mrf.mxu0
    %v749 = vadd.f32 0.0, %v748
    %750 = vdwg.mxu0
    %751 = vmatpush.msra.mxu0 0.0
    %752 = vmatpush.msra.mxu0 0.0
    %753 = vmatpush.msra.mxu0 0.0
    %754 = vmatpush.msra.mxu0 0.0
    %755 = vmatpush.msra.mxu0 0.0
    %756 = vmatpush.msra.mxu0 0.0
    %757 = vmatpush.msra.mxu0 0.0
    %758 = vmatpush.msra.mxu0 0.0
    %759 = vmatpush.msra.mxu0 0.0
    %760 = vmatpush.msra.mxu0 0.0
    %761 = vmatpush.msra.mxu0 0.0
    %762 = vmatpush.msra.mxu0 0.0
    %763 = vmatpush.msra.mxu0 0.0
    %764 = vmatpush.msra.mxu0 0.0
    %765 = vmatpush.msra.mxu0 0.0
    %766 = vmatpush.msra.mxu0 %v102
    %767 = vmatmul.f32.gmra.mxu0 %v677
    %v768 = vpop.f32.mrf.mxu0
    %v769 = vadd.f32 0.0, %v768
    %770 = vmatmul.f32.gmra.mxu0 %v680
    %v771 = vpop.f32.mrf.mxu0
    %v772 = vadd.f32 0.0, %v771
    %773 = vdwg.mxu0
    %v774 = vadd.f32 %v599, %v700
    %v775 = vadd.f32 %v622, %v723
    %v776 = vadd.f32 %v645, %v746
    %v777 = vadd.f32 %v668, %v769
    %v778 = vadd.f32 %v602, %v703
    %v779 = vadd.f32 %v625, %v726
    %v780 = vadd.f32 %v648, %v749
    %v781 = vadd.f32 %v671, %v772
    %v782 = vadd.f32 %v463, %v774
    %v783 = vadd.f32 %v464, %v775
    %v784 = vadd.f32 %v465, %v776
    %v785 = vadd.f32 %v466, %v777
    %v786 = vadd.f32 %v467, %v778
    %v787 = vadd.f32 %v468, %v779
    %v788 = vadd.f32 %v469, %v780
    %v789 = vadd.f32 %v470, %v781
    %790 = vrot.lane.b32.xlu0 %v70, 112
    %v791 = vpop.permute.xlu0 %790
    %792 = vrot.lane.b32.xlu0 %v71, 112
    %v793 = vpop.permute.xlu0 %792
    %794 = vrot.lane.b32.xlu0 %v72, 112
    %v795 = vpop.permute.xlu0 %794
    %796 = vrot.lane.b32.xlu0 %v73, 112
    %v797 = vpop.permute.xlu0 %796
    %vm798 = vcmp.lt.s32.totalorder %v50, 112
    %v799 = vsel %vm798, %v795, %v797
    %v800 = vsel %vm798, %v793, %v795
    %v801 = vsel %vm798, %v791, %v793
    %v802 = vsel %vm798, %v797, %v791
    %s803 = scalar_lea.vmem %s1, 96
    %v804 = vld [vmem:[%s803] sm:$0xff]
    %v805 = vld [vmem:[%s803 + $0x8] sm:$0xff]
    %806 = vrot.lane.b32.xlu0 %v35, 112
    %v807 = vpop.permute.xlu0 %806
    %808 = vrot.lane.b32.xlu0 %v36, 112
    %v809 = vpop.permute.xlu0 %808
    %810 = vrot.lane.b32.xlu0 %v37, 112
    %v811 = vpop.permute.xlu0 %810
    %812 = vrot.lane.b32.xlu0 %v38, 112
    %v813 = vpop.permute.xlu0 %812
    %v814 = vsel %vm798, %v811, %v813
    %v815 = vsel %vm798, %v809, %v811
    %v816 = vsel %vm798, %v807, %v809
    %v817 = vsel %vm798, %v813, %v807
    %s818 = scalar_lea.vmem %s1, 112
    %v819 = vld [vmem:[%s818] sm:$0xff]
    %v820 = vld [vmem:[%s818 + $0x8] sm:$0xff]
    %v822 = vsel %vm133, %v819, 0
    %v825 = vsel %vm133, %v820, 0
    %827 = vmatpush.msra.mxu0 0.0
    %828 = vmatpush.msra.mxu0 0.0
    %829 = vmatpush.msra.mxu0 0.0
    %830 = vmatpush.msra.mxu0 0.0
    %831 = vmatpush.msra.mxu0 0.0
    %832 = vmatpush.msra.mxu0 0.0
    %833 = vmatpush.msra.mxu0 0.0
    %834 = vmatpush.msra.mxu0 0.0
    %835 = vmatpush.msra.mxu0 0.0
    %836 = vmatpush.msra.mxu0 0.0
    %837 = vmatpush.msra.mxu0 0.0
    %838 = vmatpush.msra.mxu0 0.0
    %839 = vmatpush.msra.mxu0 0.0
    %840 = vmatpush.msra.mxu0 0.0
    %841 = vmatpush.msra.mxu0 0.0
    %842 = vmatpush.msra.mxu0 %v816
    %843 = vmatmul.f32.gmra.mxu0 %v822
    %v844 = vpop.f32.mrf.mxu0
    %v845 = vadd.f32 0.0, %v844
    %846 = vmatmul.f32.gmra.mxu0 %v825
    %v847 = vpop.f32.mrf.mxu0
    %v848 = vadd.f32 0.0, %v847
    %849 = vdwg.mxu0
    %850 = vmatpush.msra.mxu0 0.0
    %851 = vmatpush.msra.mxu0 0.0
    %852 = vmatpush.msra.mxu0 0.0
    %853 = vmatpush.msra.mxu0 0.0
    %854 = vmatpush.msra.mxu0 0.0
    %855 = vmatpush.msra.mxu0 0.0
    %856 = vmatpush.msra.mxu0 0.0
    %857 = vmatpush.msra.mxu0 0.0
    %858 = vmatpush.msra.mxu0 0.0
    %859 = vmatpush.msra.mxu0 0.0
    %860 = vmatpush.msra.mxu0 0.0
    %861 = vmatpush.msra.mxu0 0.0
    %862 = vmatpush.msra.mxu0 0.0
    %863 = vmatpush.msra.mxu0 0.0
    %864 = vmatpush.msra.mxu0 0.0
    %865 = vmatpush.msra.mxu0 %v815
    %866 = vmatmul.f32.gmra.mxu0 %v822
    %v867 = vpop.f32.mrf.mxu0
    %v868 = vadd.f32 0.0, %v867
    %869 = vmatmul.f32.gmra.mxu0 %v825
    %v870 = vpop.f32.mrf.mxu0
    %v871 = vadd.f32 0.0, %v870
    %872 = vdwg.mxu0
    %873 = vmatpush.msra.mxu0 0.0
    %874 = vmatpush.msra.mxu0 0.0
    %875 = vmatpush.msra.mxu0 0.0
    %876 = vmatpush.msra.mxu0 0.0
    %877 = vmatpush.msra.mxu0 0.0
    %878 = vmatpush.msra.mxu0 0.0
    %879 = vmatpush.msra.mxu0 0.0
    %880 = vmatpush.msra.mxu0 0.0
    %881 = vmatpush.msra.mxu0 0.0
    %882 = vmatpush.msra.mxu0 0.0
    %883 = vmatpush.msra.mxu0 0.0
    %884 = vmatpush.msra.mxu0 0.0
    %885 = vmatpush.msra.mxu0 0.0
    %886 = vmatpush.msra.mxu0 0.0
    %887 = vmatpush.msra.mxu0 0.0
    %888 = vmatpush.msra.mxu0 %v814
    %889 = vmatmul.f32.gmra.mxu0 %v822
    %v890 = vpop.f32.mrf.mxu0
    %v891 = vadd.f32 0.0, %v890
    %892 = vmatmul.f32.gmra.mxu0 %v825
    %v893 = vpop.f32.mrf.mxu0
    %v894 = vadd.f32 0.0, %v893
    %895 = vdwg.mxu0
    %896 = vmatpush.msra.mxu0 0.0
    %897 = vmatpush.msra.mxu0 0.0
    %898 = vmatpush.msra.mxu0 0.0
    %899 = vmatpush.msra.mxu0 0.0
    %900 = vmatpush.msra.mxu0 0.0
    %901 = vmatpush.msra.mxu0 0.0
    %902 = vmatpush.msra.mxu0 0.0
    %903 = vmatpush.msra.mxu0 0.0
    %904 = vmatpush.msra.mxu0 0.0
    %905 = vmatpush.msra.mxu0 0.0
    %906 = vmatpush.msra.mxu0 0.0
    %907 = vmatpush.msra.mxu0 0.0
    %908 = vmatpush.msra.mxu0 0.0
    %909 = vmatpush.msra.mxu0 0.0
    %910 = vmatpush.msra.mxu0 0.0
    %911 = vmatpush.msra.mxu0 %v817
    %912 = vmatmul.f32.gmra.mxu0 %v822
    %v913 = vpop.f32.mrf.mxu0
    %v914 = vadd.f32 0.0, %v913
    %915 = vmatmul.f32.gmra.mxu0 %v825
    %v916 = vpop.f32.mrf.mxu0
    %v917 = vadd.f32 0.0, %v916
    %918 = vdwg.mxu0
    %v920 = vsel %vm133, %v804, 0
    %v923 = vsel %vm133, %v805, 0
    %925 = vmatpush.msra.mxu0 0.0
    %926 = vmatpush.msra.mxu0 0.0
    %927 = vmatpush.msra.mxu0 0.0
    %928 = vmatpush.msra.mxu0 0.0
    %929 = vmatpush.msra.mxu0 0.0
    %930 = vmatpush.msra.mxu0 0.0
    %931 = vmatpush.msra.mxu0 0.0
    %932 = vmatpush.msra.mxu0 0.0
    %933 = vmatpush.msra.mxu0 0.0
    %934 = vmatpush.msra.mxu0 0.0
    %935 = vmatpush.msra.mxu0 0.0
    %936 = vmatpush.msra.mxu0 0.0
    %937 = vmatpush.msra.mxu0 0.0
    %938 = vmatpush.msra.mxu0 0.0
    %939 = vmatpush.msra.mxu0 0.0
    %940 = vmatpush.msra.mxu0 %v801
    %941 = vmatmul.f32.gmra.mxu0 %v920
    %v942 = vpop.f32.mrf.mxu0
    %v943 = vadd.f32 %v845, %v942
    %944 = vmatmul.f32.gmra.mxu0 %v923
    %v945 = vpop.f32.mrf.mxu0
    %v946 = vadd.f32 %v848, %v945
    %947 = vdwg.mxu0
    %948 = vmatpush.msra.mxu0 0.0
    %949 = vmatpush.msra.mxu0 0.0
    %950 = vmatpush.msra.mxu0 0.0
    %951 = vmatpush.msra.mxu0 0.0
    %952 = vmatpush.msra.mxu0 0.0
    %953 = vmatpush.msra.mxu0 0.0
    %954 = vmatpush.msra.mxu0 0.0
    %955 = vmatpush.msra.mxu0 0.0
    %956 = vmatpush.msra.mxu0 0.0
    %957 = vmatpush.msra.mxu0 0.0
    %958 = vmatpush.msra.mxu0 0.0
    %959 = vmatpush.msra.mxu0 0.0
    %960 = vmatpush.msra.mxu0 0.0
    %961 = vmatpush.msra.mxu0 0.0
    %962 = vmatpush.msra.mxu0 0.0
    %963 = vmatpush.msra.mxu0 %v800
    %964 = vmatmul.f32.gmra.mxu0 %v920
    %v965 = vpop.f32.mrf.mxu0
    %v966 = vadd.f32 %v868, %v965
    %967 = vmatmul.f32.gmra.mxu0 %v923
    %v968 = vpop.f32.mrf.mxu0
    %v969 = vadd.f32 %v871, %v968
    %970 = vdwg.mxu0
    %971 = vmatpush.msra.mxu0 0.0
    %972 = vmatpush.msra.mxu0 0.0
    %973 = vmatpush.msra.mxu0 0.0
    %974 = vmatpush.msra.mxu0 0.0
    %975 = vmatpush.msra.mxu0 0.0
    %976 = vmatpush.msra.mxu0 0.0
    %977 = vmatpush.msra.mxu0 0.0
    %978 = vmatpush.msra.mxu0 0.0
    %979 = vmatpush.msra.mxu0 0.0
    %980 = vmatpush.msra.mxu0 0.0
    %981 = vmatpush.msra.mxu0 0.0
    %982 = vmatpush.msra.mxu0 0.0
    %983 = vmatpush.msra.mxu0 0.0
    %984 = vmatpush.msra.mxu0 0.0
    %985 = vmatpush.msra.mxu0 0.0
    %986 = vmatpush.msra.mxu0 %v799
    %987 = vmatmul.f32.gmra.mxu0 %v920
    %v988 = vpop.f32.mrf.mxu0
    %v989 = vadd.f32 %v891, %v988
    %990 = vmatmul.f32.gmra.mxu0 %v923
    %v991 = vpop.f32.mrf.mxu0
    %v992 = vadd.f32 %v894, %v991
    %993 = vdwg.mxu0
    %994 = vmatpush.msra.mxu0 0.0
    %995 = vmatpush.msra.mxu0 0.0
    %996 = vmatpush.msra.mxu0 0.0
    %997 = vmatpush.msra.mxu0 0.0
    %998 = vmatpush.msra.mxu0 0.0
    %999 = vmatpush.msra.mxu0 0.0
    %1000 = vmatpush.msra.mxu0 0.0
    %1001 = vmatpush.msra.mxu0 0.0
    %1002 = vmatpush.msra.mxu0 0.0
    %1003 = vmatpush.msra.mxu0 0.0
    %1004 = vmatpush.msra.mxu0 0.0
    %1005 = vmatpush.msra.mxu0 0.0
    %1006 = vmatpush.msra.mxu0 0.0
    %1007 = vmatpush.msra.mxu0 0.0
    %1008 = vmatpush.msra.mxu0 0.0
    %1009 = vmatpush.msra.mxu0 %v802
    %1010 = vmatmul.f32.gmra.mxu0 %v920
    %v1011 = vpop.f32.mrf.mxu0
    %v1012 = vadd.f32 %v914, %v1011
    %1013 = vmatmul.f32.gmra.mxu0 %v923
    %v1014 = vpop.f32.mrf.mxu0
    %v1015 = vadd.f32 %v917, %v1014
    %1016 = vdwg.mxu0
    %1017 = vrot.lane.b32.xlu0 %v99, 112
    %v1018 = vpop.permute.xlu0 %1017
    %1019 = vrot.lane.b32.xlu0 %v100, 112
    %v1020 = vpop.permute.xlu0 %1019
    %1021 = vrot.lane.b32.xlu0 %v101, 112
    %v1022 = vpop.permute.xlu0 %1021
    %1023 = vrot.lane.b32.xlu0 %v102, 112
    %v1024 = vpop.permute.xlu0 %1023
    %v1025 = vsel %vm798, %v1022, %v1024
    %v1026 = vsel %vm798, %v1020, %v1022
    %v1027 = vsel %vm798, %v1018, %v1020
    %v1028 = vsel %vm798, %v1024, %v1018
    %s1029 = scalar_lea.vmem %s1, 128
    %v1030 = vld [vmem:[%s1029] sm:$0xff]
    %v1031 = vld [vmem:[%s1029 + $0x8] sm:$0xff]
    %v1033 = vsel %vm133, %v1030, 0
    %v1036 = vsel %vm133, %v1031, 0
    %1038 = vmatpush.msra.mxu0 0.0
    %1039 = vmatpush.msra.mxu0 0.0
    %1040 = vmatpush.msra.mxu0 0.0
    %1041 = vmatpush.msra.mxu0 0.0
    %1042 = vmatpush.msra.mxu0 0.0
    %1043 = vmatpush.msra.mxu0 0.0
    %1044 = vmatpush.msra.mxu0 0.0
    %1045 = vmatpush.msra.mxu0 0.0
    %1046 = vmatpush.msra.mxu0 0.0
    %1047 = vmatpush.msra.mxu0 0.0
    %1048 = vmatpush.msra.mxu0 0.0
    %1049 = vmatpush.msra.mxu0 0.0
    %1050 = vmatpush.msra.mxu0 0.0
    %1051 = vmatpush.msra.mxu0 0.0
    %1052 = vmatpush.msra.mxu0 0.0
    %1053 = vmatpush.msra.mxu0 %v1027
    %1054 = vmatmul.f32.gmra.mxu0 %v1033
    %v1055 = vpop.f32.mrf.mxu0
    %v1056 = vadd.f32 0.0, %v1055
    %1057 = vmatmul.f32.gmra.mxu0 %v1036
    %v1058 = vpop.f32.mrf.mxu0
    %v1059 = vadd.f32 0.0, %v1058
    %1060 = vdwg.mxu0
    %1061 = vmatpush.msra.mxu0 0.0
    %1062 = vmatpush.msra.mxu0 0.0
    %1063 = vmatpush.msra.mxu0 0.0
    %1064 = vmatpush.msra.mxu0 0.0
    %1065 = vmatpush.msra.mxu0 0.0
    %1066 = vmatpush.msra.mxu0 0.0
    %1067 = vmatpush.msra.mxu0 0.0
    %1068 = vmatpush.msra.mxu0 0.0
    %1069 = vmatpush.msra.mxu0 0.0
    %1070 = vmatpush.msra.mxu0 0.0
    %1071 = vmatpush.msra.mxu0 0.0
    %1072 = vmatpush.msra.mxu0 0.0
    %1073 = vmatpush.msra.mxu0 0.0
    %1074 = vmatpush.msra.mxu0 0.0
    %1075 = vmatpush.msra.mxu0 0.0
    %1076 = vmatpush.msra.mxu0 %v1026
    %1077 = vmatmul.f32.gmra.mxu0 %v1033
    %v1078 = vpop.f32.mrf.mxu0
    %v1079 = vadd.f32 0.0, %v1078
    %1080 = vmatmul.f32.gmra.mxu0 %v1036
    %v1081 = vpop.f32.mrf.mxu0
    %v1082 = vadd.f32 0.0, %v1081
    %1083 = vdwg.mxu0
    %1084 = vmatpush.msra.mxu0 0.0
    %1085 = vmatpush.msra.mxu0 0.0
    %1086 = vmatpush.msra.mxu0 0.0
    %1087 = vmatpush.msra.mxu0 0.0
    %1088 = vmatpush.msra.mxu0 0.0
    %1089 = vmatpush.msra.mxu0 0.0
    %1090 = vmatpush.msra.mxu0 0.0
    %1091 = vmatpush.msra.mxu0 0.0
    %1092 = vmatpush.msra.mxu0 0.0
    %1093 = vmatpush.msra.mxu0 0.0
    %1094 = vmatpush.msra.mxu0 0.0
    %1095 = vmatpush.msra.mxu0 0.0
    %1096 = vmatpush.msra.mxu0 0.0
    %1097 = vmatpush.msra.mxu0 0.0
    %1098 = vmatpush.msra.mxu0 0.0
    %1099 = vmatpush.msra.mxu0 %v1025
    %1100 = vmatmul.f32.gmra.mxu0 %v1033
    %v1101 = vpop.f32.mrf.mxu0
    %v1102 = vadd.f32 0.0, %v1101
    %1103 = vmatmul.f32.gmra.mxu0 %v1036
    %v1104 = vpop.f32.mrf.mxu0
    %v1105 = vadd.f32 0.0, %v1104
    %1106 = vdwg.mxu0
    %1107 = vmatpush.msra.mxu0 0.0
    %1108 = vmatpush.msra.mxu0 0.0
    %1109 = vmatpush.msra.mxu0 0.0
    %1110 = vmatpush.msra.mxu0 0.0
    %1111 = vmatpush.msra.mxu0 0.0
    %1112 = vmatpush.msra.mxu0 0.0
    %1113 = vmatpush.msra.mxu0 0.0
    %1114 = vmatpush.msra.mxu0 0.0
    %1115 = vmatpush.msra.mxu0 0.0
    %1116 = vmatpush.msra.mxu0 0.0
    %1117 = vmatpush.msra.mxu0 0.0
    %1118 = vmatpush.msra.mxu0 0.0
    %1119 = vmatpush.msra.mxu0 0.0
    %1120 = vmatpush.msra.mxu0 0.0
    %1121 = vmatpush.msra.mxu0 0.0
    %1122 = vmatpush.msra.mxu0 %v1028
    %1123 = vmatmul.f32.gmra.mxu0 %v1033
    %v1124 = vpop.f32.mrf.mxu0
    %v1125 = vadd.f32 0.0, %v1124
    %1126 = vmatmul.f32.gmra.mxu0 %v1036
    %v1127 = vpop.f32.mrf.mxu0
    %v1128 = vadd.f32 0.0, %v1127
    %1129 = vdwg.mxu0
    %v1130 = vadd.f32 %v943, %v1056
    %v1131 = vadd.f32 %v966, %v1079
    %v1132 = vadd.f32 %v989, %v1102
    %v1133 = vadd.f32 %v1012, %v1125
    %v1134 = vadd.f32 %v946, %v1059
    %v1135 = vadd.f32 %v969, %v1082
    %v1136 = vadd.f32 %v992, %v1105
    %v1137 = vadd.f32 %v1015, %v1128
    %v1138 = vperm.slane %v33, 3
    %v1139 = vperm.slane %v33, 7
    %v1140 = vperm.slane %v34, 3
    %v1141 = vperm.slane %v34, 7
    %v1146 = vperm.slane %v1138, 3
    %v1147 = vperm.slane %v1139, 3
    %v1148 = vperm.slane %v1140, 3
    %v1149 = vperm.slane %v1141, 3
    %v1150 = vmul.f32 %v1130, %v1146
    %v1151 = vmul.f32 %v1131, %v1147
    %v1152 = vmul.f32 %v1132, %v1148
    %v1153 = vmul.f32 %v1133, %v1149
    %v1154 = vmul.f32 %v1134, %v1146
    %v1155 = vmul.f32 %v1135, %v1147
    %v1156 = vmul.f32 %v1136, %v1148
    %v1157 = vmul.f32 %v1137, %v1149
    %v1158 = vadd.f32 %v782, %v1150
    %v1159 = vadd.f32 %v783, %v1151
    %v1160 = vadd.f32 %v784, %v1152
    %v1161 = vadd.f32 %v785, %v1153
    %v1162 = vadd.f32 %v786, %v1154
    %v1163 = vadd.f32 %v787, %v1155
    %v1164 = vadd.f32 %v788, %v1156
    %v1165 = vadd.f32 %v789, %v1157
    %1167 = vset.pattern.permute.xlu0 0
    %1168 = vperm.xlu0 %1167, %v39
    %v1169 = vpop.permute.xlu0 %1168
    %1172 = vset.pattern.permute.xlu0 0
    %1173 = vperm.xlu0 %1172, %v40
    %v1174 = vpop.permute.xlu0 %1173
    %v1176 = vadd.f32 %v1158, %v1169
    %v1177 = vadd.f32 %v1159, %v1169
    %v1178 = vadd.f32 %v1160, %v1169
    %v1179 = vadd.f32 %v1161, %v1169
    %v1180 = vadd.f32 %v1162, %v1174
    %v1181 = vadd.f32 %v1163, %v1174
    %v1182 = vadd.f32 %v1164, %v1174
    %v1183 = vadd.f32 %v1165, %v1174
    %v1184 = vld [vmem:[%s7] sm:$0xff]
    %v1185 = vld [vmem:[%s7 + $0x8] sm:$0xff]
    %vm1186 = vcmp.ge.f32.partialorder %v1176, 0.0
    %vm1187 = vcmp.ge.f32.partialorder %v1177, 0.0
    %vm1188 = vcmp.ge.f32.partialorder %v1178, 0.0
    %vm1189 = vcmp.ge.f32.partialorder %v1179, 0.0
    %vm1190 = vcmp.ge.f32.partialorder %v1180, 0.0
    %vm1191 = vcmp.ge.f32.partialorder %v1181, 0.0
    %vm1192 = vcmp.ge.f32.partialorder %v1182, 0.0
    %vm1193 = vcmp.ge.f32.partialorder %v1183, 0.0
    %1195 = vset.pattern.permute.xlu0 0
    %1196 = vperm.xlu0 %1195, %v1184
    %v1197 = vpop.permute.xlu0 %1196
    %1200 = vset.pattern.permute.xlu0 0
    %1201 = vperm.xlu0 %1200, %v1185
    %v1202 = vpop.permute.xlu0 %1201
    %v1204 = vmul.f32 %v1197, %v1176
    %v1205 = vmul.f32 %v1197, %v1177
    %v1206 = vmul.f32 %v1197, %v1178
    %v1207 = vmul.f32 %v1197, %v1179
    %v1208 = vmul.f32 %v1202, %v1180
    %v1209 = vmul.f32 %v1202, %v1181
    %v1210 = vmul.f32 %v1202, %v1182
    %v1211 = vmul.f32 %v1202, %v1183
    %v1212 = vsel %vm1186, %v1176, %v1204
    %v1213 = vsel %vm1187, %v1177, %v1205
    %v1214 = vsel %vm1188, %v1178, %v1206
    %v1215 = vsel %vm1189, %v1179, %v1207
    %v1216 = vsel %vm1190, %v1180, %v1208
    %v1217 = vsel %vm1191, %v1181, %v1209
    %v1218 = vsel %vm1192, %v1182, %v1210
    %v1219 = vsel %vm1193, %v1183, %v1211
    %v1220 = vld [vmem:[%s5] sm:$0xff]
    %v1221 = vld [vmem:[%s5 + $0x8] sm:$0xff]
    %1222 = vrot.lane.b32.xlu0 %v1212, 1
    %v1223 = vpop.permute.xlu0 %1222
    %1224 = vrot.lane.b32.xlu0 %v1216, 1
    %v1225 = vpop.permute.xlu0 %1224
    %1226 = vrot.lane.b32.xlu0 %v1213, 1
    %v1227 = vpop.permute.xlu0 %1226
    %1228 = vrot.lane.b32.xlu0 %v1217, 1
    %v1229 = vpop.permute.xlu0 %1228
    %1230 = vrot.lane.b32.xlu0 %v1214, 1
    %v1231 = vpop.permute.xlu0 %1230
    %1232 = vrot.lane.b32.xlu0 %v1218, 1
    %v1233 = vpop.permute.xlu0 %1232
    %1234 = vrot.lane.b32.xlu0 %v1215, 1
    %v1235 = vpop.permute.xlu0 %1234
    %1236 = vrot.lane.b32.xlu0 %v1219, 1
    %v1237 = vpop.permute.xlu0 %1236
    %v1238 = vsel %vm51, %v1231, %v1235
    %v1239 = vsel %vm51, %v1233, %v1237
    %v1240 = vsel %vm51, %v1227, %v1231
    %v1241 = vsel %vm51, %v1229, %v1233
    %v1242 = vsel %vm51, %v1223, %v1227
    %v1243 = vsel %vm51, %v1225, %v1229
    %v1244 = vsel %vm51, %v1235, %v1223
    %v1245 = vsel %vm51, %v1237, %v1225
    %v1246 = vmul.f32 %v1244, %v66
    %v1247 = vmul.f32 %v1242, %v67
    %v1248 = vmul.f32 %v1240, %v68
    %v1249 = vmul.f32 %v1238, %v69
    %v1250 = vmul.f32 %v1245, %v66
    %v1251 = vmul.f32 %v1243, %v67
    %v1252 = vmul.f32 %v1241, %v68
    %v1253 = vmul.f32 %v1239, %v69
    %1254 = vrot.lane.b32.xlu0 %v1212, 127
    %v1255 = vpop.permute.xlu0 %1254
    %1256 = vrot.lane.b32.xlu0 %v1216, 127
    %v1257 = vpop.permute.xlu0 %1256
    %1258 = vrot.lane.b32.xlu0 %v1213, 127
    %v1259 = vpop.permute.xlu0 %1258
    %1260 = vrot.lane.b32.xlu0 %v1217, 127
    %v1261 = vpop.permute.xlu0 %1260
    %1262 = vrot.lane.b32.xlu0 %v1214, 127
    %v1263 = vpop.permute.xlu0 %1262
    %1264 = vrot.lane.b32.xlu0 %v1218, 127
    %v1265 = vpop.permute.xlu0 %1264
    %1266 = vrot.lane.b32.xlu0 %v1215, 127
    %v1267 = vpop.permute.xlu0 %1266
    %1268 = vrot.lane.b32.xlu0 %v1219, 127
    %v1269 = vpop.permute.xlu0 %1268
    %v1270 = vsel %vm82, %v1263, %v1267
    %v1271 = vsel %vm82, %v1265, %v1269
    %v1272 = vsel %vm82, %v1259, %v1263
    %v1273 = vsel %vm82, %v1261, %v1265
    %v1274 = vsel %vm82, %v1255, %v1259
    %v1275 = vsel %vm82, %v1257, %v1261
    %v1276 = vsel %vm82, %v1267, %v1255
    %v1277 = vsel %vm82, %v1269, %v1257
    %v1278 = vmul.f32 %v1274, %v95
    %v1279 = vmul.f32 %v1272, %v96
    %v1280 = vmul.f32 %v1270, %v97
    %v1281 = vmul.f32 %v1276, %v98
    %v1282 = vmul.f32 %v1275, %v95
    %v1283 = vmul.f32 %v1273, %v96
    %v1284 = vmul.f32 %v1271, %v97
    %v1285 = vmul.f32 %v1277, %v98
    %1286 = vrot.lane.b32.xlu0 %v1246, 16
    %v1287 = vpop.permute.xlu0 %1286
    %1288 = vrot.lane.b32.xlu0 %v1250, 16
    %v1289 = vpop.permute.xlu0 %1288
    %1290 = vrot.lane.b32.xlu0 %v1247, 16
    %v1291 = vpop.permute.xlu0 %1290
    %1292 = vrot.lane.b32.xlu0 %v1251, 16
    %v1293 = vpop.permute.xlu0 %1292
    %1294 = vrot.lane.b32.xlu0 %v1248, 16
    %v1295 = vpop.permute.xlu0 %1294
    %1296 = vrot.lane.b32.xlu0 %v1252, 16
    %v1297 = vpop.permute.xlu0 %1296
    %1298 = vrot.lane.b32.xlu0 %v1249, 16
    %v1299 = vpop.permute.xlu0 %1298
    %1300 = vrot.lane.b32.xlu0 %v1253, 16
    %v1301 = vpop.permute.xlu0 %1300
    %v1302 = vsel %vm111, %v1295, %v1299
    %v1303 = vsel %vm111, %v1297, %v1301
    %v1304 = vsel %vm111, %v1291, %v1295
    %v1305 = vsel %vm111, %v1293, %v1297
    %v1306 = vsel %vm111, %v1287, %v1291
    %v1307 = vsel %vm111, %v1289, %v1293
    %v1308 = vsel %vm111, %v1299, %v1287
    %v1309 = vsel %vm111, %v1301, %v1289
    %v1310 = vld [vmem:[%s2] sm:$0xff]
    %v1311 = vld [vmem:[%s2 + $0x8] sm:$0xff]
    %1312 = vrot.lane.b32.xlu0 %v1212, 16
    %v1313 = vpop.permute.xlu0 %1312
    %1314 = vrot.lane.b32.xlu0 %v1216, 16
    %v1315 = vpop.permute.xlu0 %1314
    %1316 = vrot.lane.b32.xlu0 %v1213, 16
    %v1317 = vpop.permute.xlu0 %1316
    %1318 = vrot.lane.b32.xlu0 %v1217, 16
    %v1319 = vpop.permute.xlu0 %1318
    %1320 = vrot.lane.b32.xlu0 %v1214, 16
    %v1321 = vpop.permute.xlu0 %1320
    %1322 = vrot.lane.b32.xlu0 %v1218, 16
    %v1323 = vpop.permute.xlu0 %1322
    %1324 = vrot.lane.b32.xlu0 %v1215, 16
    %v1325 = vpop.permute.xlu0 %1324
    %1326 = vrot.lane.b32.xlu0 %v1219, 16
    %v1327 = vpop.permute.xlu0 %1326
    %v1328 = vsel %vm111, %v1321, %v1325
    %v1329 = vsel %vm111, %v1323, %v1327
    %v1330 = vsel %vm111, %v1317, %v1321
    %v1331 = vsel %vm111, %v1319, %v1323
    %v1332 = vsel %vm111, %v1313, %v1317
    %v1333 = vsel %vm111, %v1315, %v1319
    %v1334 = vsel %vm111, %v1325, %v1313
    %v1335 = vsel %vm111, %v1327, %v1315
    %s1336 = scalar_lea.vmem %s2, 16
    %v1337 = vld [vmem:[%s1336] sm:$0xff]
    %v1338 = vld [vmem:[%s1336 + $0x8] sm:$0xff]
    %vm1339 = vcmask 130048
    %v1341 = vsel %vm1339, %v1337, 0
    %v1344 = vsel %vm1339, %v1338, 0
    %1346 = vmatpush.msra.mxu0 0.0
    %1347 = vmatpush.msra.mxu0 0.0
    %1348 = vmatpush.msra.mxu0 0.0
    %1349 = vmatpush.msra.mxu0 0.0
    %1350 = vmatpush.msra.mxu0 0.0
    %1351 = vmatpush.msra.mxu0 0.0
    %1352 = vmatpush.msra.mxu0 0.0
    %1353 = vmatpush.msra.mxu0 0.0
    %1354 = vmatpush.msra.mxu0 0.0
    %1355 = vmatpush.msra.mxu0 0.0
    %1356 = vmatpush.msra.mxu0 0.0
    %1357 = vmatpush.msra.mxu0 0.0
    %1358 = vmatpush.msra.mxu0 0.0
    %1359 = vmatpush.msra.mxu0 0.0
    %1360 = vmatpush.msra.mxu0 %v1335
    %1361 = vmatpush.msra.mxu0 %v1334
    %1362 = vmatmul.f32.gmra.mxu0 %v1341
    %v1363 = vpop.f32.mrf.mxu0
    %v1364 = vadd.f32 0.0, %v1363
    %1365 = vmatmul.f32.gmra.mxu0 %v1344
    %v1366 = vpop.f32.mrf.mxu0
    %v1367 = vadd.f32 0.0, %v1366
    %1368 = vdwg.mxu0
    %1369 = vmatpush.msra.mxu0 0.0
    %1370 = vmatpush.msra.mxu0 0.0
    %1371 = vmatpush.msra.mxu0 0.0
    %1372 = vmatpush.msra.mxu0 0.0
    %1373 = vmatpush.msra.mxu0 0.0
    %1374 = vmatpush.msra.mxu0 0.0
    %1375 = vmatpush.msra.mxu0 0.0
    %1376 = vmatpush.msra.mxu0 0.0
    %1377 = vmatpush.msra.mxu0 0.0
    %1378 = vmatpush.msra.mxu0 0.0
    %1379 = vmatpush.msra.mxu0 0.0
    %1380 = vmatpush.msra.mxu0 0.0
    %1381 = vmatpush.msra.mxu0 0.0
    %1382 = vmatpush.msra.mxu0 0.0
    %1383 = vmatpush.msra.mxu0 %v1333
    %1384 = vmatpush.msra.mxu0 %v1332
    %1385 = vmatmul.f32.gmra.mxu0 %v1341
    %v1386 = vpop.f32.mrf.mxu0
    %v1387 = vadd.f32 0.0, %v1386
    %1388 = vmatmul.f32.gmra.mxu0 %v1344
    %v1389 = vpop.f32.mrf.mxu0
    %v1390 = vadd.f32 0.0, %v1389
    %1391 = vdwg.mxu0
    %1392 = vmatpush.msra.mxu0 0.0
    %1393 = vmatpush.msra.mxu0 0.0
    %1394 = vmatpush.msra.mxu0 0.0
    %1395 = vmatpush.msra.mxu0 0.0
    %1396 = vmatpush.msra.mxu0 0.0
    %1397 = vmatpush.msra.mxu0 0.0
    %1398 = vmatpush.msra.mxu0 0.0
    %1399 = vmatpush.msra.mxu0 0.0
    %1400 = vmatpush.msra.mxu0 0.0
    %1401 = vmatpush.msra.mxu0 0.0
    %1402 = vmatpush.msra.mxu0 0.0
    %1403 = vmatpush.msra.mxu0 0.0
    %1404 = vmatpush.msra.mxu0 0.0
    %1405 = vmatpush.msra.mxu0 0.0
    %1406 = vmatpush.msra.mxu0 %v1331
    %1407 = vmatpush.msra.mxu0 %v1330
    %1408 = vmatmul.f32.gmra.mxu0 %v1341
    %v1409 = vpop.f32.mrf.mxu0
    %v1410 = vadd.f32 0.0, %v1409
    %1411 = vmatmul.f32.gmra.mxu0 %v1344
    %v1412 = vpop.f32.mrf.mxu0
    %v1413 = vadd.f32 0.0, %v1412
    %1414 = vdwg.mxu0
    %1415 = vmatpush.msra.mxu0 0.0
    %1416 = vmatpush.msra.mxu0 0.0
    %1417 = vmatpush.msra.mxu0 0.0
    %1418 = vmatpush.msra.mxu0 0.0
    %1419 = vmatpush.msra.mxu0 0.0
    %1420 = vmatpush.msra.mxu0 0.0
    %1421 = vmatpush.msra.mxu0 0.0
    %1422 = vmatpush.msra.mxu0 0.0
    %1423 = vmatpush.msra.mxu0 0.0
    %1424 = vmatpush.msra.mxu0 0.0
    %1425 = vmatpush.msra.mxu0 0.0
    %1426 = vmatpush.msra.mxu0 0.0
    %1427 = vmatpush.msra.mxu0 0.0
    %1428 = vmatpush.msra.mxu0 0.0
    %1429 = vmatpush.msra.mxu0 %v1329
    %1430 = vmatpush.msra.mxu0 %v1328
    %1431 = vmatmul.f32.gmra.mxu0 %v1341
    %v1432 = vpop.f32.mrf.mxu0
    %v1433 = vadd.f32 0.0, %v1432
    %1434 = vmatmul.f32.gmra.mxu0 %v1344
    %v1435 = vpop.f32.mrf.mxu0
    %v1436 = vadd.f32 0.0, %v1435
    %1437 = vdwg.mxu0
    %v1439 = vsel %vm1339, %v1310, 0
    %v1442 = vsel %vm1339, %v1311, 0
    %1444 = vmatpush.msra.mxu0 0.0
    %1445 = vmatpush.msra.mxu0 0.0
    %1446 = vmatpush.msra.mxu0 0.0
    %1447 = vmatpush.msra.mxu0 0.0
    %1448 = vmatpush.msra.mxu0 0.0
    %1449 = vmatpush.msra.mxu0 0.0
    %1450 = vmatpush.msra.mxu0 0.0
    %1451 = vmatpush.msra.mxu0 0.0
    %1452 = vmatpush.msra.mxu0 0.0
    %1453 = vmatpush.msra.mxu0 0.0
    %1454 = vmatpush.msra.mxu0 0.0
    %1455 = vmatpush.msra.mxu0 0.0
    %1456 = vmatpush.msra.mxu0 0.0
    %1457 = vmatpush.msra.mxu0 0.0
    %1458 = vmatpush.msra.mxu0 %v1309
    %1459 = vmatpush.msra.mxu0 %v1308
    %1460 = vmatmul.f32.gmra.mxu0 %v1439
    %v1461 = vpop.f32.mrf.mxu0
    %v1462 = vadd.f32 %v1364, %v1461
    %1463 = vmatmul.f32.gmra.mxu0 %v1442
    %v1464 = vpop.f32.mrf.mxu0
    %v1465 = vadd.f32 %v1367, %v1464
    %1466 = vdwg.mxu0
    %1467 = vmatpush.msra.mxu0 0.0
    %1468 = vmatpush.msra.mxu0 0.0
    %1469 = vmatpush.msra.mxu0 0.0
    %1470 = vmatpush.msra.mxu0 0.0
    %1471 = vmatpush.msra.mxu0 0.0
    %1472 = vmatpush.msra.mxu0 0.0
    %1473 = vmatpush.msra.mxu0 0.0
    %1474 = vmatpush.msra.mxu0 0.0
    %1475 = vmatpush.msra.mxu0 0.0
    %1476 = vmatpush.msra.mxu0 0.0
    %1477 = vmatpush.msra.mxu0 0.0
    %1478 = vmatpush.msra.mxu0 0.0
    %1479 = vmatpush.msra.mxu0 0.0
    %1480 = vmatpush.msra.mxu0 0.0
    %1481 = vmatpush.msra.mxu0 %v1307
    %1482 = vmatpush.msra.mxu0 %v1306
    %1483 = vmatmul.f32.gmra.mxu0 %v1439
    %v1484 = vpop.f32.mrf.mxu0
    %v1485 = vadd.f32 %v1387, %v1484
    %1486 = vmatmul.f32.gmra.mxu0 %v1442
    %v1487 = vpop.f32.mrf.mxu0
    %v1488 = vadd.f32 %v1390, %v1487
    %1489 = vdwg.mxu0
    %1490 = vmatpush.msra.mxu0 0.0
    %1491 = vmatpush.msra.mxu0 0.0
    %1492 = vmatpush.msra.mxu0 0.0
    %1493 = vmatpush.msra.mxu0 0.0
    %1494 = vmatpush.msra.mxu0 0.0
    %1495 = vmatpush.msra.mxu0 0.0
    %1496 = vmatpush.msra.mxu0 0.0
    %1497 = vmatpush.msra.mxu0 0.0
    %1498 = vmatpush.msra.mxu0 0.0
    %1499 = vmatpush.msra.mxu0 0.0
    %1500 = vmatpush.msra.mxu0 0.0
    %1501 = vmatpush.msra.mxu0 0.0
    %1502 = vmatpush.msra.mxu0 0.0
    %1503 = vmatpush.msra.mxu0 0.0
    %1504 = vmatpush.msra.mxu0 %v1305
    %1505 = vmatpush.msra.mxu0 %v1304
    %1506 = vmatmul.f32.gmra.mxu0 %v1439
    %v1507 = vpop.f32.mrf.mxu0
    %v1508 = vadd.f32 %v1410, %v1507
    %1509 = vmatmul.f32.gmra.mxu0 %v1442
    %v1510 = vpop.f32.mrf.mxu0
    %v1511 = vadd.f32 %v1413, %v1510
    %1512 = vdwg.mxu0
    %1513 = vmatpush.msra.mxu0 0.0
    %1514 = vmatpush.msra.mxu0 0.0
    %1515 = vmatpush.msra.mxu0 0.0
    %1516 = vmatpush.msra.mxu0 0.0
    %1517 = vmatpush.msra.mxu0 0.0
    %1518 = vmatpush.msra.mxu0 0.0
    %1519 = vmatpush.msra.mxu0 0.0
    %1520 = vmatpush.msra.mxu0 0.0
    %1521 = vmatpush.msra.mxu0 0.0
    %1522 = vmatpush.msra.mxu0 0.0
    %1523 = vmatpush.msra.mxu0 0.0
    %1524 = vmatpush.msra.mxu0 0.0
    %1525 = vmatpush.msra.mxu0 0.0
    %1526 = vmatpush.msra.mxu0 0.0
    %1527 = vmatpush.msra.mxu0 %v1303
    %1528 = vmatpush.msra.mxu0 %v1302
    %1529 = vmatmul.f32.gmra.mxu0 %v1439
    %v1530 = vpop.f32.mrf.mxu0
    %v1531 = vadd.f32 %v1433, %v1530
    %1532 = vmatmul.f32.gmra.mxu0 %v1442
    %v1533 = vpop.f32.mrf.mxu0
    %v1534 = vadd.f32 %v1436, %v1533
    %1535 = vdwg.mxu0
    %1536 = vrot.lane.b32.xlu0 %v1278, 16
    %v1537 = vpop.permute.xlu0 %1536
    %1538 = vrot.lane.b32.xlu0 %v1282, 16
    %v1539 = vpop.permute.xlu0 %1538
    %1540 = vrot.lane.b32.xlu0 %v1279, 16
    %v1541 = vpop.permute.xlu0 %1540
    %1542 = vrot.lane.b32.xlu0 %v1283, 16
    %v1543 = vpop.permute.xlu0 %1542
    %1544 = vrot.lane.b32.xlu0 %v1280, 16
    %v1545 = vpop.permute.xlu0 %1544
    %1546 = vrot.lane.b32.xlu0 %v1284, 16
    %v1547 = vpop.permute.xlu0 %1546
    %1548 = vrot.lane.b32.xlu0 %v1281, 16
    %v1549 = vpop.permute.xlu0 %1548
    %1550 = vrot.lane.b32.xlu0 %v1285, 16
    %v1551 = vpop.permute.xlu0 %1550
    %v1552 = vsel %vm111, %v1545, %v1549
    %v1553 = vsel %vm111, %v1547, %v1551
    %v1554 = vsel %vm111, %v1541, %v1545
    %v1555 = vsel %vm111, %v1543, %v1547
    %v1556 = vsel %vm111, %v1537, %v1541
    %v1557 = vsel %vm111, %v1539, %v1543
    %v1558 = vsel %vm111, %v1549, %v1537
    %v1559 = vsel %vm111, %v1551, %v1539
    %s1560 = scalar_lea.vmem %s2, 32
    %v1561 = vld [vmem:[%s1560] sm:$0xff]
    %v1562 = vld [vmem:[%s1560 + $0x8] sm:$0xff]
    %v1564 = vsel %vm1339, %v1561, 0
    %v1567 = vsel %vm1339, %v1562, 0
    %1569 = vmatpush.msra.mxu0 0.0
    %1570 = vmatpush.msra.mxu0 0.0
    %1571 = vmatpush.msra.mxu0 0.0
    %1572 = vmatpush.msra.mxu0 0.0
    %1573 = vmatpush.msra.mxu0 0.0
    %1574 = vmatpush.msra.mxu0 0.0
    %1575 = vmatpush.msra.mxu0 0.0
    %1576 = vmatpush.msra.mxu0 0.0
    %1577 = vmatpush.msra.mxu0 0.0
    %1578 = vmatpush.msra.mxu0 0.0
    %1579 = vmatpush.msra.mxu0 0.0
    %1580 = vmatpush.msra.mxu0 0.0
    %1581 = vmatpush.msra.mxu0 0.0
    %1582 = vmatpush.msra.mxu0 0.0
    %1583 = vmatpush.msra.mxu0 %v1559
    %1584 = vmatpush.msra.mxu0 %v1558
    %1585 = vmatmul.f32.gmra.mxu0 %v1564
    %v1586 = vpop.f32.mrf.mxu0
    %v1587 = vadd.f32 0.0, %v1586
    %1588 = vmatmul.f32.gmra.mxu0 %v1567
    %v1589 = vpop.f32.mrf.mxu0
    %v1590 = vadd.f32 0.0, %v1589
    %1591 = vdwg.mxu0
    %1592 = vmatpush.msra.mxu0 0.0
    %1593 = vmatpush.msra.mxu0 0.0
    %1594 = vmatpush.msra.mxu0 0.0
    %1595 = vmatpush.msra.mxu0 0.0
    %1596 = vmatpush.msra.mxu0 0.0
    %1597 = vmatpush.msra.mxu0 0.0
    %1598 = vmatpush.msra.mxu0 0.0
    %1599 = vmatpush.msra.mxu0 0.0
    %1600 = vmatpush.msra.mxu0 0.0
    %1601 = vmatpush.msra.mxu0 0.0
    %1602 = vmatpush.msra.mxu0 0.0
    %1603 = vmatpush.msra.mxu0 0.0
    %1604 = vmatpush.msra.mxu0 0.0
    %1605 = vmatpush.msra.mxu0 0.0
    %1606 = vmatpush.msra.mxu0 %v1557
    %1607 = vmatpush.msra.mxu0 %v1556
    %1608 = vmatmul.f32.gmra.mxu0 %v1564
    %v1609 = vpop.f32.mrf.mxu0
    %v1610 = vadd.f32 0.0, %v1609
    %1611 = vmatmul.f32.gmra.mxu0 %v1567
    %v1612 = vpop.f32.mrf.mxu0
    %v1613 = vadd.f32 0.0, %v1612
    %1614 = vdwg.mxu0
    %1615 = vmatpush.msra.mxu0 0.0
    %1616 = vmatpush.msra.mxu0 0.0
    %1617 = vmatpush.msra.mxu0 0.0
    %1618 = vmatpush.msra.mxu0 0.0
    %1619 = vmatpush.msra.mxu0 0.0
    %1620 = vmatpush.msra.mxu0 0.0
    %1621 = vmatpush.msra.mxu0 0.0
    %1622 = vmatpush.msra.mxu0 0.0
    %1623 = vmatpush.msra.mxu0 0.0
    %1624 = vmatpush.msra.mxu0 0.0
    %1625 = vmatpush.msra.mxu0 0.0
    %1626 = vmatpush.msra.mxu0 0.0
    %1627 = vmatpush.msra.mxu0 0.0
    %1628 = vmatpush.msra.mxu0 0.0
    %1629 = vmatpush.msra.mxu0 %v1555
    %1630 = vmatpush.msra.mxu0 %v1554
    %1631 = vmatmul.f32.gmra.mxu0 %v1564
    %v1632 = vpop.f32.mrf.mxu0
    %v1633 = vadd.f32 0.0, %v1632
    %1634 = vmatmul.f32.gmra.mxu0 %v1567
    %v1635 = vpop.f32.mrf.mxu0
    %v1636 = vadd.f32 0.0, %v1635
    %1637 = vdwg.mxu0
    %1638 = vmatpush.msra.mxu0 0.0
    %1639 = vmatpush.msra.mxu0 0.0
    %1640 = vmatpush.msra.mxu0 0.0
    %1641 = vmatpush.msra.mxu0 0.0
    %1642 = vmatpush.msra.mxu0 0.0
    %1643 = vmatpush.msra.mxu0 0.0
    %1644 = vmatpush.msra.mxu0 0.0
    %1645 = vmatpush.msra.mxu0 0.0
    %1646 = vmatpush.msra.mxu0 0.0
    %1647 = vmatpush.msra.mxu0 0.0
    %1648 = vmatpush.msra.mxu0 0.0
    %1649 = vmatpush.msra.mxu0 0.0
    %1650 = vmatpush.msra.mxu0 0.0
    %1651 = vmatpush.msra.mxu0 0.0
    %1652 = vmatpush.msra.mxu0 %v1553
    %1653 = vmatpush.msra.mxu0 %v1552
    %1654 = vmatmul.f32.gmra.mxu0 %v1564
    %v1655 = vpop.f32.mrf.mxu0
    %v1656 = vadd.f32 0.0, %v1655
    %1657 = vmatmul.f32.gmra.mxu0 %v1567
    %v1658 = vpop.f32.mrf.mxu0
    %v1659 = vadd.f32 0.0, %v1658
    %1660 = vdwg.mxu0
    %v1661 = vadd.f32 %v1462, %v1587
    %v1662 = vadd.f32 %v1485, %v1610
    %v1663 = vadd.f32 %v1508, %v1633
    %v1664 = vadd.f32 %v1531, %v1656
    %v1665 = vadd.f32 %v1465, %v1590
    %v1666 = vadd.f32 %v1488, %v1613
    %v1667 = vadd.f32 %v1511, %v1636
    %v1668 = vadd.f32 %v1534, %v1659
    %v1669 = vmul.f32 %v1661, %v459
    %v1670 = vmul.f32 %v1662, %v460
    %v1671 = vmul.f32 %v1663, %v461
    %v1672 = vmul.f32 %v1664, %v462
    %v1673 = vmul.f32 %v1665, %v459
    %v1674 = vmul.f32 %v1666, %v460
    %v1675 = vmul.f32 %v1667, %v461
    %v1676 = vmul.f32 %v1668, %v462
    %s1677 = scalar_lea.vmem %s2, 48
    %v1678 = vld [vmem:[%s1677] sm:$0xff]
    %v1679 = vld [vmem:[%s1677 + $0x8] sm:$0xff]
    %s1680 = scalar_lea.vmem %s2, 64
    %v1681 = vld [vmem:[%s1680] sm:$0xff]
    %v1682 = vld [vmem:[%s1680 + $0x8] sm:$0xff]
    %v1684 = vsel %vm1339, %v1681, 0
    %v1687 = vsel %vm1339, %v1682, 0
    %1689 = vmatpush.msra.mxu0 0.0
    %1690 = vmatpush.msra.mxu0 0.0
    %1691 = vmatpush.msra.mxu0 0.0
    %1692 = vmatpush.msra.mxu0 0.0
    %1693 = vmatpush.msra.mxu0 0.0
    %1694 = vmatpush.msra.mxu0 0.0
    %1695 = vmatpush.msra.mxu0 0.0
    %1696 = vmatpush.msra.mxu0 0.0
    %1697 = vmatpush.msra.mxu0 0.0
    %1698 = vmatpush.msra.mxu0 0.0
    %1699 = vmatpush.msra.mxu0 0.0
    %1700 = vmatpush.msra.mxu0 0.0
    %1701 = vmatpush.msra.mxu0 0.0
    %1702 = vmatpush.msra.mxu0 0.0
    %1703 = vmatpush.msra.mxu0 %v1216
    %1704 = vmatpush.msra.mxu0 %v1212
    %1705 = vmatmul.f32.gmra.mxu0 %v1684
    %v1706 = vpop.f32.mrf.mxu0
    %v1707 = vadd.f32 0.0, %v1706
    %1708 = vmatmul.f32.gmra.mxu0 %v1687
    %v1709 = vpop.f32.mrf.mxu0
    %v1710 = vadd.f32 0.0, %v1709
    %1711 = vdwg.mxu0
    %1712 = vmatpush.msra.mxu0 0.0
    %1713 = vmatpush.msra.mxu0 0.0
    %1714 = vmatpush.msra.mxu0 0.0
    %1715 = vmatpush.msra.mxu0 0.0
    %1716 = vmatpush.msra.mxu0 0.0
    %1717 = vmatpush.msra.mxu0 0.0
    %1718 = vmatpush.msra.mxu0 0.0
    %1719 = vmatpush.msra.mxu0 0.0
    %1720 = vmatpush.msra.mxu0 0.0
    %1721 = vmatpush.msra.mxu0 0.0
    %1722 = vmatpush.msra.mxu0 0.0
    %1723 = vmatpush.msra.mxu0 0.0
    %1724 = vmatpush.msra.mxu0 0.0
    %1725 = vmatpush.msra.mxu0 0.0
    %1726 = vmatpush.msra.mxu0 %v1217
    %1727 = vmatpush.msra.mxu0 %v1213
    %1728 = vmatmul.f32.gmra.mxu0 %v1684
    %v1729 = vpop.f32.mrf.mxu0
    %v1730 = vadd.f32 0.0, %v1729
    %1731 = vmatmul.f32.gmra.mxu0 %v1687
    %v1732 = vpop.f32.mrf.mxu0
    %v1733 = vadd.f32 0.0, %v1732
    %1734 = vdwg.mxu0
    %1735 = vmatpush.msra.mxu0 0.0
    %1736 = vmatpush.msra.mxu0 0.0
    %1737 = vmatpush.msra.mxu0 0.0
    %1738 = vmatpush.msra.mxu0 0.0
    %1739 = vmatpush.msra.mxu0 0.0
    %1740 = vmatpush.msra.mxu0 0.0
    %1741 = vmatpush.msra.mxu0 0.0
    %1742 = vmatpush.msra.mxu0 0.0
    %1743 = vmatpush.msra.mxu0 0.0
    %1744 = vmatpush.msra.mxu0 0.0
    %1745 = vmatpush.msra.mxu0 0.0
    %1746 = vmatpush.msra.mxu0 0.0
    %1747 = vmatpush.msra.mxu0 0.0
    %1748 = vmatpush.msra.mxu0 0.0
    %1749 = vmatpush.msra.mxu0 %v1218
    %1750 = vmatpush.msra.mxu0 %v1214
    %1751 = vmatmul.f32.gmra.mxu0 %v1684
    %v1752 = vpop.f32.mrf.mxu0
    %v1753 = vadd.f32 0.0, %v1752
    %1754 = vmatmul.f32.gmra.mxu0 %v1687
    %v1755 = vpop.f32.mrf.mxu0
    %v1756 = vadd.f32 0.0, %v1755
    %1757 = vdwg.mxu0
    %1758 = vmatpush.msra.mxu0 0.0
    %1759 = vmatpush.msra.mxu0 0.0
    %1760 = vmatpush.msra.mxu0 0.0
    %1761 = vmatpush.msra.mxu0 0.0
    %1762 = vmatpush.msra.mxu0 0.0
    %1763 = vmatpush.msra.mxu0 0.0
    %1764 = vmatpush.msra.mxu0 0.0
    %1765 = vmatpush.msra.mxu0 0.0
    %1766 = vmatpush.msra.mxu0 0.0
    %1767 = vmatpush.msra.mxu0 0.0
    %1768 = vmatpush.msra.mxu0 0.0
    %1769 = vmatpush.msra.mxu0 0.0
    %1770 = vmatpush.msra.mxu0 0.0
    %1771 = vmatpush.msra.mxu0 0.0
    %1772 = vmatpush.msra.mxu0 %v1219
    %1773 = vmatpush.msra.mxu0 %v1215
    %1774 = vmatmul.f32.gmra.mxu0 %v1684
    %v1775 = vpop.f32.mrf.mxu0
    %v1776 = vadd.f32 0.0, %v1775
    %1777 = vmatmul.f32.gmra.mxu0 %v1687
    %v1778 = vpop.f32.mrf.mxu0
    %v1779 = vadd.f32 0.0, %v1778
    %1780 = vdwg.mxu0
    %v1782 = vsel %vm1339, %v1678, 0
    %v1785 = vsel %vm1339, %v1679, 0
    %1787 = vmatpush.msra.mxu0 0.0
    %1788 = vmatpush.msra.mxu0 0.0
    %1789 = vmatpush.msra.mxu0 0.0
    %1790 = vmatpush.msra.mxu0 0.0
    %1791 = vmatpush.msra.mxu0 0.0
    %1792 = vmatpush.msra.mxu0 0.0
    %1793 = vmatpush.msra.mxu0 0.0
    %1794 = vmatpush.msra.mxu0 0.0
    %1795 = vmatpush.msra.mxu0 0.0
    %1796 = vmatpush.msra.mxu0 0.0
    %1797 = vmatpush.msra.mxu0 0.0
    %1798 = vmatpush.msra.mxu0 0.0
    %1799 = vmatpush.msra.mxu0 0.0
    %1800 = vmatpush.msra.mxu0 0.0
    %1801 = vmatpush.msra.mxu0 %v1250
    %1802 = vmatpush.msra.mxu0 %v1246
    %1803 = vmatmul.f32.gmra.mxu0 %v1782
    %v1804 = vpop.f32.mrf.mxu0
    %v1805 = vadd.f32 %v1707, %v1804
    %1806 = vmatmul.f32.gmra.mxu0 %v1785
    %v1807 = vpop.f32.mrf.mxu0
    %v1808 = vadd.f32 %v1710, %v1807
    %1809 = vdwg.mxu0
    %1810 = vmatpush.msra.mxu0 0.0
    %1811 = vmatpush.msra.mxu0 0.0
    %1812 = vmatpush.msra.mxu0 0.0
    %1813 = vmatpush.msra.mxu0 0.0
    %1814 = vmatpush.msra.mxu0 0.0
    %1815 = vmatpush.msra.mxu0 0.0
    %1816 = vmatpush.msra.mxu0 0.0
    %1817 = vmatpush.msra.mxu0 0.0
    %1818 = vmatpush.msra.mxu0 0.0
    %1819 = vmatpush.msra.mxu0 0.0
    %1820 = vmatpush.msra.mxu0 0.0
    %1821 = vmatpush.msra.mxu0 0.0
    %1822 = vmatpush.msra.mxu0 0.0
    %1823 = vmatpush.msra.mxu0 0.0
    %1824 = vmatpush.msra.mxu0 %v1251
    %1825 = vmatpush.msra.mxu0 %v1247
    %1826 = vmatmul.f32.gmra.mxu0 %v1782
    %v1827 = vpop.f32.mrf.mxu0
    %v1828 = vadd.f32 %v1730, %v1827
    %1829 = vmatmul.f32.gmra.mxu0 %v1785
    %v1830 = vpop.f32.mrf.mxu0
    %v1831 = vadd.f32 %v1733, %v1830
    %1832 = vdwg.mxu0
    %1833 = vmatpush.msra.mxu0 0.0
    %1834 = vmatpush.msra.mxu0 0.0
    %1835 = vmatpush.msra.mxu0 0.0
    %1836 = vmatpush.msra.mxu0 0.0
    %1837 = vmatpush.msra.mxu0 0.0
    %1838 = vmatpush.msra.mxu0 0.0
    %1839 = vmatpush.msra.mxu0 0.0
    %1840 = vmatpush.msra.mxu0 0.0
    %1841 = vmatpush.msra.mxu0 0.0
    %1842 = vmatpush.msra.mxu0 0.0
    %1843 = vmatpush.msra.mxu0 0.0
    %1844 = vmatpush.msra.mxu0 0.0
    %1845 = vmatpush.msra.mxu0 0.0
    %1846 = vmatpush.msra.mxu0 0.0
    %1847 = vmatpush.msra.mxu0 %v1252
    %1848 = vmatpush.msra.mxu0 %v1248
    %1849 = vmatmul.f32.gmra.mxu0 %v1782
    %v1850 = vpop.f32.mrf.mxu0
    %v1851 = vadd.f32 %v1753, %v1850
    %1852 = vmatmul.f32.gmra.mxu0 %v1785
    %v1853 = vpop.f32.mrf.mxu0
    %v1854 = vadd.f32 %v1756, %v1853
    %1855 = vdwg.mxu0
    %1856 = vmatpush.msra.mxu0 0.0
    %1857 = vmatpush.msra.mxu0 0.0
    %1858 = vmatpush.msra.mxu0 0.0
    %1859 = vmatpush.msra.mxu0 0.0
    %1860 = vmatpush.msra.mxu0 0.0
    %1861 = vmatpush.msra.mxu0 0.0
    %1862 = vmatpush.msra.mxu0 0.0
    %1863 = vmatpush.msra.mxu0 0.0
    %1864 = vmatpush.msra.mxu0 0.0
    %1865 = vmatpush.msra.mxu0 0.0
    %1866 = vmatpush.msra.mxu0 0.0
    %1867 = vmatpush.msra.mxu0 0.0
    %1868 = vmatpush.msra.mxu0 0.0
    %1869 = vmatpush.msra.mxu0 0.0
    %1870 = vmatpush.msra.mxu0 %v1253
    %1871 = vmatpush.msra.mxu0 %v1249
    %1872 = vmatmul.f32.gmra.mxu0 %v1782
    %v1873 = vpop.f32.mrf.mxu0
    %v1874 = vadd.f32 %v1776, %v1873
    %1875 = vmatmul.f32.gmra.mxu0 %v1785
    %v1876 = vpop.f32.mrf.mxu0
    %v1877 = vadd.f32 %v1779, %v1876
    %1878 = vdwg.mxu0
    %s1879 = scalar_lea.vmem %s2, 80
    %v1880 = vld [vmem:[%s1879] sm:$0xff]
    %v1881 = vld [vmem:[%s1879 + $0x8] sm:$0xff]
    %v1883 = vsel %vm1339, %v1880, 0
    %v1886 = vsel %vm1339, %v1881, 0
    %1888 = vmatpush.msra.mxu0 0.0
    %1889 = vmatpush.msra.mxu0 0.0
    %1890 = vmatpush.msra.mxu0 0.0
    %1891 = vmatpush.msra.mxu0 0.0
    %1892 = vmatpush.msra.mxu0 0.0
    %1893 = vmatpush.msra.mxu0 0.0
    %1894 = vmatpush.msra.mxu0 0.0
    %1895 = vmatpush.msra.mxu0 0.0
    %1896 = vmatpush.msra.mxu0 0.0
    %1897 = vmatpush.msra.mxu0 0.0
    %1898 = vmatpush.msra.mxu0 0.0
    %1899 = vmatpush.msra.mxu0 0.0
    %1900 = vmatpush.msra.mxu0 0.0
    %1901 = vmatpush.msra.mxu0 0.0
    %1902 = vmatpush.msra.mxu0 %v1282
    %1903 = vmatpush.msra.mxu0 %v1278
    %1904 = vmatmul.f32.gmra.mxu0 %v1883
    %v1905 = vpop.f32.mrf.mxu0
    %v1906 = vadd.f32 0.0, %v1905
    %1907 = vmatmul.f32.gmra.mxu0 %v1886
    %v1908 = vpop.f32.mrf.mxu0
    %v1909 = vadd.f32 0.0, %v1908
    %1910 = vdwg.mxu0
    %1911 = vmatpush.msra.mxu0 0.0
    %1912 = vmatpush.msra.mxu0 0.0
    %1913 = vmatpush.msra.mxu0 0.0
    %1914 = vmatpush.msra.mxu0 0.0
    %1915 = vmatpush.msra.mxu0 0.0
    %1916 = vmatpush.msra.mxu0 0.0
    %1917 = vmatpush.msra.mxu0 0.0
    %1918 = vmatpush.msra.mxu0 0.0
    %1919 = vmatpush.msra.mxu0 0.0
    %1920 = vmatpush.msra.mxu0 0.0
    %1921 = vmatpush.msra.mxu0 0.0
    %1922 = vmatpush.msra.mxu0 0.0
    %1923 = vmatpush.msra.mxu0 0.0
    %1924 = vmatpush.msra.mxu0 0.0
    %1925 = vmatpush.msra.mxu0 %v1283
    %1926 = vmatpush.msra.mxu0 %v1279
    %1927 = vmatmul.f32.gmra.mxu0 %v1883
    %v1928 = vpop.f32.mrf.mxu0
    %v1929 = vadd.f32 0.0, %v1928
    %1930 = vmatmul.f32.gmra.mxu0 %v1886
    %v1931 = vpop.f32.mrf.mxu0
    %v1932 = vadd.f32 0.0, %v1931
    %1933 = vdwg.mxu0
    %1934 = vmatpush.msra.mxu0 0.0
    %1935 = vmatpush.msra.mxu0 0.0
    %1936 = vmatpush.msra.mxu0 0.0
    %1937 = vmatpush.msra.mxu0 0.0
    %1938 = vmatpush.msra.mxu0 0.0
    %1939 = vmatpush.msra.mxu0 0.0
    %1940 = vmatpush.msra.mxu0 0.0
    %1941 = vmatpush.msra.mxu0 0.0
    %1942 = vmatpush.msra.mxu0 0.0
    %1943 = vmatpush.msra.mxu0 0.0
    %1944 = vmatpush.msra.mxu0 0.0
    %1945 = vmatpush.msra.mxu0 0.0
    %1946 = vmatpush.msra.mxu0 0.0
    %1947 = vmatpush.msra.mxu0 0.0
    %1948 = vmatpush.msra.mxu0 %v1284
    %1949 = vmatpush.msra.mxu0 %v1280
    %1950 = vmatmul.f32.gmra.mxu0 %v1883
    %v1951 = vpop.f32.mrf.mxu0
    %v1952 = vadd.f32 0.0, %v1951
    %1953 = vmatmul.f32.gmra.mxu0 %v1886
    %v1954 = vpop.f32.mrf.mxu0
    %v1955 = vadd.f32 0.0, %v1954
    %1956 = vdwg.mxu0
    %1957 = vmatpush.msra.mxu0 0.0
    %1958 = vmatpush.msra.mxu0 0.0
    %1959 = vmatpush.msra.mxu0 0.0
    %1960 = vmatpush.msra.mxu0 0.0
    %1961 = vmatpush.msra.mxu0 0.0
    %1962 = vmatpush.msra.mxu0 0.0
    %1963 = vmatpush.msra.mxu0 0.0
    %1964 = vmatpush.msra.mxu0 0.0
    %1965 = vmatpush.msra.mxu0 0.0
    %1966 = vmatpush.msra.mxu0 0.0
    %1967 = vmatpush.msra.mxu0 0.0
    %1968 = vmatpush.msra.mxu0 0.0
    %1969 = vmatpush.msra.mxu0 0.0
    %1970 = vmatpush.msra.mxu0 0.0
    %1971 = vmatpush.msra.mxu0 %v1285
    %1972 = vmatpush.msra.mxu0 %v1281
    %1973 = vmatmul.f32.gmra.mxu0 %v1883
    %v1974 = vpop.f32.mrf.mxu0
    %v1975 = vadd.f32 0.0, %v1974
    %1976 = vmatmul.f32.gmra.mxu0 %v1886
    %v1977 = vpop.f32.mrf.mxu0
    %v1978 = vadd.f32 0.0, %v1977
    %1979 = vdwg.mxu0
    %v1980 = vadd.f32 %v1805, %v1906
    %v1981 = vadd.f32 %v1828, %v1929
    %v1982 = vadd.f32 %v1851, %v1952
    %v1983 = vadd.f32 %v1874, %v1975
    %v1984 = vadd.f32 %v1808, %v1909
    %v1985 = vadd.f32 %v1831, %v1932
    %v1986 = vadd.f32 %v1854, %v1955
    %v1987 = vadd.f32 %v1877, %v1978
    %v1988 = vadd.f32 %v1669, %v1980
    %v1989 = vadd.f32 %v1670, %v1981
    %v1990 = vadd.f32 %v1671, %v1982
    %v1991 = vadd.f32 %v1672, %v1983
    %v1992 = vadd.f32 %v1673, %v1984
    %v1993 = vadd.f32 %v1674, %v1985
    %v1994 = vadd.f32 %v1675, %v1986
    %v1995 = vadd.f32 %v1676, %v1987
    %1996 = vrot.lane.b32.xlu0 %v1246, 112
    %v1997 = vpop.permute.xlu0 %1996
    %1998 = vrot.lane.b32.xlu0 %v1250, 112
    %v1999 = vpop.permute.xlu0 %1998
    %2000 = vrot.lane.b32.xlu0 %v1247, 112
    %v2001 = vpop.permute.xlu0 %2000
    %2002 = vrot.lane.b32.xlu0 %v1251, 112
    %v2003 = vpop.permute.xlu0 %2002
    %2004 = vrot.lane.b32.xlu0 %v1248, 112
    %v2005 = vpop.permute.xlu0 %2004
    %2006 = vrot.lane.b32.xlu0 %v1252, 112
    %v2007 = vpop.permute.xlu0 %2006
    %2008 = vrot.lane.b32.xlu0 %v1249, 112
    %v2009 = vpop.permute.xlu0 %2008
    %2010 = vrot.lane.b32.xlu0 %v1253, 112
    %v2011 = vpop.permute.xlu0 %2010
    %v2012 = vsel %vm798, %v2005, %v2009
    %v2013 = vsel %vm798, %v2007, %v2011
    %v2014 = vsel %vm798, %v2001, %v2005
    %v2015 = vsel %vm798, %v2003, %v2007
    %v2016 = vsel %vm798, %v1997, %v2001
    %v2017 = vsel %vm798, %v1999, %v2003
    %v2018 = vsel %vm798, %v2009, %v1997
    %v2019 = vsel %vm798, %v2011, %v1999
    %s2020 = scalar_lea.vmem %s2, 96
    %v2021 = vld [vmem:[%s2020] sm:$0xff]
    %v2022 = vld [vmem:[%s2020 + $0x8] sm:$0xff]
    %2023 = vrot.lane.b32.xlu0 %v1212, 112
    %v2024 = vpop.permute.xlu0 %2023
    %2025 = vrot.lane.b32.xlu0 %v1216, 112
    %v2026 = vpop.permute.xlu0 %2025
    %2027 = vrot.lane.b32.xlu0 %v1213, 112
    %v2028 = vpop.permute.xlu0 %2027
    %2029 = vrot.lane.b32.xlu0 %v1217, 112
    %v2030 = vpop.permute.xlu0 %2029
    %2031 = vrot.lane.b32.xlu0 %v1214, 112
    %v2032 = vpop.permute.xlu0 %2031
    %2033 = vrot.lane.b32.xlu0 %v1218, 112
    %v2034 = vpop.permute.xlu0 %2033
    %2035 = vrot.lane.b32.xlu0 %v1215, 112
    %v2036 = vpop.permute.xlu0 %2035
    %2037 = vrot.lane.b32.xlu0 %v1219, 112
    %v2038 = vpop.permute.xlu0 %2037
    %v2039 = vsel %vm798, %v2032, %v2036
    %v2040 = vsel %vm798, %v2034, %v2038
    %v2041 = vsel %vm798, %v2028, %v2032
    %v2042 = vsel %vm798, %v2030, %v2034
    %v2043 = vsel %vm798, %v2024, %v2028
    %v2044 = vsel %vm798, %v2026, %v2030
    %v2045 = vsel %vm798, %v2036, %v2024
    %v2046 = vsel %vm798, %v2038, %v2026
    %s2047 = scalar_lea.vmem %s2, 112
    %v2048 = vld [vmem:[%s2047] sm:$0xff]
    %v2049 = vld [vmem:[%s2047 + $0x8] sm:$0xff]
    %v2051 = vsel %vm1339, %v2048, 0
    %v2054 = vsel %vm1339, %v2049, 0
    %2056 = vmatpush.msra.mxu0 0.0
    %2057 = vmatpush.msra.mxu0 0.0
    %2058 = vmatpush.msra.mxu0 0.0
    %2059 = vmatpush.msra.mxu0 0.0
    %2060 = vmatpush.msra.mxu0 0.0
    %2061 = vmatpush.msra.mxu0 0.0
    %2062 = vmatpush.msra.mxu0 0.0
    %2063 = vmatpush.msra.mxu0 0.0
    %2064 = vmatpush.msra.mxu0 0.0
    %2065 = vmatpush.msra.mxu0 0.0
    %2066 = vmatpush.msra.mxu0 0.0
    %2067 = vmatpush.msra.mxu0 0.0
    %2068 = vmatpush.msra.mxu0 0.0
    %2069 = vmatpush.msra.mxu0 0.0
    %2070 = vmatpush.msra.mxu0 %v2044
    %2071 = vmatpush.msra.mxu0 %v2043
    %2072 = vmatmul.f32.gmra.mxu0 %v2051
    %v2073 = vpop.f32.mrf.mxu0
    %v2074 = vadd.f32 0.0, %v2073
    %2075 = vmatmul.f32.gmra.mxu0 %v2054
    %v2076 = vpop.f32.mrf.mxu0
    %v2077 = vadd.f32 0.0, %v2076
    %2078 = vdwg.mxu0
    %2079 = vmatpush.msra.mxu0 0.0
    %2080 = vmatpush.msra.mxu0 0.0
    %2081 = vmatpush.msra.mxu0 0.0
    %2082 = vmatpush.msra.mxu0 0.0
    %2083 = vmatpush.msra.mxu0 0.0
    %2084 = vmatpush.msra.mxu0 0.0
    %2085 = vmatpush.msra.mxu0 0.0
    %2086 = vmatpush.msra.mxu0 0.0
    %2087 = vmatpush.msra.mxu0 0.0
    %2088 = vmatpush.msra.mxu0 0.0
    %2089 = vmatpush.msra.mxu0 0.0
    %2090 = vmatpush.msra.mxu0 0.0
    %2091 = vmatpush.msra.mxu0 0.0
    %2092 = vmatpush.msra.mxu0 0.0
    %2093 = vmatpush.msra.mxu0 %v2042
    %2094 = vmatpush.msra.mxu0 %v2041
    %2095 = vmatmul.f32.gmra.mxu0 %v2051
    %v2096 = vpop.f32.mrf.mxu0
    %v2097 = vadd.f32 0.0, %v2096
    %2098 = vmatmul.f32.gmra.mxu0 %v2054
    %v2099 = vpop.f32.mrf.mxu0
    %v2100 = vadd.f32 0.0, %v2099
    %2101 = vdwg.mxu0
    %2102 = vmatpush.msra.mxu0 0.0
    %2103 = vmatpush.msra.mxu0 0.0
    %2104 = vmatpush.msra.mxu0 0.0
    %2105 = vmatpush.msra.mxu0 0.0
    %2106 = vmatpush.msra.mxu0 0.0
    %2107 = vmatpush.msra.mxu0 0.0
    %2108 = vmatpush.msra.mxu0 0.0
    %2109 = vmatpush.msra.mxu0 0.0
    %2110 = vmatpush.msra.mxu0 0.0
    %2111 = vmatpush.msra.mxu0 0.0
    %2112 = vmatpush.msra.mxu0 0.0
    %2113 = vmatpush.msra.mxu0 0.0
    %2114 = vmatpush.msra.mxu0 0.0
    %2115 = vmatpush.msra.mxu0 0.0
    %2116 = vmatpush.msra.mxu0 %v2040
    %2117 = vmatpush.msra.mxu0 %v2039
    %2118 = vmatmul.f32.gmra.mxu0 %v2051
    %v2119 = vpop.f32.mrf.mxu0
    %v2120 = vadd.f32 0.0, %v2119
    %2121 = vmatmul.f32.gmra.mxu0 %v2054
    %v2122 = vpop.f32.mrf.mxu0
    %v2123 = vadd.f32 0.0, %v2122
    %2124 = vdwg.mxu0
    %2125 = vmatpush.msra.mxu0 0.0
    %2126 = vmatpush.msra.mxu0 0.0
    %2127 = vmatpush.msra.mxu0 0.0
    %2128 = vmatpush.msra.mxu0 0.0
    %2129 = vmatpush.msra.mxu0 0.0
    %2130 = vmatpush.msra.mxu0 0.0
    %2131 = vmatpush.msra.mxu0 0.0
    %2132 = vmatpush.msra.mxu0 0.0
    %2133 = vmatpush.msra.mxu0 0.0
    %2134 = vmatpush.msra.mxu0 0.0
    %2135 = vmatpush.msra.mxu0 0.0
    %2136 = vmatpush.msra.mxu0 0.0
    %2137 = vmatpush.msra.mxu0 0.0
    %2138 = vmatpush.msra.mxu0 0.0
    %2139 = vmatpush.msra.mxu0 %v2046
    %2140 = vmatpush.msra.mxu0 %v2045
    %2141 = vmatmul.f32.gmra.mxu0 %v2051
    %v2142 = vpop.f32.mrf.mxu0
    %v2143 = vadd.f32 0.0, %v2142
    %2144 = vmatmul.f32.gmra.mxu0 %v2054
    %v2145 = vpop.f32.mrf.mxu0
    %v2146 = vadd.f32 0.0, %v2145
    %2147 = vdwg.mxu0
    %v2149 = vsel %vm1339, %v2021, 0
    %v2152 = vsel %vm1339, %v2022, 0
    %2154 = vmatpush.msra.mxu0 0.0
    %2155 = vmatpush.msra.mxu0 0.0
    %2156 = vmatpush.msra.mxu0 0.0
    %2157 = vmatpush.msra.mxu0 0.0
    %2158 = vmatpush.msra.mxu0 0.0
    %2159 = vmatpush.msra.mxu0 0.0
    %2160 = vmatpush.msra.mxu0 0.0
    %2161 = vmatpush.msra.mxu0 0.0
    %2162 = vmatpush.msra.mxu0 0.0
    %2163 = vmatpush.msra.mxu0 0.0
    %2164 = vmatpush.msra.mxu0 0.0
    %2165 = vmatpush.msra.mxu0 0.0
    %2166 = vmatpush.msra.mxu0 0.0
    %2167 = vmatpush.msra.mxu0 0.0
    %2168 = vmatpush.msra.mxu0 %v2017
    %2169 = vmatpush.msra.mxu0 %v2016
    %2170 = vmatmul.f32.gmra.mxu0 %v2149
    %v2171 = vpop.f32.mrf.mxu0
    %v2172 = vadd.f32 %v2074, %v2171
    %2173 = vmatmul.f32.gmra.mxu0 %v2152
    %v2174 = vpop.f32.mrf.mxu0
    %v2175 = vadd.f32 %v2077, %v2174
    %2176 = vdwg.mxu0
    %2177 = vmatpush.msra.mxu0 0.0
    %2178 = vmatpush.msra.mxu0 0.0
    %2179 = vmatpush.msra.mxu0 0.0
    %2180 = vmatpush.msra.mxu0 0.0
    %2181 = vmatpush.msra.mxu0 0.0
    %2182 = vmatpush.msra.mxu0 0.0
    %2183 = vmatpush.msra.mxu0 0.0
    %2184 = vmatpush.msra.mxu0 0.0
    %2185 = vmatpush.msra.mxu0 0.0
    %2186 = vmatpush.msra.mxu0 0.0
    %2187 = vmatpush.msra.mxu0 0.0
    %2188 = vmatpush.msra.mxu0 0.0
    %2189 = vmatpush.msra.mxu0 0.0
    %2190 = vmatpush.msra.mxu0 0.0
    %2191 = vmatpush.msra.mxu0 %v2015
    %2192 = vmatpush.msra.mxu0 %v2014
    %2193 = vmatmul.f32.gmra.mxu0 %v2149
    %v2194 = vpop.f32.mrf.mxu0
    %v2195 = vadd.f32 %v2097, %v2194
    %2196 = vmatmul.f32.gmra.mxu0 %v2152
    %v2197 = vpop.f32.mrf.mxu0
    %v2198 = vadd.f32 %v2100, %v2197
    %2199 = vdwg.mxu0
    %2200 = vmatpush.msra.mxu0 0.0
    %2201 = vmatpush.msra.mxu0 0.0
    %2202 = vmatpush.msra.mxu0 0.0
    %2203 = vmatpush.msra.mxu0 0.0
    %2204 = vmatpush.msra.mxu0 0.0
    %2205 = vmatpush.msra.mxu0 0.0
    %2206 = vmatpush.msra.mxu0 0.0
    %2207 = vmatpush.msra.mxu0 0.0
    %2208 = vmatpush.msra.mxu0 0.0
    %2209 = vmatpush.msra.mxu0 0.0
    %2210 = vmatpush.msra.mxu0 0.0
    %2211 = vmatpush.msra.mxu0 0.0
    %2212 = vmatpush.msra.mxu0 0.0
    %2213 = vmatpush.msra.mxu0 0.0
    %2214 = vmatpush.msra.mxu0 %v2013
    %2215 = vmatpush.msra.mxu0 %v2012
    %2216 = vmatmul.f32.gmra.mxu0 %v2149
    %v2217 = vpop.f32.mrf.mxu0
    %v2218 = vadd.f32 %v2120, %v2217
    %2219 = vmatmul.f32.gmra.mxu0 %v2152
    %v2220 = vpop.f32.mrf.mxu0
    %v2221 = vadd.f32 %v2123, %v2220
    %2222 = vdwg.mxu0
    %2223 = vmatpush.msra.mxu0 0.0
    %2224 = vmatpush.msra.mxu0 0.0
    %2225 = vmatpush.msra.mxu0 0.0
    %2226 = vmatpush.msra.mxu0 0.0
    %2227 = vmatpush.msra.mxu0 0.0
    %2228 = vmatpush.msra.mxu0 0.0
    %2229 = vmatpush.msra.mxu0 0.0
    %2230 = vmatpush.msra.mxu0 0.0
    %2231 = vmatpush.msra.mxu0 0.0
    %2232 = vmatpush.msra.mxu0 0.0
    %2233 = vmatpush.msra.mxu0 0.0
    %2234 = vmatpush.msra.mxu0 0.0
    %2235 = vmatpush.msra.mxu0 0.0
    %2236 = vmatpush.msra.mxu0 0.0
    %2237 = vmatpush.msra.mxu0 %v2019
    %2238 = vmatpush.msra.mxu0 %v2018
    %2239 = vmatmul.f32.gmra.mxu0 %v2149
    %v2240 = vpop.f32.mrf.mxu0
    %v2241 = vadd.f32 %v2143, %v2240
    %2242 = vmatmul.f32.gmra.mxu0 %v2152
    %v2243 = vpop.f32.mrf.mxu0
    %v2244 = vadd.f32 %v2146, %v2243
    %2245 = vdwg.mxu0
    %2246 = vrot.lane.b32.xlu0 %v1278, 112
    %v2247 = vpop.permute.xlu0 %2246
    %2248 = vrot.lane.b32.xlu0 %v1282, 112
    %v2249 = vpop.permute.xlu0 %2248
    %2250 = vrot.lane.b32.xlu0 %v1279, 112
    %v2251 = vpop.permute.xlu0 %2250
    %2252 = vrot.lane.b32.xlu0 %v1283, 112
    %v2253 = vpop.permute.xlu0 %2252
    %2254 = vrot.lane.b32.xlu0 %v1280, 112
    %v2255 = vpop.permute.xlu0 %2254
    %2256 = vrot.lane.b32.xlu0 %v1284, 112
    %v2257 = vpop.permute.xlu0 %2256
    %2258 = vrot.lane.b32.xlu0 %v1281, 112
    %v2259 = vpop.permute.xlu0 %2258
    %2260 = vrot.lane.b32.xlu0 %v1285, 112
    %v2261 = vpop.permute.xlu0 %2260
    %v2262 = vsel %vm798, %v2255, %v2259
    %v2263 = vsel %vm798, %v2257, %v2261
    %v2264 = vsel %vm798, %v2251, %v2255
    %v2265 = vsel %vm798, %v2253, %v2257
    %v2266 = vsel %vm798, %v2247, %v2251
    %v2267 = vsel %vm798, %v2249, %v2253
    %v2268 = vsel %vm798, %v2259, %v2247
    %v2269 = vsel %vm798, %v2261, %v2249
    %s2270 = scalar_lea.vmem %s2, 128
    %v2271 = vld [vmem:[%s2270] sm:$0xff]
    %v2272 = vld [vmem:[%s2270 + $0x8] sm:$0xff]
    %v2274 = vsel %vm1339, %v2271, 0
    %v2277 = vsel %vm1339, %v2272, 0
    %2279 = vmatpush.msra.mxu0 0.0
    %2280 = vmatpush.msra.mxu0 0.0
    %2281 = vmatpush.msra.mxu0 0.0
    %2282 = vmatpush.msra.mxu0 0.0
    %2283 = vmatpush.msra.mxu0 0.0
    %2284 = vmatpush.msra.mxu0 0.0
    %2285 = vmatpush.msra.mxu0 0.0
    %2286 = vmatpush.msra.mxu0 0.0
    %2287 = vmatpush.msra.mxu0 0.0
    %2288 = vmatpush.msra.mxu0 0.0
    %2289 = vmatpush.msra.mxu0 0.0
    %2290 = vmatpush.msra.mxu0 0.0
    %2291 = vmatpush.msra.mxu0 0.0
    %2292 = vmatpush.msra.mxu0 0.0
    %2293 = vmatpush.msra.mxu0 %v2267
    %2294 = vmatpush.msra.mxu0 %v2266
    %2295 = vmatmul.f32.gmra.mxu0 %v2274
    %v2296 = vpop.f32.mrf.mxu0
    %v2297 = vadd.f32 0.0, %v2296
    %2298 = vmatmul.f32.gmra.mxu0 %v2277
    %v2299 = vpop.f32.mrf.mxu0
    %v2300 = vadd.f32 0.0, %v2299
    %2301 = vdwg.mxu0
    %2302 = vmatpush.msra.mxu0 0.0
    %2303 = vmatpush.msra.mxu0 0.0
    %2304 = vmatpush.msra.mxu0 0.0
    %2305 = vmatpush.msra.mxu0 0.0
    %2306 = vmatpush.msra.mxu0 0.0
    %2307 = vmatpush.msra.mxu0 0.0
    %2308 = vmatpush.msra.mxu0 0.0
    %2309 = vmatpush.msra.mxu0 0.0
    %2310 = vmatpush.msra.mxu0 0.0
    %2311 = vmatpush.msra.mxu0 0.0
    %2312 = vmatpush.msra.mxu0 0.0
    %2313 = vmatpush.msra.mxu0 0.0
    %2314 = vmatpush.msra.mxu0 0.0
    %2315 = vmatpush.msra.mxu0 0.0
    %2316 = vmatpush.msra.mxu0 %v2265
    %2317 = vmatpush.msra.mxu0 %v2264
    %2318 = vmatmul.f32.gmra.mxu0 %v2274
    %v2319 = vpop.f32.mrf.mxu0
    %v2320 = vadd.f32 0.0, %v2319
    %2321 = vmatmul.f32.gmra.mxu0 %v2277
    %v2322 = vpop.f32.mrf.mxu0
    %v2323 = vadd.f32 0.0, %v2322
    %2324 = vdwg.mxu0
    %2325 = vmatpush.msra.mxu0 0.0
    %2326 = vmatpush.msra.mxu0 0.0
    %2327 = vmatpush.msra.mxu0 0.0
    %2328 = vmatpush.msra.mxu0 0.0
    %2329 = vmatpush.msra.mxu0 0.0
    %2330 = vmatpush.msra.mxu0 0.0
    %2331 = vmatpush.msra.mxu0 0.0
    %2332 = vmatpush.msra.mxu0 0.0
    %2333 = vmatpush.msra.mxu0 0.0
    %2334 = vmatpush.msra.mxu0 0.0
    %2335 = vmatpush.msra.mxu0 0.0
    %2336 = vmatpush.msra.mxu0 0.0
    %2337 = vmatpush.msra.mxu0 0.0
    %2338 = vmatpush.msra.mxu0 0.0
    %2339 = vmatpush.msra.mxu0 %v2263
    %2340 = vmatpush.msra.mxu0 %v2262
    %2341 = vmatmul.f32.gmra.mxu0 %v2274
    %v2342 = vpop.f32.mrf.mxu0
    %v2343 = vadd.f32 0.0, %v2342
    %2344 = vmatmul.f32.gmra.mxu0 %v2277
    %v2345 = vpop.f32.mrf.mxu0
    %v2346 = vadd.f32 0.0, %v2345
    %2347 = vdwg.mxu0
    %2348 = vmatpush.msra.mxu0 0.0
    %2349 = vmatpush.msra.mxu0 0.0
    %2350 = vmatpush.msra.mxu0 0.0
    %2351 = vmatpush.msra.mxu0 0.0
    %2352 = vmatpush.msra.mxu0 0.0
    %2353 = vmatpush.msra.mxu0 0.0
    %2354 = vmatpush.msra.mxu0 0.0
    %2355 = vmatpush.msra.mxu0 0.0
    %2356 = vmatpush.msra.mxu0 0.0
    %2357 = vmatpush.msra.mxu0 0.0
    %2358 = vmatpush.msra.mxu0 0.0
    %2359 = vmatpush.msra.mxu0 0.0
    %2360 = vmatpush.msra.mxu0 0.0
    %2361 = vmatpush.msra.mxu0 0.0
    %2362 = vmatpush.msra.mxu0 %v2269
    %2363 = vmatpush.msra.mxu0 %v2268
    %2364 = vmatmul.f32.gmra.mxu0 %v2274
    %v2365 = vpop.f32.mrf.mxu0
    %v2366 = vadd.f32 0.0, %v2365
    %2367 = vmatmul.f32.gmra.mxu0 %v2277
    %v2368 = vpop.f32.mrf.mxu0
    %v2369 = vadd.f32 0.0, %v2368
    %2370 = vdwg.mxu0
    %v2371 = vadd.f32 %v2172, %v2297
    %v2372 = vadd.f32 %v2195, %v2320
    %v2373 = vadd.f32 %v2218, %v2343
    %v2374 = vadd.f32 %v2241, %v2366
    %v2375 = vadd.f32 %v2175, %v2300
    %v2376 = vadd.f32 %v2198, %v2323
    %v2377 = vadd.f32 %v2221, %v2346
    %v2378 = vadd.f32 %v2244, %v2369
    %v2379 = vmul.f32 %v2371, %v1146
    %v2380 = vmul.f32 %v2372, %v1147
    %v2381 = vmul.f32 %v2373, %v1148
    %v2382 = vmul.f32 %v2374, %v1149
    %v2383 = vmul.f32 %v2375, %v1146
    %v2384 = vmul.f32 %v2376, %v1147
    %v2385 = vmul.f32 %v2377, %v1148
    %v2386 = vmul.f32 %v2378, %v1149
    %v2387 = vadd.f32 %v1988, %v2379
    %v2388 = vadd.f32 %v1989, %v2380
    %v2389 = vadd.f32 %v1990, %v2381
    %v2390 = vadd.f32 %v1991, %v2382
    %v2391 = vadd.f32 %v1992, %v2383
    %v2392 = vadd.f32 %v1993, %v2384
    %v2393 = vadd.f32 %v1994, %v2385
    %v2394 = vadd.f32 %v1995, %v2386
    %2396 = vset.pattern.permute.xlu0 0
    %2397 = vperm.xlu0 %2396, %v1220
    %v2398 = vpop.permute.xlu0 %2397
    %2401 = vset.pattern.permute.xlu0 0
    %2402 = vperm.xlu0 %2401, %v1221
    %v2403 = vpop.permute.xlu0 %2402
    %v2405 = vadd.f32 %v2387, %v2398
    %v2406 = vadd.f32 %v2388, %v2398
    %v2407 = vadd.f32 %v2389, %v2398
    %v2408 = vadd.f32 %v2390, %v2398
    %v2409 = vadd.f32 %v2391, %v2403
    %v2410 = vadd.f32 %v2392, %v2403
    %v2411 = vadd.f32 %v2393, %v2403
    %v2412 = vadd.f32 %v2394, %v2403
    %s2413 = scalar_lea.vmem %s7, 16
    %v2414 = vld [vmem:[%s2413] sm:$0xff]
    %v2415 = vld [vmem:[%s2413 + $0x8] sm:$0xff]
    %vm2416 = vcmp.ge.f32.partialorder %v2405, 0.0
    %vm2417 = vcmp.ge.f32.partialorder %v2406, 0.0
    %vm2418 = vcmp.ge.f32.partialorder %v2407, 0.0
    %vm2419 = vcmp.ge.f32.partialorder %v2408, 0.0
    %vm2420 = vcmp.ge.f32.partialorder %v2409, 0.0
    %vm2421 = vcmp.ge.f32.partialorder %v2410, 0.0
    %vm2422 = vcmp.ge.f32.partialorder %v2411, 0.0
    %vm2423 = vcmp.ge.f32.partialorder %v2412, 0.0
    %2425 = vset.pattern.permute.xlu0 0
    %2426 = vperm.xlu0 %2425, %v2414
    %v2427 = vpop.permute.xlu0 %2426
    %2430 = vset.pattern.permute.xlu0 0
    %2431 = vperm.xlu0 %2430, %v2415
    %v2432 = vpop.permute.xlu0 %2431
    %v2434 = vmul.f32 %v2427, %v2405
    %v2435 = vmul.f32 %v2427, %v2406
    %v2436 = vmul.f32 %v2427, %v2407
    %v2437 = vmul.f32 %v2427, %v2408
    %v2438 = vmul.f32 %v2432, %v2409
    %v2439 = vmul.f32 %v2432, %v2410
    %v2440 = vmul.f32 %v2432, %v2411
    %v2441 = vmul.f32 %v2432, %v2412
    %v2442 = vsel %vm2416, %v2405, %v2434
    %v2443 = vsel %vm2417, %v2406, %v2435
    %v2444 = vsel %vm2418, %v2407, %v2436
    %v2445 = vsel %vm2419, %v2408, %v2437
    %v2446 = vsel %vm2420, %v2409, %v2438
    %v2447 = vsel %vm2421, %v2410, %v2439
    %v2448 = vsel %vm2422, %v2411, %v2440
    %v2449 = vsel %vm2423, %v2412, %v2441
    %s2450 = scalar_lea.vmem %s5, 16
    %v2451 = vld [vmem:[%s2450] sm:$0xff]
    %v2452 = vld [vmem:[%s2450 + $0x8] sm:$0xff]
    %2453 = vrot.lane.b32.xlu0 %v2442, 1
    %v2454 = vpop.permute.xlu0 %2453
    %2455 = vrot.lane.b32.xlu0 %v2446, 1
    %v2456 = vpop.permute.xlu0 %2455
    %2457 = vrot.lane.b32.xlu0 %v2443, 1
    %v2458 = vpop.permute.xlu0 %2457
    %2459 = vrot.lane.b32.xlu0 %v2447, 1
    %v2460 = vpop.permute.xlu0 %2459
    %2461 = vrot.lane.b32.xlu0 %v2444, 1
    %v2462 = vpop.permute.xlu0 %2461
    %2463 = vrot.lane.b32.xlu0 %v2448, 1
    %v2464 = vpop.permute.xlu0 %2463
    %2465 = vrot.lane.b32.xlu0 %v2445, 1
    %v2466 = vpop.permute.xlu0 %2465
    %2467 = vrot.lane.b32.xlu0 %v2449, 1
    %v2468 = vpop.permute.xlu0 %2467
    %v2469 = vsel %vm51, %v2462, %v2466
    %v2470 = vsel %vm51, %v2464, %v2468
    %v2471 = vsel %vm51, %v2458, %v2462
    %v2472 = vsel %vm51, %v2460, %v2464
    %v2473 = vsel %vm51, %v2454, %v2458
    %v2474 = vsel %vm51, %v2456, %v2460
    %v2475 = vsel %vm51, %v2466, %v2454
    %v2476 = vsel %vm51, %v2468, %v2456
    %v2477 = vmul.f32 %v2475, %v66
    %v2478 = vmul.f32 %v2473, %v67
    %v2479 = vmul.f32 %v2471, %v68
    %v2480 = vmul.f32 %v2469, %v69
    %v2481 = vmul.f32 %v2476, %v66
    %v2482 = vmul.f32 %v2474, %v67
    %v2483 = vmul.f32 %v2472, %v68
    %v2484 = vmul.f32 %v2470, %v69
    %2485 = vrot.lane.b32.xlu0 %v2442, 127
    %v2486 = vpop.permute.xlu0 %2485
    %2487 = vrot.lane.b32.xlu0 %v2446, 127
    %v2488 = vpop.permute.xlu0 %2487
    %2489 = vrot.lane.b32.xlu0 %v2443, 127
    %v2490 = vpop.permute.xlu0 %2489
    %2491 = vrot.lane.b32.xlu0 %v2447, 127
    %v2492 = vpop.permute.xlu0 %2491
    %2493 = vrot.lane.b32.xlu0 %v2444, 127
    %v2494 = vpop.permute.xlu0 %2493
    %2495 = vrot.lane.b32.xlu0 %v2448, 127
    %v2496 = vpop.permute.xlu0 %2495
    %2497 = vrot.lane.b32.xlu0 %v2445, 127
    %v2498 = vpop.permute.xlu0 %2497
    %2499 = vrot.lane.b32.xlu0 %v2449, 127
    %v2500 = vpop.permute.xlu0 %2499
    %v2501 = vsel %vm82, %v2494, %v2498
    %v2502 = vsel %vm82, %v2496, %v2500
    %v2503 = vsel %vm82, %v2490, %v2494
    %v2504 = vsel %vm82, %v2492, %v2496
    %v2505 = vsel %vm82, %v2486, %v2490
    %v2506 = vsel %vm82, %v2488, %v2492
    %v2507 = vsel %vm82, %v2498, %v2486
    %v2508 = vsel %vm82, %v2500, %v2488
    %v2509 = vmul.f32 %v2505, %v95
    %v2510 = vmul.f32 %v2503, %v96
    %v2511 = vmul.f32 %v2501, %v97
    %v2512 = vmul.f32 %v2507, %v98
    %v2513 = vmul.f32 %v2506, %v95
    %v2514 = vmul.f32 %v2504, %v96
    %v2515 = vmul.f32 %v2502, %v97
    %v2516 = vmul.f32 %v2508, %v98
    %2517 = vrot.lane.b32.xlu0 %v2477, 16
    %v2518 = vpop.permute.xlu0 %2517
    %2519 = vrot.lane.b32.xlu0 %v2481, 16
    %v2520 = vpop.permute.xlu0 %2519
    %2521 = vrot.lane.b32.xlu0 %v2478, 16
    %v2522 = vpop.permute.xlu0 %2521
    %2523 = vrot.lane.b32.xlu0 %v2482, 16
    %v2524 = vpop.permute.xlu0 %2523
    %2525 = vrot.lane.b32.xlu0 %v2479, 16
    %v2526 = vpop.permute.xlu0 %2525
    %2527 = vrot.lane.b32.xlu0 %v2483, 16
    %v2528 = vpop.permute.xlu0 %2527
    %2529 = vrot.lane.b32.xlu0 %v2480, 16
    %v2530 = vpop.permute.xlu0 %2529
    %2531 = vrot.lane.b32.xlu0 %v2484, 16
    %v2532 = vpop.permute.xlu0 %2531
    %v2533 = vsel %vm111, %v2526, %v2530
    %v2534 = vsel %vm111, %v2528, %v2532
    %v2535 = vsel %vm111, %v2522, %v2526
    %v2536 = vsel %vm111, %v2524, %v2528
    %v2537 = vsel %vm111, %v2518, %v2522
    %v2538 = vsel %vm111, %v2520, %v2524
    %v2539 = vsel %vm111, %v2530, %v2518
    %v2540 = vsel %vm111, %v2532, %v2520
    %s2541 = scalar_lea.vmem %s2, 144
    %v2542 = vld [vmem:[%s2541] sm:$0xff]
    %v2543 = vld [vmem:[%s2541 + $0x8] sm:$0xff]
    %2544 = vrot.lane.b32.xlu0 %v2442, 16
    %v2545 = vpop.permute.xlu0 %2544
    %2546 = vrot.lane.b32.xlu0 %v2446, 16
    %v2547 = vpop.permute.xlu0 %2546
    %2548 = vrot.lane.b32.xlu0 %v2443, 16
    %v2549 = vpop.permute.xlu0 %2548
    %2550 = vrot.lane.b32.xlu0 %v2447, 16
    %v2551 = vpop.permute.xlu0 %2550
    %2552 = vrot.lane.b32.xlu0 %v2444, 16
    %v2553 = vpop.permute.xlu0 %2552
    %2554 = vrot.lane.b32.xlu0 %v2448, 16
    %v2555 = vpop.permute.xlu0 %2554
    %2556 = vrot.lane.b32.xlu0 %v2445, 16
    %v2557 = vpop.permute.xlu0 %2556
    %2558 = vrot.lane.b32.xlu0 %v2449, 16
    %v2559 = vpop.permute.xlu0 %2558
    %v2560 = vsel %vm111, %v2553, %v2557
    %v2561 = vsel %vm111, %v2555, %v2559
    %v2562 = vsel %vm111, %v2549, %v2553
    %v2563 = vsel %vm111, %v2551, %v2555
    %v2564 = vsel %vm111, %v2545, %v2549
    %v2565 = vsel %vm111, %v2547, %v2551
    %v2566 = vsel %vm111, %v2557, %v2545
    %v2567 = vsel %vm111, %v2559, %v2547
    %s2568 = scalar_lea.vmem %s2, 160
    %v2569 = vld [vmem:[%s2568] sm:$0xff]
    %v2570 = vld [vmem:[%s2568 + $0x8] sm:$0xff]
    %v2572 = vsel %vm1339, %v2569, 0
    %v2575 = vsel %vm1339, %v2570, 0
    %2577 = vmatpush.msra.mxu0 0.0
    %2578 = vmatpush.msra.mxu0 0.0
    %2579 = vmatpush.msra.mxu0 0.0
    %2580 = vmatpush.msra.mxu0 0.0
    %2581 = vmatpush.msra.mxu0 0.0
    %2582 = vmatpush.msra.mxu0 0.0
    %2583 = vmatpush.msra.mxu0 0.0
    %2584 = vmatpush.msra.mxu0 0.0
    %2585 = vmatpush.msra.mxu0 0.0
    %2586 = vmatpush.msra.mxu0 0.0
    %2587 = vmatpush.msra.mxu0 0.0
    %2588 = vmatpush.msra.mxu0 0.0
    %2589 = vmatpush.msra.mxu0 0.0
    %2590 = vmatpush.msra.mxu0 0.0
    %2591 = vmatpush.msra.mxu0 %v2567
    %2592 = vmatpush.msra.mxu0 %v2566
    %2593 = vmatmul.f32.gmra.mxu0 %v2572
    %v2594 = vpop.f32.mrf.mxu0
    %v2595 = vadd.f32 0.0, %v2594
    %2596 = vmatmul.f32.gmra.mxu0 %v2575
    %v2597 = vpop.f32.mrf.mxu0
    %v2598 = vadd.f32 0.0, %v2597
    %2599 = vdwg.mxu0
    %2600 = vmatpush.msra.mxu0 0.0
    %2601 = vmatpush.msra.mxu0 0.0
    %2602 = vmatpush.msra.mxu0 0.0
    %2603 = vmatpush.msra.mxu0 0.0
    %2604 = vmatpush.msra.mxu0 0.0
    %2605 = vmatpush.msra.mxu0 0.0
    %2606 = vmatpush.msra.mxu0 0.0
    %2607 = vmatpush.msra.mxu0 0.0
    %2608 = vmatpush.msra.mxu0 0.0
    %2609 = vmatpush.msra.mxu0 0.0
    %2610 = vmatpush.msra.mxu0 0.0
    %2611 = vmatpush.msra.mxu0 0.0
    %2612 = vmatpush.msra.mxu0 0.0
    %2613 = vmatpush.msra.mxu0 0.0
    %2614 = vmatpush.msra.mxu0 %v2565
    %2615 = vmatpush.msra.mxu0 %v2564
    %2616 = vmatmul.f32.gmra.mxu0 %v2572
    %v2617 = vpop.f32.mrf.mxu0
    %v2618 = vadd.f32 0.0, %v2617
    %2619 = vmatmul.f32.gmra.mxu0 %v2575
    %v2620 = vpop.f32.mrf.mxu0
    %v2621 = vadd.f32 0.0, %v2620
    %2622 = vdwg.mxu0
    %2623 = vmatpush.msra.mxu0 0.0
    %2624 = vmatpush.msra.mxu0 0.0
    %2625 = vmatpush.msra.mxu0 0.0
    %2626 = vmatpush.msra.mxu0 0.0
    %2627 = vmatpush.msra.mxu0 0.0
    %2628 = vmatpush.msra.mxu0 0.0
    %2629 = vmatpush.msra.mxu0 0.0
    %2630 = vmatpush.msra.mxu0 0.0
    %2631 = vmatpush.msra.mxu0 0.0
    %2632 = vmatpush.msra.mxu0 0.0
    %2633 = vmatpush.msra.mxu0 0.0
    %2634 = vmatpush.msra.mxu0 0.0
    %2635 = vmatpush.msra.mxu0 0.0
    %2636 = vmatpush.msra.mxu0 0.0
    %2637 = vmatpush.msra.mxu0 %v2563
    %2638 = vmatpush.msra.mxu0 %v2562
    %2639 = vmatmul.f32.gmra.mxu0 %v2572
    %v2640 = vpop.f32.mrf.mxu0
    %v2641 = vadd.f32 0.0, %v2640
    %2642 = vmatmul.f32.gmra.mxu0 %v2575
    %v2643 = vpop.f32.mrf.mxu0
    %v2644 = vadd.f32 0.0, %v2643
    %2645 = vdwg.mxu0
    %2646 = vmatpush.msra.mxu0 0.0
    %2647 = vmatpush.msra.mxu0 0.0
    %2648 = vmatpush.msra.mxu0 0.0
    %2649 = vmatpush.msra.mxu0 0.0
    %2650 = vmatpush.msra.mxu0 0.0
    %2651 = vmatpush.msra.mxu0 0.0
    %2652 = vmatpush.msra.mxu0 0.0
    %2653 = vmatpush.msra.mxu0 0.0
    %2654 = vmatpush.msra.mxu0 0.0
    %2655 = vmatpush.msra.mxu0 0.0
    %2656 = vmatpush.msra.mxu0 0.0
    %2657 = vmatpush.msra.mxu0 0.0
    %2658 = vmatpush.msra.mxu0 0.0
    %2659 = vmatpush.msra.mxu0 0.0
    %2660 = vmatpush.msra.mxu0 %v2561
    %2661 = vmatpush.msra.mxu0 %v2560
    %2662 = vmatmul.f32.gmra.mxu0 %v2572
    %v2663 = vpop.f32.mrf.mxu0
    %v2664 = vadd.f32 0.0, %v2663
    %2665 = vmatmul.f32.gmra.mxu0 %v2575
    %v2666 = vpop.f32.mrf.mxu0
    %v2667 = vadd.f32 0.0, %v2666
    %2668 = vdwg.mxu0
    %v2670 = vsel %vm1339, %v2542, 0
    %v2673 = vsel %vm1339, %v2543, 0
    %2675 = vmatpush.msra.mxu0 0.0
    %2676 = vmatpush.msra.mxu0 0.0
    %2677 = vmatpush.msra.mxu0 0.0
    %2678 = vmatpush.msra.mxu0 0.0
    %2679 = vmatpush.msra.mxu0 0.0
    %2680 = vmatpush.msra.mxu0 0.0
    %2681 = vmatpush.msra.mxu0 0.0
    %2682 = vmatpush.msra.mxu0 0.0
    %2683 = vmatpush.msra.mxu0 0.0
    %2684 = vmatpush.msra.mxu0 0.0
    %2685 = vmatpush.msra.mxu0 0.0
    %2686 = vmatpush.msra.mxu0 0.0
    %2687 = vmatpush.msra.mxu0 0.0
    %2688 = vmatpush.msra.mxu0 0.0
    %2689 = vmatpush.msra.mxu0 %v2540
    %2690 = vmatpush.msra.mxu0 %v2539
    %2691 = vmatmul.f32.gmra.mxu0 %v2670
    %v2692 = vpop.f32.mrf.mxu0
    %v2693 = vadd.f32 %v2595, %v2692
    %2694 = vmatmul.f32.gmra.mxu0 %v2673
    %v2695 = vpop.f32.mrf.mxu0
    %v2696 = vadd.f32 %v2598, %v2695
    %2697 = vdwg.mxu0
    %2698 = vmatpush.msra.mxu0 0.0
    %2699 = vmatpush.msra.mxu0 0.0
    %2700 = vmatpush.msra.mxu0 0.0
    %2701 = vmatpush.msra.mxu0 0.0
    %2702 = vmatpush.msra.mxu0 0.0
    %2703 = vmatpush.msra.mxu0 0.0
    %2704 = vmatpush.msra.mxu0 0.0
    %2705 = vmatpush.msra.mxu0 0.0
    %2706 = vmatpush.msra.mxu0 0.0
    %2707 = vmatpush.msra.mxu0 0.0
    %2708 = vmatpush.msra.mxu0 0.0
    %2709 = vmatpush.msra.mxu0 0.0
    %2710 = vmatpush.msra.mxu0 0.0
    %2711 = vmatpush.msra.mxu0 0.0
    %2712 = vmatpush.msra.mxu0 %v2538
    %2713 = vmatpush.msra.mxu0 %v2537
    %2714 = vmatmul.f32.gmra.mxu0 %v2670
    %v2715 = vpop.f32.mrf.mxu0
    %v2716 = vadd.f32 %v2618, %v2715
    %2717 = vmatmul.f32.gmra.mxu0 %v2673
    %v2718 = vpop.f32.mrf.mxu0
    %v2719 = vadd.f32 %v2621, %v2718
    %2720 = vdwg.mxu0
    %2721 = vmatpush.msra.mxu0 0.0
    %2722 = vmatpush.msra.mxu0 0.0
    %2723 = vmatpush.msra.mxu0 0.0
    %2724 = vmatpush.msra.mxu0 0.0
    %2725 = vmatpush.msra.mxu0 0.0
    %2726 = vmatpush.msra.mxu0 0.0
    %2727 = vmatpush.msra.mxu0 0.0
    %2728 = vmatpush.msra.mxu0 0.0
    %2729 = vmatpush.msra.mxu0 0.0
    %2730 = vmatpush.msra.mxu0 0.0
    %2731 = vmatpush.msra.mxu0 0.0
    %2732 = vmatpush.msra.mxu0 0.0
    %2733 = vmatpush.msra.mxu0 0.0
    %2734 = vmatpush.msra.mxu0 0.0
    %2735 = vmatpush.msra.mxu0 %v2536
    %2736 = vmatpush.msra.mxu0 %v2535
    %2737 = vmatmul.f32.gmra.mxu0 %v2670
    %v2738 = vpop.f32.mrf.mxu0
    %v2739 = vadd.f32 %v2641, %v2738
    %2740 = vmatmul.f32.gmra.mxu0 %v2673
    %v2741 = vpop.f32.mrf.mxu0
    %v2742 = vadd.f32 %v2644, %v2741
    %2743 = vdwg.mxu0
    %2744 = vmatpush.msra.mxu0 0.0
    %2745 = vmatpush.msra.mxu0 0.0
    %2746 = vmatpush.msra.mxu0 0.0
    %2747 = vmatpush.msra.mxu0 0.0
    %2748 = vmatpush.msra.mxu0 0.0
    %2749 = vmatpush.msra.mxu0 0.0
    %2750 = vmatpush.msra.mxu0 0.0
    %2751 = vmatpush.msra.mxu0 0.0
    %2752 = vmatpush.msra.mxu0 0.0
    %2753 = vmatpush.msra.mxu0 0.0
    %2754 = vmatpush.msra.mxu0 0.0
    %2755 = vmatpush.msra.mxu0 0.0
    %2756 = vmatpush.msra.mxu0 0.0
    %2757 = vmatpush.msra.mxu0 0.0
    %2758 = vmatpush.msra.mxu0 %v2534
    %2759 = vmatpush.msra.mxu0 %v2533
    %2760 = vmatmul.f32.gmra.mxu0 %v2670
    %v2761 = vpop.f32.mrf.mxu0
    %v2762 = vadd.f32 %v2664, %v2761
    %2763 = vmatmul.f32.gmra.mxu0 %v2673
    %v2764 = vpop.f32.mrf.mxu0
    %v2765 = vadd.f32 %v2667, %v2764
    %2766 = vdwg.mxu0
    %2767 = vrot.lane.b32.xlu0 %v2509, 16
    %v2768 = vpop.permute.xlu0 %2767
    %2769 = vrot.lane.b32.xlu0 %v2513, 16
    %v2770 = vpop.permute.xlu0 %2769
    %2771 = vrot.lane.b32.xlu0 %v2510, 16
    %v2772 = vpop.permute.xlu0 %2771
    %2773 = vrot.lane.b32.xlu0 %v2514, 16
    %v2774 = vpop.permute.xlu0 %2773
    %2775 = vrot.lane.b32.xlu0 %v2511, 16
    %v2776 = vpop.permute.xlu0 %2775
    %2777 = vrot.lane.b32.xlu0 %v2515, 16
    %v2778 = vpop.permute.xlu0 %2777
    %2779 = vrot.lane.b32.xlu0 %v2512, 16
    %v2780 = vpop.permute.xlu0 %2779
    %2781 = vrot.lane.b32.xlu0 %v2516, 16
    %v2782 = vpop.permute.xlu0 %2781
    %v2783 = vsel %vm111, %v2776, %v2780
    %v2784 = vsel %vm111, %v2778, %v2782
    %v2785 = vsel %vm111, %v2772, %v2776
    %v2786 = vsel %vm111, %v2774, %v2778
    %v2787 = vsel %vm111, %v2768, %v2772
    %v2788 = vsel %vm111, %v2770, %v2774
    %v2789 = vsel %vm111, %v2780, %v2768
    %v2790 = vsel %vm111, %v2782, %v2770
    %s2791 = scalar_lea.vmem %s2, 176
    %v2792 = vld [vmem:[%s2791] sm:$0xff]
    %v2793 = vld [vmem:[%s2791 + $0x8] sm:$0xff]
    %v2795 = vsel %vm1339, %v2792, 0
    %v2798 = vsel %vm1339, %v2793, 0
    %2800 = vmatpush.msra.mxu0 0.0
    %2801 = vmatpush.msra.mxu0 0.0
    %2802 = vmatpush.msra.mxu0 0.0
    %2803 = vmatpush.msra.mxu0 0.0
    %2804 = vmatpush.msra.mxu0 0.0
    %2805 = vmatpush.msra.mxu0 0.0
    %2806 = vmatpush.msra.mxu0 0.0
    %2807 = vmatpush.msra.mxu0 0.0
    %2808 = vmatpush.msra.mxu0 0.0
    %2809 = vmatpush.msra.mxu0 0.0
    %2810 = vmatpush.msra.mxu0 0.0
    %2811 = vmatpush.msra.mxu0 0.0
    %2812 = vmatpush.msra.mxu0 0.0
    %2813 = vmatpush.msra.mxu0 0.0
    %2814 = vmatpush.msra.mxu0 %v2790
    %2815 = vmatpush.msra.mxu0 %v2789
    %2816 = vmatmul.f32.gmra.mxu0 %v2795
    %v2817 = vpop.f32.mrf.mxu0
    %v2818 = vadd.f32 0.0, %v2817
    %2819 = vmatmul.f32.gmra.mxu0 %v2798
    %v2820 = vpop.f32.mrf.mxu0
    %v2821 = vadd.f32 0.0, %v2820
    %2822 = vdwg.mxu0
    %2823 = vmatpush.msra.mxu0 0.0
    %2824 = vmatpush.msra.mxu0 0.0
    %2825 = vmatpush.msra.mxu0 0.0
    %2826 = vmatpush.msra.mxu0 0.0
    %2827 = vmatpush.msra.mxu0 0.0
    %2828 = vmatpush.msra.mxu0 0.0
    %2829 = vmatpush.msra.mxu0 0.0
    %2830 = vmatpush.msra.mxu0 0.0
    %2831 = vmatpush.msra.mxu0 0.0
    %2832 = vmatpush.msra.mxu0 0.0
    %2833 = vmatpush.msra.mxu0 0.0
    %2834 = vmatpush.msra.mxu0 0.0
    %2835 = vmatpush.msra.mxu0 0.0
    %2836 = vmatpush.msra.mxu0 0.0
    %2837 = vmatpush.msra.mxu0 %v2788
    %2838 = vmatpush.msra.mxu0 %v2787
    %2839 = vmatmul.f32.gmra.mxu0 %v2795
    %v2840 = vpop.f32.mrf.mxu0
    %v2841 = vadd.f32 0.0, %v2840
    %2842 = vmatmul.f32.gmra.mxu0 %v2798
    %v2843 = vpop.f32.mrf.mxu0
    %v2844 = vadd.f32 0.0, %v2843
    %2845 = vdwg.mxu0
    %2846 = vmatpush.msra.mxu0 0.0
    %2847 = vmatpush.msra.mxu0 0.0
    %2848 = vmatpush.msra.mxu0 0.0
    %2849 = vmatpush.msra.mxu0 0.0
    %2850 = vmatpush.msra.mxu0 0.0
    %2851 = vmatpush.msra.mxu0 0.0
    %2852 = vmatpush.msra.mxu0 0.0
    %2853 = vmatpush.msra.mxu0 0.0
    %2854 = vmatpush.msra.mxu0 0.0
    %2855 = vmatpush.msra.mxu0 0.0
    %2856 = vmatpush.msra.mxu0 0.0
    %2857 = vmatpush.msra.mxu0 0.0
    %2858 = vmatpush.msra.mxu0 0.0
    %2859 = vmatpush.msra.mxu0 0.0
    %2860 = vmatpush.msra.mxu0 %v2786
    %2861 = vmatpush.msra.mxu0 %v2785
    %2862 = vmatmul.f32.gmra.mxu0 %v2795
    %v2863 = vpop.f32.mrf.mxu0
    %v2864 = vadd.f32 0.0, %v2863
    %2865 = vmatmul.f32.gmra.mxu0 %v2798
    %v2866 = vpop.f32.mrf.mxu0
    %v2867 = vadd.f32 0.0, %v2866
    %2868 = vdwg.mxu0
    %2869 = vmatpush.msra.mxu0 0.0
    %2870 = vmatpush.msra.mxu0 0.0
    %2871 = vmatpush.msra.mxu0 0.0
    %2872 = vmatpush.msra.mxu0 0.0
    %2873 = vmatpush.msra.mxu0 0.0
    %2874 = vmatpush.msra.mxu0 0.0
    %2875 = vmatpush.msra.mxu0 0.0
    %2876 = vmatpush.msra.mxu0 0.0
    %2877 = vmatpush.msra.mxu0 0.0
    %2878 = vmatpush.msra.mxu0 0.0
    %2879 = vmatpush.msra.mxu0 0.0
    %2880 = vmatpush.msra.mxu0 0.0
    %2881 = vmatpush.msra.mxu0 0.0
    %2882 = vmatpush.msra.mxu0 0.0
    %2883 = vmatpush.msra.mxu0 %v2784
    %2884 = vmatpush.msra.mxu0 %v2783
    %2885 = vmatmul.f32.gmra.mxu0 %v2795
    %v2886 = vpop.f32.mrf.mxu0
    %v2887 = vadd.f32 0.0, %v2886
    %2888 = vmatmul.f32.gmra.mxu0 %v2798
    %v2889 = vpop.f32.mrf.mxu0
    %v2890 = vadd.f32 0.0, %v2889
    %2891 = vdwg.mxu0
    %v2892 = vadd.f32 %v2693, %v2818
    %v2893 = vadd.f32 %v2716, %v2841
    %v2894 = vadd.f32 %v2739, %v2864
    %v2895 = vadd.f32 %v2762, %v2887
    %v2896 = vadd.f32 %v2696, %v2821
    %v2897 = vadd.f32 %v2719, %v2844
    %v2898 = vadd.f32 %v2742, %v2867
    %v2899 = vadd.f32 %v2765, %v2890
    %v2900 = vmul.f32 %v2892, %v459
    %v2901 = vmul.f32 %v2893, %v460
    %v2902 = vmul.f32 %v2894, %v461
    %v2903 = vmul.f32 %v2895, %v462
    %v2904 = vmul.f32 %v2896, %v459
    %v2905 = vmul.f32 %v2897, %v460
    %v2906 = vmul.f32 %v2898, %v461
    %v2907 = vmul.f32 %v2899, %v462
    %s2908 = scalar_lea.vmem %s2, 192
    %v2909 = vld [vmem:[%s2908] sm:$0xff]
    %v2910 = vld [vmem:[%s2908 + $0x8] sm:$0xff]
    %s2911 = scalar_lea.vmem %s2, 208
    %v2912 = vld [vmem:[%s2911] sm:$0xff]
    %v2913 = vld [vmem:[%s2911 + $0x8] sm:$0xff]
    %v2915 = vsel %vm1339, %v2912, 0
    %v2918 = vsel %vm1339, %v2913, 0
    %2920 = vmatpush.msra.mxu0 0.0
    %2921 = vmatpush.msra.mxu0 0.0
    %2922 = vmatpush.msra.mxu0 0.0
    %2923 = vmatpush.msra.mxu0 0.0
    %2924 = vmatpush.msra.mxu0 0.0
    %2925 = vmatpush.msra.mxu0 0.0
    %2926 = vmatpush.msra.mxu0 0.0
    %2927 = vmatpush.msra.mxu0 0.0
    %2928 = vmatpush.msra.mxu0 0.0
    %2929 = vmatpush.msra.mxu0 0.0
    %2930 = vmatpush.msra.mxu0 0.0
    %2931 = vmatpush.msra.mxu0 0.0
    %2932 = vmatpush.msra.mxu0 0.0
    %2933 = vmatpush.msra.mxu0 0.0
    %2934 = vmatpush.msra.mxu0 %v2446
    %2935 = vmatpush.msra.mxu0 %v2442
    %2936 = vmatmul.f32.gmra.mxu0 %v2915
    %v2937 = vpop.f32.mrf.mxu0
    %v2938 = vadd.f32 0.0, %v2937
    %2939 = vmatmul.f32.gmra.mxu0 %v2918
    %v2940 = vpop.f32.mrf.mxu0
    %v2941 = vadd.f32 0.0, %v2940
    %2942 = vdwg.mxu0
    %2943 = vmatpush.msra.mxu0 0.0
    %2944 = vmatpush.msra.mxu0 0.0
    %2945 = vmatpush.msra.mxu0 0.0
    %2946 = vmatpush.msra.mxu0 0.0
    %2947 = vmatpush.msra.mxu0 0.0
    %2948 = vmatpush.msra.mxu0 0.0
    %2949 = vmatpush.msra.mxu0 0.0
    %2950 = vmatpush.msra.mxu0 0.0
    %2951 = vmatpush.msra.mxu0 0.0
    %2952 = vmatpush.msra.mxu0 0.0
    %2953 = vmatpush.msra.mxu0 0.0
    %2954 = vmatpush.msra.mxu0 0.0
    %2955 = vmatpush.msra.mxu0 0.0
    %2956 = vmatpush.msra.mxu0 0.0
    %2957 = vmatpush.msra.mxu0 %v2447
    %2958 = vmatpush.msra.mxu0 %v2443
    %2959 = vmatmul.f32.gmra.mxu0 %v2915
    %v2960 = vpop.f32.mrf.mxu0
    %v2961 = vadd.f32 0.0, %v2960
    %2962 = vmatmul.f32.gmra.mxu0 %v2918
    %v2963 = vpop.f32.mrf.mxu0
    %v2964 = vadd.f32 0.0, %v2963
    %2965 = vdwg.mxu0
    %2966 = vmatpush.msra.mxu0 0.0
    %2967 = vmatpush.msra.mxu0 0.0
    %2968 = vmatpush.msra.mxu0 0.0
    %2969 = vmatpush.msra.mxu0 0.0
    %2970 = vmatpush.msra.mxu0 0.0
    %2971 = vmatpush.msra.mxu0 0.0
    %2972 = vmatpush.msra.mxu0 0.0
    %2973 = vmatpush.msra.mxu0 0.0
    %2974 = vmatpush.msra.mxu0 0.0
    %2975 = vmatpush.msra.mxu0 0.0
    %2976 = vmatpush.msra.mxu0 0.0
    %2977 = vmatpush.msra.mxu0 0.0
    %2978 = vmatpush.msra.mxu0 0.0
    %2979 = vmatpush.msra.mxu0 0.0
    %2980 = vmatpush.msra.mxu0 %v2448
    %2981 = vmatpush.msra.mxu0 %v2444
    %2982 = vmatmul.f32.gmra.mxu0 %v2915
    %v2983 = vpop.f32.mrf.mxu0
    %v2984 = vadd.f32 0.0, %v2983
    %2985 = vmatmul.f32.gmra.mxu0 %v2918
    %v2986 = vpop.f32.mrf.mxu0
    %v2987 = vadd.f32 0.0, %v2986
    %2988 = vdwg.mxu0
    %2989 = vmatpush.msra.mxu0 0.0
    %2990 = vmatpush.msra.mxu0 0.0
    %2991 = vmatpush.msra.mxu0 0.0
    %2992 = vmatpush.msra.mxu0 0.0
    %2993 = vmatpush.msra.mxu0 0.0
    %2994 = vmatpush.msra.mxu0 0.0
    %2995 = vmatpush.msra.mxu0 0.0
    %2996 = vmatpush.msra.mxu0 0.0
    %2997 = vmatpush.msra.mxu0 0.0
    %2998 = vmatpush.msra.mxu0 0.0
    %2999 = vmatpush.msra.mxu0 0.0
    %3000 = vmatpush.msra.mxu0 0.0
    %3001 = vmatpush.msra.mxu0 0.0
    %3002 = vmatpush.msra.mxu0 0.0
    %3003 = vmatpush.msra.mxu0 %v2449
    %3004 = vmatpush.msra.mxu0 %v2445
    %3005 = vmatmul.f32.gmra.mxu0 %v2915
    %v3006 = vpop.f32.mrf.mxu0
    %v3007 = vadd.f32 0.0, %v3006
    %3008 = vmatmul.f32.gmra.mxu0 %v2918
    %v3009 = vpop.f32.mrf.mxu0
    %v3010 = vadd.f32 0.0, %v3009
    %3011 = vdwg.mxu0
    %v3013 = vsel %vm1339, %v2909, 0
    %v3016 = vsel %vm1339, %v2910, 0
    %3018 = vmatpush.msra.mxu0 0.0
    %3019 = vmatpush.msra.mxu0 0.0
    %3020 = vmatpush.msra.mxu0 0.0
    %3021 = vmatpush.msra.mxu0 0.0
    %3022 = vmatpush.msra.mxu0 0.0
    %3023 = vmatpush.msra.mxu0 0.0
    %3024 = vmatpush.msra.mxu0 0.0
    %3025 = vmatpush.msra.mxu0 0.0
    %3026 = vmatpush.msra.mxu0 0.0
    %3027 = vmatpush.msra.mxu0 0.0
    %3028 = vmatpush.msra.mxu0 0.0
    %3029 = vmatpush.msra.mxu0 0.0
    %3030 = vmatpush.msra.mxu0 0.0
    %3031 = vmatpush.msra.mxu0 0.0
    %3032 = vmatpush.msra.mxu0 %v2481
    %3033 = vmatpush.msra.mxu0 %v2477
    %3034 = vmatmul.f32.gmra.mxu0 %v3013
    %v3035 = vpop.f32.mrf.mxu0
    %v3036 = vadd.f32 %v2938, %v3035
    %3037 = vmatmul.f32.gmra.mxu0 %v3016
    %v3038 = vpop.f32.mrf.mxu0
    %v3039 = vadd.f32 %v2941, %v3038
    %3040 = vdwg.mxu0
    %3041 = vmatpush.msra.mxu0 0.0
    %3042 = vmatpush.msra.mxu0 0.0
    %3043 = vmatpush.msra.mxu0 0.0
    %3044 = vmatpush.msra.mxu0 0.0
    %3045 = vmatpush.msra.mxu0 0.0
    %3046 = vmatpush.msra.mxu0 0.0
    %3047 = vmatpush.msra.mxu0 0.0
    %3048 = vmatpush.msra.mxu0 0.0
    %3049 = vmatpush.msra.mxu0 0.0
    %3050 = vmatpush.msra.mxu0 0.0
    %3051 = vmatpush.msra.mxu0 0.0
    %3052 = vmatpush.msra.mxu0 0.0
    %3053 = vmatpush.msra.mxu0 0.0
    %3054 = vmatpush.msra.mxu0 0.0
    %3055 = vmatpush.msra.mxu0 %v2482
    %3056 = vmatpush.msra.mxu0 %v2478
    %3057 = vmatmul.f32.gmra.mxu0 %v3013
    %v3058 = vpop.f32.mrf.mxu0
    %v3059 = vadd.f32 %v2961, %v3058
    %3060 = vmatmul.f32.gmra.mxu0 %v3016
    %v3061 = vpop.f32.mrf.mxu0
    %v3062 = vadd.f32 %v2964, %v3061
    %3063 = vdwg.mxu0
    %3064 = vmatpush.msra.mxu0 0.0
    %3065 = vmatpush.msra.mxu0 0.0
    %3066 = vmatpush.msra.mxu0 0.0
    %3067 = vmatpush.msra.mxu0 0.0
    %3068 = vmatpush.msra.mxu0 0.0
    %3069 = vmatpush.msra.mxu0 0.0
    %3070 = vmatpush.msra.mxu0 0.0
    %3071 = vmatpush.msra.mxu0 0.0
    %3072 = vmatpush.msra.mxu0 0.0
    %3073 = vmatpush.msra.mxu0 0.0
    %3074 = vmatpush.msra.mxu0 0.0
    %3075 = vmatpush.msra.mxu0 0.0
    %3076 = vmatpush.msra.mxu0 0.0
    %3077 = vmatpush.msra.mxu0 0.0
    %3078 = vmatpush.msra.mxu0 %v2483
    %3079 = vmatpush.msra.mxu0 %v2479
    %3080 = vmatmul.f32.gmra.mxu0 %v3013
    %v3081 = vpop.f32.mrf.mxu0
    %v3082 = vadd.f32 %v2984, %v3081
    %3083 = vmatmul.f32.gmra.mxu0 %v3016
    %v3084 = vpop.f32.mrf.mxu0
    %v3085 = vadd.f32 %v2987, %v3084
    %3086 = vdwg.mxu0
    %3087 = vmatpush.msra.mxu0 0.0
    %3088 = vmatpush.msra.mxu0 0.0
    %3089 = vmatpush.msra.mxu0 0.0
    %3090 = vmatpush.msra.mxu0 0.0
    %3091 = vmatpush.msra.mxu0 0.0
    %3092 = vmatpush.msra.mxu0 0.0
    %3093 = vmatpush.msra.mxu0 0.0
    %3094 = vmatpush.msra.mxu0 0.0
    %3095 = vmatpush.msra.mxu0 0.0
    %3096 = vmatpush.msra.mxu0 0.0
    %3097 = vmatpush.msra.mxu0 0.0
    %3098 = vmatpush.msra.mxu0 0.0
    %3099 = vmatpush.msra.mxu0 0.0
    %3100 = vmatpush.msra.mxu0 0.0
    %3101 = vmatpush.msra.mxu0 %v2484
    %3102 = vmatpush.msra.mxu0 %v2480
    %3103 = vmatmul.f32.gmra.mxu0 %v3013
    %v3104 = vpop.f32.mrf.mxu0
    %v3105 = vadd.f32 %v3007, %v3104
    %3106 = vmatmul.f32.gmra.mxu0 %v3016
    %v3107 = vpop.f32.mrf.mxu0
    %v3108 = vadd.f32 %v3010, %v3107
    %3109 = vdwg.mxu0
    %s3110 = scalar_lea.vmem %s2, 224
    %v3111 = vld [vmem:[%s3110] sm:$0xff]
    %v3112 = vld [vmem:[%s3110 + $0x8] sm:$0xff]
    %v3114 = vsel %vm1339, %v3111, 0
    %v3117 = vsel %vm1339, %v3112, 0
    %3119 = vmatpush.msra.mxu0 0.0
    %3120 = vmatpush.msra.mxu0 0.0
    %3121 = vmatpush.msra.mxu0 0.0
    %3122 = vmatpush.msra.mxu0 0.0
    %3123 = vmatpush.msra.mxu0 0.0
    %3124 = vmatpush.msra.mxu0 0.0
    %3125 = vmatpush.msra.mxu0 0.0
    %3126 = vmatpush.msra.mxu0 0.0
    %3127 = vmatpush.msra.mxu0 0.0
    %3128 = vmatpush.msra.mxu0 0.0
    %3129 = vmatpush.msra.mxu0 0.0
    %3130 = vmatpush.msra.mxu0 0.0
    %3131 = vmatpush.msra.mxu0 0.0
    %3132 = vmatpush.msra.mxu0 0.0
    %3133 = vmatpush.msra.mxu0 %v2513
    %3134 = vmatpush.msra.mxu0 %v2509
    %3135 = vmatmul.f32.gmra.mxu0 %v3114
    %v3136 = vpop.f32.mrf.mxu0
    %v3137 = vadd.f32 0.0, %v3136
    %3138 = vmatmul.f32.gmra.mxu0 %v3117
    %v3139 = vpop.f32.mrf.mxu0
    %v3140 = vadd.f32 0.0, %v3139
    %3141 = vdwg.mxu0
    %3142 = vmatpush.msra.mxu0 0.0
    %3143 = vmatpush.msra.mxu0 0.0
    %3144 = vmatpush.msra.mxu0 0.0
    %3145 = vmatpush.msra.mxu0 0.0
    %3146 = vmatpush.msra.mxu0 0.0
    %3147 = vmatpush.msra.mxu0 0.0
    %3148 = vmatpush.msra.mxu0 0.0
    %3149 = vmatpush.msra.mxu0 0.0
    %3150 = vmatpush.msra.mxu0 0.0
    %3151 = vmatpush.msra.mxu0 0.0
    %3152 = vmatpush.msra.mxu0 0.0
    %3153 = vmatpush.msra.mxu0 0.0
    %3154 = vmatpush.msra.mxu0 0.0
    %3155 = vmatpush.msra.mxu0 0.0
    %3156 = vmatpush.msra.mxu0 %v2514
    %3157 = vmatpush.msra.mxu0 %v2510
    %3158 = vmatmul.f32.gmra.mxu0 %v3114
    %v3159 = vpop.f32.mrf.mxu0
    %v3160 = vadd.f32 0.0, %v3159
    %3161 = vmatmul.f32.gmra.mxu0 %v3117
    %v3162 = vpop.f32.mrf.mxu0
    %v3163 = vadd.f32 0.0, %v3162
    %3164 = vdwg.mxu0
    %3165 = vmatpush.msra.mxu0 0.0
    %3166 = vmatpush.msra.mxu0 0.0
    %3167 = vmatpush.msra.mxu0 0.0
    %3168 = vmatpush.msra.mxu0 0.0
    %3169 = vmatpush.msra.mxu0 0.0
    %3170 = vmatpush.msra.mxu0 0.0
    %3171 = vmatpush.msra.mxu0 0.0
    %3172 = vmatpush.msra.mxu0 0.0
    %3173 = vmatpush.msra.mxu0 0.0
    %3174 = vmatpush.msra.mxu0 0.0
    %3175 = vmatpush.msra.mxu0 0.0
    %3176 = vmatpush.msra.mxu0 0.0
    %3177 = vmatpush.msra.mxu0 0.0
    %3178 = vmatpush.msra.mxu0 0.0
    %3179 = vmatpush.msra.mxu0 %v2515
    %3180 = vmatpush.msra.mxu0 %v2511
    %3181 = vmatmul.f32.gmra.mxu0 %v3114
    %v3182 = vpop.f32.mrf.mxu0
    %v3183 = vadd.f32 0.0, %v3182
    %3184 = vmatmul.f32.gmra.mxu0 %v3117
    %v3185 = vpop.f32.mrf.mxu0
    %v3186 = vadd.f32 0.0, %v3185
    %3187 = vdwg.mxu0
    %3188 = vmatpush.msra.mxu0 0.0
    %3189 = vmatpush.msra.mxu0 0.0
    %3190 = vmatpush.msra.mxu0 0.0
    %3191 = vmatpush.msra.mxu0 0.0
    %3192 = vmatpush.msra.mxu0 0.0
    %3193 = vmatpush.msra.mxu0 0.0
    %3194 = vmatpush.msra.mxu0 0.0
    %3195 = vmatpush.msra.mxu0 0.0
    %3196 = vmatpush.msra.mxu0 0.0
    %3197 = vmatpush.msra.mxu0 0.0
    %3198 = vmatpush.msra.mxu0 0.0
    %3199 = vmatpush.msra.mxu0 0.0
    %3200 = vmatpush.msra.mxu0 0.0
    %3201 = vmatpush.msra.mxu0 0.0
    %3202 = vmatpush.msra.mxu0 %v2516
    %3203 = vmatpush.msra.mxu0 %v2512
    %3204 = vmatmul.f32.gmra.mxu0 %v3114
    %v3205 = vpop.f32.mrf.mxu0
    %v3206 = vadd.f32 0.0, %v3205
    %3207 = vmatmul.f32.gmra.mxu0 %v3117
    %v3208 = vpop.f32.mrf.mxu0
    %v3209 = vadd.f32 0.0, %v3208
    %3210 = vdwg.mxu0
    %v3211 = vadd.f32 %v3036, %v3137
    %v3212 = vadd.f32 %v3059, %v3160
    %v3213 = vadd.f32 %v3082, %v3183
    %v3214 = vadd.f32 %v3105, %v3206
    %v3215 = vadd.f32 %v3039, %v3140
    %v3216 = vadd.f32 %v3062, %v3163
    %v3217 = vadd.f32 %v3085, %v3186
    %v3218 = vadd.f32 %v3108, %v3209
    %v3219 = vadd.f32 %v2900, %v3211
    %v3220 = vadd.f32 %v2901, %v3212
    %v3221 = vadd.f32 %v2902, %v3213
    %v3222 = vadd.f32 %v2903, %v3214
    %v3223 = vadd.f32 %v2904, %v3215
    %v3224 = vadd.f32 %v2905, %v3216
    %v3225 = vadd.f32 %v2906, %v3217
    %v3226 = vadd.f32 %v2907, %v3218
    %3227 = vrot.lane.b32.xlu0 %v2477, 112
    %v3228 = vpop.permute.xlu0 %3227
    %3229 = vrot.lane.b32.xlu0 %v2481, 112
    %v3230 = vpop.permute.xlu0 %3229
    %3231 = vrot.lane.b32.xlu0 %v2478, 112
    %v3232 = vpop.permute.xlu0 %3231
    %3233 = vrot.lane.b32.xlu0 %v2482, 112
    %v3234 = vpop.permute.xlu0 %3233
    %3235 = vrot.lane.b32.xlu0 %v2479, 112
    %v3236 = vpop.permute.xlu0 %3235
    %3237 = vrot.lane.b32.xlu0 %v2483, 112
    %v3238 = vpop.permute.xlu0 %3237
    %3239 = vrot.lane.b32.xlu0 %v2480, 112
    %v3240 = vpop.permute.xlu0 %3239
    %3241 = vrot.lane.b32.xlu0 %v2484, 112
    %v3242 = vpop.permute.xlu0 %3241
    %v3243 = vsel %vm798, %v3236, %v3240
    %v3244 = vsel %vm798, %v3238, %v3242
    %v3245 = vsel %vm798, %v3232, %v3236
    %v3246 = vsel %vm798, %v3234, %v3238
    %v3247 = vsel %vm798, %v3228, %v3232
    %v3248 = vsel %vm798, %v3230, %v3234
    %v3249 = vsel %vm798, %v3240, %v3228
    %v3250 = vsel %vm798, %v3242, %v3230
    %s3251 = scalar_lea.vmem %s2, 240
    %v3252 = vld [vmem:[%s3251] sm:$0xff]
    %v3253 = vld [vmem:[%s3251 + $0x8] sm:$0xff]
    %3254 = vrot.lane.b32.xlu0 %v2442, 112
    %v3255 = vpop.permute.xlu0 %3254
    %3256 = vrot.lane.b32.xlu0 %v2446, 112
    %v3257 = vpop.permute.xlu0 %3256
    %3258 = vrot.lane.b32.xlu0 %v2443, 112
    %v3259 = vpop.permute.xlu0 %3258
    %3260 = vrot.lane.b32.xlu0 %v2447, 112
    %v3261 = vpop.permute.xlu0 %3260
    %3262 = vrot.lane.b32.xlu0 %v2444, 112
    %v3263 = vpop.permute.xlu0 %3262
    %3264 = vrot.lane.b32.xlu0 %v2448, 112
    %v3265 = vpop.permute.xlu0 %3264
    %3266 = vrot.lane.b32.xlu0 %v2445, 112
    %v3267 = vpop.permute.xlu0 %3266
    %3268 = vrot.lane.b32.xlu0 %v2449, 112
    %v3269 = vpop.permute.xlu0 %3268
    %v3270 = vsel %vm798, %v3263, %v3267
    %v3271 = vsel %vm798, %v3265, %v3269
    %v3272 = vsel %vm798, %v3259, %v3263
    %v3273 = vsel %vm798, %v3261, %v3265
    %v3274 = vsel %vm798, %v3255, %v3259
    %v3275 = vsel %vm798, %v3257, %v3261
    %v3276 = vsel %vm798, %v3267, %v3255
    %v3277 = vsel %vm798, %v3269, %v3257
    %s3278 = scalar_lea.vmem %s2, 256
    %v3279 = vld [vmem:[%s3278] sm:$0xff]
    %v3280 = vld [vmem:[%s3278 + $0x8] sm:$0xff]
    %v3282 = vsel %vm1339, %v3279, 0
    %v3285 = vsel %vm1339, %v3280, 0
    %3287 = vmatpush.msra.mxu0 0.0
    %3288 = vmatpush.msra.mxu0 0.0
    %3289 = vmatpush.msra.mxu0 0.0
    %3290 = vmatpush.msra.mxu0 0.0
    %3291 = vmatpush.msra.mxu0 0.0
    %3292 = vmatpush.msra.mxu0 0.0
    %3293 = vmatpush.msra.mxu0 0.0
    %3294 = vmatpush.msra.mxu0 0.0
    %3295 = vmatpush.msra.mxu0 0.0
    %3296 = vmatpush.msra.mxu0 0.0
    %3297 = vmatpush.msra.mxu0 0.0
    %3298 = vmatpush.msra.mxu0 0.0
    %3299 = vmatpush.msra.mxu0 0.0
    %3300 = vmatpush.msra.mxu0 0.0
    %3301 = vmatpush.msra.mxu0 %v3275
    %3302 = vmatpush.msra.mxu0 %v3274
    %3303 = vmatmul.f32.gmra.mxu0 %v3282
    %v3304 = vpop.f32.mrf.mxu0
    %v3305 = vadd.f32 0.0, %v3304
    %3306 = vmatmul.f32.gmra.mxu0 %v3285
    %v3307 = vpop.f32.mrf.mxu0
    %v3308 = vadd.f32 0.0, %v3307
    %3309 = vdwg.mxu0
    %3310 = vmatpush.msra.mxu0 0.0
    %3311 = vmatpush.msra.mxu0 0.0
    %3312 = vmatpush.msra.mxu0 0.0
    %3313 = vmatpush.msra.mxu0 0.0
    %3314 = vmatpush.msra.mxu0 0.0
    %3315 = vmatpush.msra.mxu0 0.0
    %3316 = vmatpush.msra.mxu0 0.0
    %3317 = vmatpush.msra.mxu0 0.0
    %3318 = vmatpush.msra.mxu0 0.0
    %3319 = vmatpush.msra.mxu0 0.0
    %3320 = vmatpush.msra.mxu0 0.0
    %3321 = vmatpush.msra.mxu0 0.0
    %3322 = vmatpush.msra.mxu0 0.0
    %3323 = vmatpush.msra.mxu0 0.0
    %3324 = vmatpush.msra.mxu0 %v3273
    %3325 = vmatpush.msra.mxu0 %v3272
    %3326 = vmatmul.f32.gmra.mxu0 %v3282
    %v3327 = vpop.f32.mrf.mxu0
    %v3328 = vadd.f32 0.0, %v3327
    %3329 = vmatmul.f32.gmra.mxu0 %v3285
    %v3330 = vpop.f32.mrf.mxu0
    %v3331 = vadd.f32 0.0, %v3330
    %3332 = vdwg.mxu0
    %3333 = vmatpush.msra.mxu0 0.0
    %3334 = vmatpush.msra.mxu0 0.0
    %3335 = vmatpush.msra.mxu0 0.0
    %3336 = vmatpush.msra.mxu0 0.0
    %3337 = vmatpush.msra.mxu0 0.0
    %3338 = vmatpush.msra.mxu0 0.0
    %3339 = vmatpush.msra.mxu0 0.0
    %3340 = vmatpush.msra.mxu0 0.0
    %3341 = vmatpush.msra.mxu0 0.0
    %3342 = vmatpush.msra.mxu0 0.0
    %3343 = vmatpush.msra.mxu0 0.0
    %3344 = vmatpush.msra.mxu0 0.0
    %3345 = vmatpush.msra.mxu0 0.0
    %3346 = vmatpush.msra.mxu0 0.0
    %3347 = vmatpush.msra.mxu0 %v3271
    %3348 = vmatpush.msra.mxu0 %v3270
    %3349 = vmatmul.f32.gmra.mxu0 %v3282
    %v3350 = vpop.f32.mrf.mxu0
    %v3351 = vadd.f32 0.0, %v3350
    %3352 = vmatmul.f32.gmra.mxu0 %v3285
    %v3353 = vpop.f32.mrf.mxu0
    %v3354 = vadd.f32 0.0, %v3353
    %3355 = vdwg.mxu0
    %3356 = vmatpush.msra.mxu0 0.0
    %3357 = vmatpush.msra.mxu0 0.0
    %3358 = vmatpush.msra.mxu0 0.0
    %3359 = vmatpush.msra.mxu0 0.0
    %3360 = vmatpush.msra.mxu0 0.0
    %3361 = vmatpush.msra.mxu0 0.0
    %3362 = vmatpush.msra.mxu0 0.0
    %3363 = vmatpush.msra.mxu0 0.0
    %3364 = vmatpush.msra.mxu0 0.0
    %3365 = vmatpush.msra.mxu0 0.0
    %3366 = vmatpush.msra.mxu0 0.0
    %3367 = vmatpush.msra.mxu0 0.0
    %3368 = vmatpush.msra.mxu0 0.0
    %3369 = vmatpush.msra.mxu0 0.0
    %3370 = vmatpush.msra.mxu0 %v3277
    %3371 = vmatpush.msra.mxu0 %v3276
    %3372 = vmatmul.f32.gmra.mxu0 %v3282
    %v3373 = vpop.f32.mrf.mxu0
    %v3374 = vadd.f32 0.0, %v3373
    %3375 = vmatmul.f32.gmra.mxu0 %v3285
    %v3376 = vpop.f32.mrf.mxu0
    %v3377 = vadd.f32 0.0, %v3376
    %3378 = vdwg.mxu0
    %v3380 = vsel %vm1339, %v3252, 0
    %v3383 = vsel %vm1339, %v3253, 0
    %3385 = vmatpush.msra.mxu0 0.0
    %3386 = vmatpush.msra.mxu0 0.0
    %3387 = vmatpush.msra.mxu0 0.0
    %3388 = vmatpush.msra.mxu0 0.0
    %3389 = vmatpush.msra.mxu0 0.0
    %3390 = vmatpush.msra.mxu0 0.0
    %3391 = vmatpush.msra.mxu0 0.0
    %3392 = vmatpush.msra.mxu0 0.0
    %3393 = vmatpush.msra.mxu0 0.0
    %3394 = vmatpush.msra.mxu0 0.0
    %3395 = vmatpush.msra.mxu0 0.0
    %3396 = vmatpush.msra.mxu0 0.0
    %3397 = vmatpush.msra.mxu0 0.0
    %3398 = vmatpush.msra.mxu0 0.0
    %3399 = vmatpush.msra.mxu0 %v3248
    %3400 = vmatpush.msra.mxu0 %v3247
    %3401 = vmatmul.f32.gmra.mxu0 %v3380
    %v3402 = vpop.f32.mrf.mxu0
    %v3403 = vadd.f32 %v3305, %v3402
    %3404 = vmatmul.f32.gmra.mxu0 %v3383
    %v3405 = vpop.f32.mrf.mxu0
    %v3406 = vadd.f32 %v3308, %v3405
    %3407 = vdwg.mxu0
    %3408 = vmatpush.msra.mxu0 0.0
    %3409 = vmatpush.msra.mxu0 0.0
    %3410 = vmatpush.msra.mxu0 0.0
    %3411 = vmatpush.msra.mxu0 0.0
    %3412 = vmatpush.msra.mxu0 0.0
    %3413 = vmatpush.msra.mxu0 0.0
    %3414 = vmatpush.msra.mxu0 0.0
    %3415 = vmatpush.msra.mxu0 0.0
    %3416 = vmatpush.msra.mxu0 0.0
    %3417 = vmatpush.msra.mxu0 0.0
    %3418 = vmatpush.msra.mxu0 0.0
    %3419 = vmatpush.msra.mxu0 0.0
    %3420 = vmatpush.msra.mxu0 0.0
    %3421 = vmatpush.msra.mxu0 0.0
    %3422 = vmatpush.msra.mxu0 %v3246
    %3423 = vmatpush.msra.mxu0 %v3245
    %3424 = vmatmul.f32.gmra.mxu0 %v3380
    %v3425 = vpop.f32.mrf.mxu0
    %v3426 = vadd.f32 %v3328, %v3425
    %3427 = vmatmul.f32.gmra.mxu0 %v3383
    %v3428 = vpop.f32.mrf.mxu0
    %v3429 = vadd.f32 %v3331, %v3428
    %3430 = vdwg.mxu0
    %3431 = vmatpush.msra.mxu0 0.0
    %3432 = vmatpush.msra.mxu0 0.0
    %3433 = vmatpush.msra.mxu0 0.0
    %3434 = vmatpush.msra.mxu0 0.0
    %3435 = vmatpush.msra.mxu0 0.0
    %3436 = vmatpush.msra.mxu0 0.0
    %3437 = vmatpush.msra.mxu0 0.0
    %3438 = vmatpush.msra.mxu0 0.0
    %3439 = vmatpush.msra.mxu0 0.0
    %3440 = vmatpush.msra.mxu0 0.0
    %3441 = vmatpush.msra.mxu0 0.0
    %3442 = vmatpush.msra.mxu0 0.0
    %3443 = vmatpush.msra.mxu0 0.0
    %3444 = vmatpush.msra.mxu0 0.0
    %3445 = vmatpush.msra.mxu0 %v3244
    %3446 = vmatpush.msra.mxu0 %v3243
    %3447 = vmatmul.f32.gmra.mxu0 %v3380
    %v3448 = vpop.f32.mrf.mxu0
    %v3449 = vadd.f32 %v3351, %v3448
    %3450 = vmatmul.f32.gmra.mxu0 %v3383
    %v3451 = vpop.f32.mrf.mxu0
    %v3452 = vadd.f32 %v3354, %v3451
    %3453 = vdwg.mxu0
    %3454 = vmatpush.msra.mxu0 0.0
    %3455 = vmatpush.msra.mxu0 0.0
    %3456 = vmatpush.msra.mxu0 0.0
    %3457 = vmatpush.msra.mxu0 0.0
    %3458 = vmatpush.msra.mxu0 0.0
    %3459 = vmatpush.msra.mxu0 0.0
    %3460 = vmatpush.msra.mxu0 0.0
    %3461 = vmatpush.msra.mxu0 0.0
    %3462 = vmatpush.msra.mxu0 0.0
    %3463 = vmatpush.msra.mxu0 0.0
    %3464 = vmatpush.msra.mxu0 0.0
    %3465 = vmatpush.msra.mxu0 0.0
    %3466 = vmatpush.msra.mxu0 0.0
    %3467 = vmatpush.msra.mxu0 0.0
    %3468 = vmatpush.msra.mxu0 %v3250
    %3469 = vmatpush.msra.mxu0 %v3249
    %3470 = vmatmul.f32.gmra.mxu0 %v3380
    %v3471 = vpop.f32.mrf.mxu0
    %v3472 = vadd.f32 %v3374, %v3471
    %3473 = vmatmul.f32.gmra.mxu0 %v3383
    %v3474 = vpop.f32.mrf.mxu0
    %v3475 = vadd.f32 %v3377, %v3474
    %3476 = vdwg.mxu0
    %3477 = vrot.lane.b32.xlu0 %v2509, 112
    %v3478 = vpop.permute.xlu0 %3477
    %3479 = vrot.lane.b32.xlu0 %v2513, 112
    %v3480 = vpop.permute.xlu0 %3479
    %3481 = vrot.lane.b32.xlu0 %v2510, 112
    %v3482 = vpop.permute.xlu0 %3481
    %3483 = vrot.lane.b32.xlu0 %v2514, 112
    %v3484 = vpop.permute.xlu0 %3483
    %3485 = vrot.lane.b32.xlu0 %v2511, 112
    %v3486 = vpop.permute.xlu0 %3485
    %3487 = vrot.lane.b32.xlu0 %v2515, 112
    %v3488 = vpop.permute.xlu0 %3487
    %3489 = vrot.lane.b32.xlu0 %v2512, 112
    %v3490 = vpop.permute.xlu0 %3489
    %3491 = vrot.lane.b32.xlu0 %v2516, 112
    %v3492 = vpop.permute.xlu0 %3491
    %v3493 = vsel %vm798, %v3486, %v3490
    %v3494 = vsel %vm798, %v3488, %v3492
    %v3495 = vsel %vm798, %v3482, %v3486
    %v3496 = vsel %vm798, %v3484, %v3488
    %v3497 = vsel %vm798, %v3478, %v3482
    %v3498 = vsel %vm798, %v3480, %v3484
    %v3499 = vsel %vm798, %v3490, %v3478
    %v3500 = vsel %vm798, %v3492, %v3480
    %s3501 = scalar_lea.vmem %s2, 272
    %v3502 = vld [vmem:[%s3501] sm:$0xff]
    %v3503 = vld [vmem:[%s3501 + $0x8] sm:$0xff]
    %v3505 = vsel %vm1339, %v3502, 0
    %v3508 = vsel %vm1339, %v3503, 0
    %3510 = vmatpush.msra.mxu0 0.0
    %3511 = vmatpush.msra.mxu0 0.0
    %3512 = vmatpush.msra.mxu0 0.0
    %3513 = vmatpush.msra.mxu0 0.0
    %3514 = vmatpush.msra.mxu0 0.0
    %3515 = vmatpush.msra.mxu0 0.0
    %3516 = vmatpush.msra.mxu0 0.0
    %3517 = vmatpush.msra.mxu0 0.0
    %3518 = vmatpush.msra.mxu0 0.0
    %3519 = vmatpush.msra.mxu0 0.0
    %3520 = vmatpush.msra.mxu0 0.0
    %3521 = vmatpush.msra.mxu0 0.0
    %3522 = vmatpush.msra.mxu0 0.0
    %3523 = vmatpush.msra.mxu0 0.0
    %3524 = vmatpush.msra.mxu0 %v3498
    %3525 = vmatpush.msra.mxu0 %v3497
    %3526 = vmatmul.f32.gmra.mxu0 %v3505
    %v3527 = vpop.f32.mrf.mxu0
    %v3528 = vadd.f32 0.0, %v3527
    %3529 = vmatmul.f32.gmra.mxu0 %v3508
    %v3530 = vpop.f32.mrf.mxu0
    %v3531 = vadd.f32 0.0, %v3530
    %3532 = vdwg.mxu0
    %3533 = vmatpush.msra.mxu0 0.0
    %3534 = vmatpush.msra.mxu0 0.0
    %3535 = vmatpush.msra.mxu0 0.0
    %3536 = vmatpush.msra.mxu0 0.0
    %3537 = vmatpush.msra.mxu0 0.0
    %3538 = vmatpush.msra.mxu0 0.0
    %3539 = vmatpush.msra.mxu0 0.0
    %3540 = vmatpush.msra.mxu0 0.0
    %3541 = vmatpush.msra.mxu0 0.0
    %3542 = vmatpush.msra.mxu0 0.0
    %3543 = vmatpush.msra.mxu0 0.0
    %3544 = vmatpush.msra.mxu0 0.0
    %3545 = vmatpush.msra.mxu0 0.0
    %3546 = vmatpush.msra.mxu0 0.0
    %3547 = vmatpush.msra.mxu0 %v3496
    %3548 = vmatpush.msra.mxu0 %v3495
    %3549 = vmatmul.f32.gmra.mxu0 %v3505
    %v3550 = vpop.f32.mrf.mxu0
    %v3551 = vadd.f32 0.0, %v3550
    %3552 = vmatmul.f32.gmra.mxu0 %v3508
    %v3553 = vpop.f32.mrf.mxu0
    %v3554 = vadd.f32 0.0, %v3553
    %3555 = vdwg.mxu0
    %3556 = vmatpush.msra.mxu0 0.0
    %3557 = vmatpush.msra.mxu0 0.0
    %3558 = vmatpush.msra.mxu0 0.0
    %3559 = vmatpush.msra.mxu0 0.0
    %3560 = vmatpush.msra.mxu0 0.0
    %3561 = vmatpush.msra.mxu0 0.0
    %3562 = vmatpush.msra.mxu0 0.0
    %3563 = vmatpush.msra.mxu0 0.0
    %3564 = vmatpush.msra.mxu0 0.0
    %3565 = vmatpush.msra.mxu0 0.0
    %3566 = vmatpush.msra.mxu0 0.0
    %3567 = vmatpush.msra.mxu0 0.0
    %3568 = vmatpush.msra.mxu0 0.0
    %3569 = vmatpush.msra.mxu0 0.0
    %3570 = vmatpush.msra.mxu0 %v3494
    %3571 = vmatpush.msra.mxu0 %v3493
    %3572 = vmatmul.f32.gmra.mxu0 %v3505
    %v3573 = vpop.f32.mrf.mxu0
    %v3574 = vadd.f32 0.0, %v3573
    %3575 = vmatmul.f32.gmra.mxu0 %v3508
    %v3576 = vpop.f32.mrf.mxu0
    %v3577 = vadd.f32 0.0, %v3576
    %3578 = vdwg.mxu0
    %3579 = vmatpush.msra.mxu0 0.0
    %3580 = vmatpush.msra.mxu0 0.0
    %3581 = vmatpush.msra.mxu0 0.0
    %3582 = vmatpush.msra.mxu0 0.0
    %3583 = vmatpush.msra.mxu0 0.0
    %3584 = vmatpush.msra.mxu0 0.0
    %3585 = vmatpush.msra.mxu0 0.0
    %3586 = vmatpush.msra.mxu0 0.0
    %3587 = vmatpush.msra.mxu0 0.0
    %3588 = vmatpush.msra.mxu0 0.0
    %3589 = vmatpush.msra.mxu0 0.0
    %3590 = vmatpush.msra.mxu0 0.0
    %3591 = vmatpush.msra.mxu0 0.0
    %3592 = vmatpush.msra.mxu0 0.0
    %3593 = vmatpush.msra.mxu0 %v3500
    %3594 = vmatpush.msra.mxu0 %v3499
    %3595 = vmatmul.f32.gmra.mxu0 %v3505
    %v3596 = vpop.f32.mrf.mxu0
    %v3597 = vadd.f32 0.0, %v3596
    %3598 = vmatmul.f32.gmra.mxu0 %v3508
    %v3599 = vpop.f32.mrf.mxu0
    %v3600 = vadd.f32 0.0, %v3599
    %3601 = vdwg.mxu0
    %v3602 = vadd.f32 %v3403, %v3528
    %v3603 = vadd.f32 %v3426, %v3551
    %v3604 = vadd.f32 %v3449, %v3574
    %v3605 = vadd.f32 %v3472, %v3597
    %v3606 = vadd.f32 %v3406, %v3531
    %v3607 = vadd.f32 %v3429, %v3554
    %v3608 = vadd.f32 %v3452, %v3577
    %v3609 = vadd.f32 %v3475, %v3600
    %v3610 = vmul.f32 %v3602, %v1146
    %v3611 = vmul.f32 %v3603, %v1147
    %v3612 = vmul.f32 %v3604, %v1148
    %v3613 = vmul.f32 %v3605, %v1149
    %v3614 = vmul.f32 %v3606, %v1146
    %v3615 = vmul.f32 %v3607, %v1147
    %v3616 = vmul.f32 %v3608, %v1148
    %v3617 = vmul.f32 %v3609, %v1149
    %v3618 = vadd.f32 %v3219, %v3610
    %v3619 = vadd.f32 %v3220, %v3611
    %v3620 = vadd.f32 %v3221, %v3612
    %v3621 = vadd.f32 %v3222, %v3613
    %v3622 = vadd.f32 %v3223, %v3614
    %v3623 = vadd.f32 %v3224, %v3615
    %v3624 = vadd.f32 %v3225, %v3616
    %v3625 = vadd.f32 %v3226, %v3617
    %3627 = vset.pattern.permute.xlu0 0
    %3628 = vperm.xlu0 %3627, %v2451
    %v3629 = vpop.permute.xlu0 %3628
    %3632 = vset.pattern.permute.xlu0 0
    %3633 = vperm.xlu0 %3632, %v2452
    %v3634 = vpop.permute.xlu0 %3633
    %v3636 = vadd.f32 %v3618, %v3629
    %v3637 = vadd.f32 %v3619, %v3629
    %v3638 = vadd.f32 %v3620, %v3629
    %v3639 = vadd.f32 %v3621, %v3629
    %v3640 = vadd.f32 %v3622, %v3634
    %v3641 = vadd.f32 %v3623, %v3634
    %v3642 = vadd.f32 %v3624, %v3634
    %v3643 = vadd.f32 %v3625, %v3634
    %s3644 = scalar_lea.vmem %s7, 32
    %v3645 = vld [vmem:[%s3644] sm:$0xff]
    %v3646 = vld [vmem:[%s3644 + $0x8] sm:$0xff]
    %vm3647 = vcmp.ge.f32.partialorder %v3636, 0.0
    %vm3648 = vcmp.ge.f32.partialorder %v3637, 0.0
    %vm3649 = vcmp.ge.f32.partialorder %v3638, 0.0
    %vm3650 = vcmp.ge.f32.partialorder %v3639, 0.0
    %vm3651 = vcmp.ge.f32.partialorder %v3640, 0.0
    %vm3652 = vcmp.ge.f32.partialorder %v3641, 0.0
    %vm3653 = vcmp.ge.f32.partialorder %v3642, 0.0
    %vm3654 = vcmp.ge.f32.partialorder %v3643, 0.0
    %3656 = vset.pattern.permute.xlu0 0
    %3657 = vperm.xlu0 %3656, %v3645
    %v3658 = vpop.permute.xlu0 %3657
    %3661 = vset.pattern.permute.xlu0 0
    %3662 = vperm.xlu0 %3661, %v3646
    %v3663 = vpop.permute.xlu0 %3662
    %v3665 = vmul.f32 %v3658, %v3636
    %v3666 = vmul.f32 %v3658, %v3637
    %v3667 = vmul.f32 %v3658, %v3638
    %v3668 = vmul.f32 %v3658, %v3639
    %v3669 = vmul.f32 %v3663, %v3640
    %v3670 = vmul.f32 %v3663, %v3641
    %v3671 = vmul.f32 %v3663, %v3642
    %v3672 = vmul.f32 %v3663, %v3643
    %v3673 = vsel %vm3647, %v3636, %v3665
    %v3674 = vsel %vm3648, %v3637, %v3666
    %v3675 = vsel %vm3649, %v3638, %v3667
    %v3676 = vsel %vm3650, %v3639, %v3668
    %v3677 = vsel %vm3651, %v3640, %v3669
    %v3678 = vsel %vm3652, %v3641, %v3670
    %v3679 = vsel %vm3653, %v3642, %v3671
    %v3680 = vsel %vm3654, %v3643, %v3672
    %v3681 = vld [vmem:[%s6] sm:$0xff]
    %3682 = vrot.lane.b32.xlu0 %v3673, 1
    %v3683 = vpop.permute.xlu0 %3682
    %3684 = vrot.lane.b32.xlu0 %v3677, 1
    %v3685 = vpop.permute.xlu0 %3684
    %3686 = vrot.lane.b32.xlu0 %v3674, 1
    %v3687 = vpop.permute.xlu0 %3686
    %3688 = vrot.lane.b32.xlu0 %v3678, 1
    %v3689 = vpop.permute.xlu0 %3688
    %3690 = vrot.lane.b32.xlu0 %v3675, 1
    %v3691 = vpop.permute.xlu0 %3690
    %3692 = vrot.lane.b32.xlu0 %v3679, 1
    %v3693 = vpop.permute.xlu0 %3692
    %3694 = vrot.lane.b32.xlu0 %v3676, 1
    %v3695 = vpop.permute.xlu0 %3694
    %3696 = vrot.lane.b32.xlu0 %v3680, 1
    %v3697 = vpop.permute.xlu0 %3696
    %v3698 = vsel %vm51, %v3691, %v3695
    %v3699 = vsel %vm51, %v3693, %v3697
    %v3700 = vsel %vm51, %v3687, %v3691
    %v3701 = vsel %vm51, %v3689, %v3693
    %v3702 = vsel %vm51, %v3683, %v3687
    %v3703 = vsel %vm51, %v3685, %v3689
    %v3704 = vsel %vm51, %v3695, %v3683
    %v3705 = vsel %vm51, %v3697, %v3685
    %v3706 = vmul.f32 %v3704, %v66
    %v3707 = vmul.f32 %v3702, %v67
    %v3708 = vmul.f32 %v3700, %v68
    %v3709 = vmul.f32 %v3698, %v69
    %v3710 = vmul.f32 %v3705, %v66
    %v3711 = vmul.f32 %v3703, %v67
    %v3712 = vmul.f32 %v3701, %v68
    %v3713 = vmul.f32 %v3699, %v69
    %3714 = vrot.lane.b32.xlu0 %v3673, 127
    %v3715 = vpop.permute.xlu0 %3714
    %3716 = vrot.lane.b32.xlu0 %v3677, 127
    %v3717 = vpop.permute.xlu0 %3716
    %3718 = vrot.lane.b32.xlu0 %v3674, 127
    %v3719 = vpop.permute.xlu0 %3718
    %3720 = vrot.lane.b32.xlu0 %v3678, 127
    %v3721 = vpop.permute.xlu0 %3720
    %3722 = vrot.lane.b32.xlu0 %v3675, 127
    %v3723 = vpop.permute.xlu0 %3722
    %3724 = vrot.lane.b32.xlu0 %v3679, 127
    %v3725 = vpop.permute.xlu0 %3724
    %3726 = vrot.lane.b32.xlu0 %v3676, 127
    %v3727 = vpop.permute.xlu0 %3726
    %3728 = vrot.lane.b32.xlu0 %v3680, 127
    %v3729 = vpop.permute.xlu0 %3728
    %v3730 = vsel %vm82, %v3723, %v3727
    %v3731 = vsel %vm82, %v3725, %v3729
    %v3732 = vsel %vm82, %v3719, %v3723
    %v3733 = vsel %vm82, %v3721, %v3725
    %v3734 = vsel %vm82, %v3715, %v3719
    %v3735 = vsel %vm82, %v3717, %v3721
    %v3736 = vsel %vm82, %v3727, %v3715
    %v3737 = vsel %vm82, %v3729, %v3717
    %v3738 = vmul.f32 %v3734, %v95
    %v3739 = vmul.f32 %v3732, %v96
    %v3740 = vmul.f32 %v3730, %v97
    %v3741 = vmul.f32 %v3736, %v98
    %v3742 = vmul.f32 %v3735, %v95
    %v3743 = vmul.f32 %v3733, %v96
    %v3744 = vmul.f32 %v3731, %v97
    %v3745 = vmul.f32 %v3737, %v98
    %3746 = vrot.lane.b32.xlu0 %v3706, 16
    %v3747 = vpop.permute.xlu0 %3746
    %3748 = vrot.lane.b32.xlu0 %v3710, 16
    %v3749 = vpop.permute.xlu0 %3748
    %3750 = vrot.lane.b32.xlu0 %v3707, 16
    %v3751 = vpop.permute.xlu0 %3750
    %3752 = vrot.lane.b32.xlu0 %v3711, 16
    %v3753 = vpop.permute.xlu0 %3752
    %3754 = vrot.lane.b32.xlu0 %v3708, 16
    %v3755 = vpop.permute.xlu0 %3754
    %3756 = vrot.lane.b32.xlu0 %v3712, 16
    %v3757 = vpop.permute.xlu0 %3756
    %3758 = vrot.lane.b32.xlu0 %v3709, 16
    %v3759 = vpop.permute.xlu0 %3758
    %3760 = vrot.lane.b32.xlu0 %v3713, 16
    %v3761 = vpop.permute.xlu0 %3760
    %v3762 = vsel %vm111, %v3755, %v3759
    %v3763 = vsel %vm111, %v3757, %v3761
    %v3764 = vsel %vm111, %v3751, %v3755
    %v3765 = vsel %vm111, %v3753, %v3757
    %v3766 = vsel %vm111, %v3747, %v3751
    %v3767 = vsel %vm111, %v3749, %v3753
    %v3768 = vsel %vm111, %v3759, %v3747
    %v3769 = vsel %vm111, %v3761, %v3749
    %v3770 = vld [vmem:[%s3] sm:$0xff]
    %3771 = vrot.lane.b32.xlu0 %v3673, 16
    %v3772 = vpop.permute.xlu0 %3771
    %3773 = vrot.lane.b32.xlu0 %v3677, 16
    %v3774 = vpop.permute.xlu0 %3773
    %3775 = vrot.lane.b32.xlu0 %v3674, 16
    %v3776 = vpop.permute.xlu0 %3775
    %3777 = vrot.lane.b32.xlu0 %v3678, 16
    %v3778 = vpop.permute.xlu0 %3777
    %3779 = vrot.lane.b32.xlu0 %v3675, 16
    %v3780 = vpop.permute.xlu0 %3779
    %3781 = vrot.lane.b32.xlu0 %v3679, 16
    %v3782 = vpop.permute.xlu0 %3781
    %3783 = vrot.lane.b32.xlu0 %v3676, 16
    %v3784 = vpop.permute.xlu0 %3783
    %3785 = vrot.lane.b32.xlu0 %v3680, 16
    %v3786 = vpop.permute.xlu0 %3785
    %v3787 = vsel %vm111, %v3780, %v3784
    %v3788 = vsel %vm111, %v3782, %v3786
    %v3789 = vsel %vm111, %v3776, %v3780
    %v3790 = vsel %vm111, %v3778, %v3782
    %v3791 = vsel %vm111, %v3772, %v3776
    %v3792 = vsel %vm111, %v3774, %v3778
    %v3793 = vsel %vm111, %v3784, %v3772
    %v3794 = vsel %vm111, %v3786, %v3774
    %s3795 = scalar_lea.vmem %s3, 8
    %v3796 = vld [vmem:[%s3795] sm:$0xff]
    %v3798 = vsel %vm1339, %v3796, 0
    %3800 = vmatpush.msra.mxu0 0.0
    %3801 = vmatpush.msra.mxu0 0.0
    %3802 = vmatpush.msra.mxu0 0.0
    %3803 = vmatpush.msra.mxu0 0.0
    %3804 = vmatpush.msra.mxu0 0.0
    %3805 = vmatpush.msra.mxu0 0.0
    %3806 = vmatpush.msra.mxu0 0.0
    %3807 = vmatpush.msra.mxu0 0.0
    %3808 = vmatpush.msra.mxu0 0.0
    %3809 = vmatpush.msra.mxu0 0.0
    %3810 = vmatpush.msra.mxu0 0.0
    %3811 = vmatpush.msra.mxu0 0.0
    %3812 = vmatpush.msra.mxu0 0.0
    %3813 = vmatpush.msra.mxu0 0.0
    %3814 = vmatpush.msra.mxu0 %v3794
    %3815 = vmatpush.msra.mxu0 %v3793
    %3816 = vmatmul.f32.gmra.mxu0 %v3798
    %v3817 = vpop.f32.mrf.mxu0
    %v3818 = vadd.f32 0.0, %v3817
    %3819 = vdwg.mxu0
    %3820 = vmatpush.msra.mxu0 0.0
    %3821 = vmatpush.msra.mxu0 0.0
    %3822 = vmatpush.msra.mxu0 0.0
    %3823 = vmatpush.msra.mxu0 0.0
    %3824 = vmatpush.msra.mxu0 0.0
    %3825 = vmatpush.msra.mxu0 0.0
    %3826 = vmatpush.msra.mxu0 0.0
    %3827 = vmatpush.msra.mxu0 0.0
    %3828 = vmatpush.msra.mxu0 0.0
    %3829 = vmatpush.msra.mxu0 0.0
    %3830 = vmatpush.msra.mxu0 0.0
    %3831 = vmatpush.msra.mxu0 0.0
    %3832 = vmatpush.msra.mxu0 0.0
    %3833 = vmatpush.msra.mxu0 0.0
    %3834 = vmatpush.msra.mxu0 %v3792
    %3835 = vmatpush.msra.mxu0 %v3791
    %3836 = vmatmul.f32.gmra.mxu0 %v3798
    %v3837 = vpop.f32.mrf.mxu0
    %v3838 = vadd.f32 0.0, %v3837
    %3839 = vdwg.mxu0
    %3840 = vmatpush.msra.mxu0 0.0
    %3841 = vmatpush.msra.mxu0 0.0
    %3842 = vmatpush.msra.mxu0 0.0
    %3843 = vmatpush.msra.mxu0 0.0
    %3844 = vmatpush.msra.mxu0 0.0
    %3845 = vmatpush.msra.mxu0 0.0
    %3846 = vmatpush.msra.mxu0 0.0
    %3847 = vmatpush.msra.mxu0 0.0
    %3848 = vmatpush.msra.mxu0 0.0
    %3849 = vmatpush.msra.mxu0 0.0
    %3850 = vmatpush.msra.mxu0 0.0
    %3851 = vmatpush.msra.mxu0 0.0
    %3852 = vmatpush.msra.mxu0 0.0
    %3853 = vmatpush.msra.mxu0 0.0
    %3854 = vmatpush.msra.mxu0 %v3790
    %3855 = vmatpush.msra.mxu0 %v3789
    %3856 = vmatmul.f32.gmra.mxu0 %v3798
    %v3857 = vpop.f32.mrf.mxu0
    %v3858 = vadd.f32 0.0, %v3857
    %3859 = vdwg.mxu0
    %3860 = vmatpush.msra.mxu0 0.0
    %3861 = vmatpush.msra.mxu0 0.0
    %3862 = vmatpush.msra.mxu0 0.0
    %3863 = vmatpush.msra.mxu0 0.0
    %3864 = vmatpush.msra.mxu0 0.0
    %3865 = vmatpush.msra.mxu0 0.0
    %3866 = vmatpush.msra.mxu0 0.0
    %3867 = vmatpush.msra.mxu0 0.0
    %3868 = vmatpush.msra.mxu0 0.0
    %3869 = vmatpush.msra.mxu0 0.0
    %3870 = vmatpush.msra.mxu0 0.0
    %3871 = vmatpush.msra.mxu0 0.0
    %3872 = vmatpush.msra.mxu0 0.0
    %3873 = vmatpush.msra.mxu0 0.0
    %3874 = vmatpush.msra.mxu0 %v3788
    %3875 = vmatpush.msra.mxu0 %v3787
    %3876 = vmatmul.f32.gmra.mxu0 %v3798
    %v3877 = vpop.f32.mrf.mxu0
    %v3878 = vadd.f32 0.0, %v3877
    %3879 = vdwg.mxu0
    %v3881 = vsel %vm1339, %v3770, 0
    %3883 = vmatpush.msra.mxu0 0.0
    %3884 = vmatpush.msra.mxu0 0.0
    %3885 = vmatpush.msra.mxu0 0.0
    %3886 = vmatpush.msra.mxu0 0.0
    %3887 = vmatpush.msra.mxu0 0.0
    %3888 = vmatpush.msra.mxu0 0.0
    %3889 = vmatpush.msra.mxu0 0.0
    %3890 = vmatpush.msra.mxu0 0.0
    %3891 = vmatpush.msra.mxu0 0.0
    %3892 = vmatpush.msra.mxu0 0.0
    %3893 = vmatpush.msra.mxu0 0.0
    %3894 = vmatpush.msra.mxu0 0.0
    %3895 = vmatpush.msra.mxu0 0.0
    %3896 = vmatpush.msra.mxu0 0.0
    %3897 = vmatpush.msra.mxu0 %v3769
    %3898 = vmatpush.msra.mxu0 %v3768
    %3899 = vmatmul.f32.gmra.mxu0 %v3881
    %v3900 = vpop.f32.mrf.mxu0
    %v3901 = vadd.f32 %v3818, %v3900
    %3902 = vdwg.mxu0
    %3903 = vmatpush.msra.mxu0 0.0
    %3904 = vmatpush.msra.mxu0 0.0
    %3905 = vmatpush.msra.mxu0 0.0
    %3906 = vmatpush.msra.mxu0 0.0
    %3907 = vmatpush.msra.mxu0 0.0
    %3908 = vmatpush.msra.mxu0 0.0
    %3909 = vmatpush.msra.mxu0 0.0
    %3910 = vmatpush.msra.mxu0 0.0
    %3911 = vmatpush.msra.mxu0 0.0
    %3912 = vmatpush.msra.mxu0 0.0
    %3913 = vmatpush.msra.mxu0 0.0
    %3914 = vmatpush.msra.mxu0 0.0
    %3915 = vmatpush.msra.mxu0 0.0
    %3916 = vmatpush.msra.mxu0 0.0
    %3917 = vmatpush.msra.mxu0 %v3767
    %3918 = vmatpush.msra.mxu0 %v3766
    %3919 = vmatmul.f32.gmra.mxu0 %v3881
    %v3920 = vpop.f32.mrf.mxu0
    %v3921 = vadd.f32 %v3838, %v3920
    %3922 = vdwg.mxu0
    %3923 = vmatpush.msra.mxu0 0.0
    %3924 = vmatpush.msra.mxu0 0.0
    %3925 = vmatpush.msra.mxu0 0.0
    %3926 = vmatpush.msra.mxu0 0.0
    %3927 = vmatpush.msra.mxu0 0.0
    %3928 = vmatpush.msra.mxu0 0.0
    %3929 = vmatpush.msra.mxu0 0.0
    %3930 = vmatpush.msra.mxu0 0.0
    %3931 = vmatpush.msra.mxu0 0.0
    %3932 = vmatpush.msra.mxu0 0.0
    %3933 = vmatpush.msra.mxu0 0.0
    %3934 = vmatpush.msra.mxu0 0.0
    %3935 = vmatpush.msra.mxu0 0.0
    %3936 = vmatpush.msra.mxu0 0.0
    %3937 = vmatpush.msra.mxu0 %v3765
    %3938 = vmatpush.msra.mxu0 %v3764
    %3939 = vmatmul.f32.gmra.mxu0 %v3881
    %v3940 = vpop.f32.mrf.mxu0
    %v3941 = vadd.f32 %v3858, %v3940
    %3942 = vdwg.mxu0
    %3943 = vmatpush.msra.mxu0 0.0
    %3944 = vmatpush.msra.mxu0 0.0
    %3945 = vmatpush.msra.mxu0 0.0
    %3946 = vmatpush.msra.mxu0 0.0
    %3947 = vmatpush.msra.mxu0 0.0
    %3948 = vmatpush.msra.mxu0 0.0
    %3949 = vmatpush.msra.mxu0 0.0
    %3950 = vmatpush.msra.mxu0 0.0
    %3951 = vmatpush.msra.mxu0 0.0
    %3952 = vmatpush.msra.mxu0 0.0
    %3953 = vmatpush.msra.mxu0 0.0
    %3954 = vmatpush.msra.mxu0 0.0
    %3955 = vmatpush.msra.mxu0 0.0
    %3956 = vmatpush.msra.mxu0 0.0
    %3957 = vmatpush.msra.mxu0 %v3763
    %3958 = vmatpush.msra.mxu0 %v3762
    %3959 = vmatmul.f32.gmra.mxu0 %v3881
    %v3960 = vpop.f32.mrf.mxu0
    %v3961 = vadd.f32 %v3878, %v3960
    %3962 = vdwg.mxu0
    %3963 = vrot.lane.b32.xlu0 %v3738, 16
    %v3964 = vpop.permute.xlu0 %3963
    %3965 = vrot.lane.b32.xlu0 %v3742, 16
    %v3966 = vpop.permute.xlu0 %3965
    %3967 = vrot.lane.b32.xlu0 %v3739, 16
    %v3968 = vpop.permute.xlu0 %3967
    %3969 = vrot.lane.b32.xlu0 %v3743, 16
    %v3970 = vpop.permute.xlu0 %3969
    %3971 = vrot.lane.b32.xlu0 %v3740, 16
    %v3972 = vpop.permute.xlu0 %3971
    %3973 = vrot.lane.b32.xlu0 %v3744, 16
    %v3974 = vpop.permute.xlu0 %3973
    %3975 = vrot.lane.b32.xlu0 %v3741, 16
    %v3976 = vpop.permute.xlu0 %3975
    %3977 = vrot.lane.b32.xlu0 %v3745, 16
    %v3978 = vpop.permute.xlu0 %3977
    %v3979 = vsel %vm111, %v3972, %v3976
    %v3980 = vsel %vm111, %v3974, %v3978
    %v3981 = vsel %vm111, %v3968, %v3972
    %v3982 = vsel %vm111, %v3970, %v3974
    %v3983 = vsel %vm111, %v3964, %v3968
    %v3984 = vsel %vm111, %v3966, %v3970
    %v3985 = vsel %vm111, %v3976, %v3964
    %v3986 = vsel %vm111, %v3978, %v3966
    %s3987 = scalar_lea.vmem %s3, 16
    %v3988 = vld [vmem:[%s3987] sm:$0xff]
    %v3990 = vsel %vm1339, %v3988, 0
    %3992 = vmatpush.msra.mxu0 0.0
    %3993 = vmatpush.msra.mxu0 0.0
    %3994 = vmatpush.msra.mxu0 0.0
    %3995 = vmatpush.msra.mxu0 0.0
    %3996 = vmatpush.msra.mxu0 0.0
    %3997 = vmatpush.msra.mxu0 0.0
    %3998 = vmatpush.msra.mxu0 0.0
    %3999 = vmatpush.msra.mxu0 0.0
    %4000 = vmatpush.msra.mxu0 0.0
    %4001 = vmatpush.msra.mxu0 0.0
    %4002 = vmatpush.msra.mxu0 0.0
    %4003 = vmatpush.msra.mxu0 0.0
    %4004 = vmatpush.msra.mxu0 0.0
    %4005 = vmatpush.msra.mxu0 0.0
    %4006 = vmatpush.msra.mxu0 %v3986
    %4007 = vmatpush.msra.mxu0 %v3985
    %4008 = vmatmul.f32.gmra.mxu0 %v3990
    %v4009 = vpop.f32.mrf.mxu0
    %v4010 = vadd.f32 0.0, %v4009
    %4011 = vdwg.mxu0
    %4012 = vmatpush.msra.mxu0 0.0
    %4013 = vmatpush.msra.mxu0 0.0
    %4014 = vmatpush.msra.mxu0 0.0
    %4015 = vmatpush.msra.mxu0 0.0
    %4016 = vmatpush.msra.mxu0 0.0
    %4017 = vmatpush.msra.mxu0 0.0
    %4018 = vmatpush.msra.mxu0 0.0
    %4019 = vmatpush.msra.mxu0 0.0
    %4020 = vmatpush.msra.mxu0 0.0
    %4021 = vmatpush.msra.mxu0 0.0
    %4022 = vmatpush.msra.mxu0 0.0
    %4023 = vmatpush.msra.mxu0 0.0
    %4024 = vmatpush.msra.mxu0 0.0
    %4025 = vmatpush.msra.mxu0 0.0
    %4026 = vmatpush.msra.mxu0 %v3984
    %4027 = vmatpush.msra.mxu0 %v3983
    %4028 = vmatmul.f32.gmra.mxu0 %v3990
    %v4029 = vpop.f32.mrf.mxu0
    %v4030 = vadd.f32 0.0, %v4029
    %4031 = vdwg.mxu0
    %4032 = vmatpush.msra.mxu0 0.0
    %4033 = vmatpush.msra.mxu0 0.0
    %4034 = vmatpush.msra.mxu0 0.0
    %4035 = vmatpush.msra.mxu0 0.0
    %4036 = vmatpush.msra.mxu0 0.0
    %4037 = vmatpush.msra.mxu0 0.0
    %4038 = vmatpush.msra.mxu0 0.0
    %4039 = vmatpush.msra.mxu0 0.0
    %4040 = vmatpush.msra.mxu0 0.0
    %4041 = vmatpush.msra.mxu0 0.0
    %4042 = vmatpush.msra.mxu0 0.0
    %4043 = vmatpush.msra.mxu0 0.0
    %4044 = vmatpush.msra.mxu0 0.0
    %4045 = vmatpush.msra.mxu0 0.0
    %4046 = vmatpush.msra.mxu0 %v3982
    %4047 = vmatpush.msra.mxu0 %v3981
    %4048 = vmatmul.f32.gmra.mxu0 %v3990
    %v4049 = vpop.f32.mrf.mxu0
    %v4050 = vadd.f32 0.0, %v4049
    %4051 = vdwg.mxu0
    %4052 = vmatpush.msra.mxu0 0.0
    %4053 = vmatpush.msra.mxu0 0.0
    %4054 = vmatpush.msra.mxu0 0.0
    %4055 = vmatpush.msra.mxu0 0.0
    %4056 = vmatpush.msra.mxu0 0.0
    %4057 = vmatpush.msra.mxu0 0.0
    %4058 = vmatpush.msra.mxu0 0.0
    %4059 = vmatpush.msra.mxu0 0.0
    %4060 = vmatpush.msra.mxu0 0.0
    %4061 = vmatpush.msra.mxu0 0.0
    %4062 = vmatpush.msra.mxu0 0.0
    %4063 = vmatpush.msra.mxu0 0.0
    %4064 = vmatpush.msra.mxu0 0.0
    %4065 = vmatpush.msra.mxu0 0.0
    %4066 = vmatpush.msra.mxu0 %v3980
    %4067 = vmatpush.msra.mxu0 %v3979
    %4068 = vmatmul.f32.gmra.mxu0 %v3990
    %v4069 = vpop.f32.mrf.mxu0
    %v4070 = vadd.f32 0.0, %v4069
    %4071 = vdwg.mxu0
    %v4072 = vadd.f32 %v3901, %v4010
    %v4073 = vadd.f32 %v3921, %v4030
    %v4074 = vadd.f32 %v3941, %v4050
    %v4075 = vadd.f32 %v3961, %v4070
    %v4076 = vmul.f32 %v4072, %v459
    %v4077 = vmul.f32 %v4073, %v460
    %v4078 = vmul.f32 %v4074, %v461
    %v4079 = vmul.f32 %v4075, %v462
    %s4080 = scalar_lea.vmem %s3, 24
    %v4081 = vld [vmem:[%s4080] sm:$0xff]
    %s4082 = scalar_lea.vmem %s3, 32
    %v4083 = vld [vmem:[%s4082] sm:$0xff]
    %v4085 = vsel %vm1339, %v4083, 0
    %4087 = vmatpush.msra.mxu0 0.0
    %4088 = vmatpush.msra.mxu0 0.0
    %4089 = vmatpush.msra.mxu0 0.0
    %4090 = vmatpush.msra.mxu0 0.0
    %4091 = vmatpush.msra.mxu0 0.0
    %4092 = vmatpush.msra.mxu0 0.0
    %4093 = vmatpush.msra.mxu0 0.0
    %4094 = vmatpush.msra.mxu0 0.0
    %4095 = vmatpush.msra.mxu0 0.0
    %4096 = vmatpush.msra.mxu0 0.0
    %4097 = vmatpush.msra.mxu0 0.0
    %4098 = vmatpush.msra.mxu0 0.0
    %4099 = vmatpush.msra.mxu0 0.0
    %4100 = vmatpush.msra.mxu0 0.0
    %4101 = vmatpush.msra.mxu0 %v3677
    %4102 = vmatpush.msra.mxu0 %v3673
    %4103 = vmatmul.f32.gmra.mxu0 %v4085
    %v4104 = vpop.f32.mrf.mxu0
    %v4105 = vadd.f32 0.0, %v4104
    %4106 = vdwg.mxu0
    %4107 = vmatpush.msra.mxu0 0.0
    %4108 = vmatpush.msra.mxu0 0.0
    %4109 = vmatpush.msra.mxu0 0.0
    %4110 = vmatpush.msra.mxu0 0.0
    %4111 = vmatpush.msra.mxu0 0.0
    %4112 = vmatpush.msra.mxu0 0.0
    %4113 = vmatpush.msra.mxu0 0.0
    %4114 = vmatpush.msra.mxu0 0.0
    %4115 = vmatpush.msra.mxu0 0.0
    %4116 = vmatpush.msra.mxu0 0.0
    %4117 = vmatpush.msra.mxu0 0.0
    %4118 = vmatpush.msra.mxu0 0.0
    %4119 = vmatpush.msra.mxu0 0.0
    %4120 = vmatpush.msra.mxu0 0.0
    %4121 = vmatpush.msra.mxu0 %v3678
    %4122 = vmatpush.msra.mxu0 %v3674
    %4123 = vmatmul.f32.gmra.mxu0 %v4085
    %v4124 = vpop.f32.mrf.mxu0
    %v4125 = vadd.f32 0.0, %v4124
    %4126 = vdwg.mxu0
    %4127 = vmatpush.msra.mxu0 0.0
    %4128 = vmatpush.msra.mxu0 0.0
    %4129 = vmatpush.msra.mxu0 0.0
    %4130 = vmatpush.msra.mxu0 0.0
    %4131 = vmatpush.msra.mxu0 0.0
    %4132 = vmatpush.msra.mxu0 0.0
    %4133 = vmatpush.msra.mxu0 0.0
    %4134 = vmatpush.msra.mxu0 0.0
    %4135 = vmatpush.msra.mxu0 0.0
    %4136 = vmatpush.msra.mxu0 0.0
    %4137 = vmatpush.msra.mxu0 0.0
    %4138 = vmatpush.msra.mxu0 0.0
    %4139 = vmatpush.msra.mxu0 0.0
    %4140 = vmatpush.msra.mxu0 0.0
    %4141 = vmatpush.msra.mxu0 %v3679
    %4142 = vmatpush.msra.mxu0 %v3675
    %4143 = vmatmul.f32.gmra.mxu0 %v4085
    %v4144 = vpop.f32.mrf.mxu0
    %v4145 = vadd.f32 0.0, %v4144
    %4146 = vdwg.mxu0
    %4147 = vmatpush.msra.mxu0 0.0
    %4148 = vmatpush.msra.mxu0 0.0
    %4149 = vmatpush.msra.mxu0 0.0
    %4150 = vmatpush.msra.mxu0 0.0
    %4151 = vmatpush.msra.mxu0 0.0
    %4152 = vmatpush.msra.mxu0 0.0
    %4153 = vmatpush.msra.mxu0 0.0
    %4154 = vmatpush.msra.mxu0 0.0
    %4155 = vmatpush.msra.mxu0 0.0
    %4156 = vmatpush.msra.mxu0 0.0
    %4157 = vmatpush.msra.mxu0 0.0
    %4158 = vmatpush.msra.mxu0 0.0
    %4159 = vmatpush.msra.mxu0 0.0
    %4160 = vmatpush.msra.mxu0 0.0
    %4161 = vmatpush.msra.mxu0 %v3680
    %4162 = vmatpush.msra.mxu0 %v3676
    %4163 = vmatmul.f32.gmra.mxu0 %v4085
    %v4164 = vpop.f32.mrf.mxu0
    %v4165 = vadd.f32 0.0, %v4164
    %4166 = vdwg.mxu0
    %v4168 = vsel %vm1339, %v4081, 0
    %4170 = vmatpush.msra.mxu0 0.0
    %4171 = vmatpush.msra.mxu0 0.0
    %4172 = vmatpush.msra.mxu0 0.0
    %4173 = vmatpush.msra.mxu0 0.0
    %4174 = vmatpush.msra.mxu0 0.0
    %4175 = vmatpush.msra.mxu0 0.0
    %4176 = vmatpush.msra.mxu0 0.0
    %4177 = vmatpush.msra.mxu0 0.0
    %4178 = vmatpush.msra.mxu0 0.0
    %4179 = vmatpush.msra.mxu0 0.0
    %4180 = vmatpush.msra.mxu0 0.0
    %4181 = vmatpush.msra.mxu0 0.0
    %4182 = vmatpush.msra.mxu0 0.0
    %4183 = vmatpush.msra.mxu0 0.0
    %4184 = vmatpush.msra.mxu0 %v3710
    %4185 = vmatpush.msra.mxu0 %v3706
    %4186 = vmatmul.f32.gmra.mxu0 %v4168
    %v4187 = vpop.f32.mrf.mxu0
    %v4188 = vadd.f32 %v4105, %v4187
    %4189 = vdwg.mxu0
    %4190 = vmatpush.msra.mxu0 0.0
    %4191 = vmatpush.msra.mxu0 0.0
    %4192 = vmatpush.msra.mxu0 0.0
    %4193 = vmatpush.msra.mxu0 0.0
    %4194 = vmatpush.msra.mxu0 0.0
    %4195 = vmatpush.msra.mxu0 0.0
    %4196 = vmatpush.msra.mxu0 0.0
    %4197 = vmatpush.msra.mxu0 0.0
    %4198 = vmatpush.msra.mxu0 0.0
    %4199 = vmatpush.msra.mxu0 0.0
    %4200 = vmatpush.msra.mxu0 0.0
    %4201 = vmatpush.msra.mxu0 0.0
    %4202 = vmatpush.msra.mxu0 0.0
    %4203 = vmatpush.msra.mxu0 0.0
    %4204 = vmatpush.msra.mxu0 %v3711
    %4205 = vmatpush.msra.mxu0 %v3707
    %4206 = vmatmul.f32.gmra.mxu0 %v4168
    %v4207 = vpop.f32.mrf.mxu0
    %v4208 = vadd.f32 %v4125, %v4207
    %4209 = vdwg.mxu0
    %4210 = vmatpush.msra.mxu0 0.0
    %4211 = vmatpush.msra.mxu0 0.0
    %4212 = vmatpush.msra.mxu0 0.0
    %4213 = vmatpush.msra.mxu0 0.0
    %4214 = vmatpush.msra.mxu0 0.0
    %4215 = vmatpush.msra.mxu0 0.0
    %4216 = vmatpush.msra.mxu0 0.0
    %4217 = vmatpush.msra.mxu0 0.0
    %4218 = vmatpush.msra.mxu0 0.0
    %4219 = vmatpush.msra.mxu0 0.0
    %4220 = vmatpush.msra.mxu0 0.0
    %4221 = vmatpush.msra.mxu0 0.0
    %4222 = vmatpush.msra.mxu0 0.0
    %4223 = vmatpush.msra.mxu0 0.0
    %4224 = vmatpush.msra.mxu0 %v3712
    %4225 = vmatpush.msra.mxu0 %v3708
    %4226 = vmatmul.f32.gmra.mxu0 %v4168
    %v4227 = vpop.f32.mrf.mxu0
    %v4228 = vadd.f32 %v4145, %v4227
    %4229 = vdwg.mxu0
    %4230 = vmatpush.msra.mxu0 0.0
    %4231 = vmatpush.msra.mxu0 0.0
    %4232 = vmatpush.msra.mxu0 0.0
    %4233 = vmatpush.msra.mxu0 0.0
    %4234 = vmatpush.msra.mxu0 0.0
    %4235 = vmatpush.msra.mxu0 0.0
    %4236 = vmatpush.msra.mxu0 0.0
    %4237 = vmatpush.msra.mxu0 0.0
    %4238 = vmatpush.msra.mxu0 0.0
    %4239 = vmatpush.msra.mxu0 0.0
    %4240 = vmatpush.msra.mxu0 0.0
    %4241 = vmatpush.msra.mxu0 0.0
    %4242 = vmatpush.msra.mxu0 0.0
    %4243 = vmatpush.msra.mxu0 0.0
    %4244 = vmatpush.msra.mxu0 %v3713
    %4245 = vmatpush.msra.mxu0 %v3709
    %4246 = vmatmul.f32.gmra.mxu0 %v4168
    %v4247 = vpop.f32.mrf.mxu0
    %v4248 = vadd.f32 %v4165, %v4247
    %4249 = vdwg.mxu0
    %s4250 = scalar_lea.vmem %s3, 40
    %v4251 = vld [vmem:[%s4250] sm:$0xff]
    %v4253 = vsel %vm1339, %v4251, 0
    %4255 = vmatpush.msra.mxu0 0.0
    %4256 = vmatpush.msra.mxu0 0.0
    %4257 = vmatpush.msra.mxu0 0.0
    %4258 = vmatpush.msra.mxu0 0.0
    %4259 = vmatpush.msra.mxu0 0.0
    %4260 = vmatpush.msra.mxu0 0.0
    %4261 = vmatpush.msra.mxu0 0.0
    %4262 = vmatpush.msra.mxu0 0.0
    %4263 = vmatpush.msra.mxu0 0.0
    %4264 = vmatpush.msra.mxu0 0.0
    %4265 = vmatpush.msra.mxu0 0.0
    %4266 = vmatpush.msra.mxu0 0.0
    %4267 = vmatpush.msra.mxu0 0.0
    %4268 = vmatpush.msra.mxu0 0.0
    %4269 = vmatpush.msra.mxu0 %v3742
    %4270 = vmatpush.msra.mxu0 %v3738
    %4271 = vmatmul.f32.gmra.mxu0 %v4253
    %v4272 = vpop.f32.mrf.mxu0
    %v4273 = vadd.f32 0.0, %v4272
    %4274 = vdwg.mxu0
    %4275 = vmatpush.msra.mxu0 0.0
    %4276 = vmatpush.msra.mxu0 0.0
    %4277 = vmatpush.msra.mxu0 0.0
    %4278 = vmatpush.msra.mxu0 0.0
    %4279 = vmatpush.msra.mxu0 0.0
    %4280 = vmatpush.msra.mxu0 0.0
    %4281 = vmatpush.msra.mxu0 0.0
    %4282 = vmatpush.msra.mxu0 0.0
    %4283 = vmatpush.msra.mxu0 0.0
    %4284 = vmatpush.msra.mxu0 0.0
    %4285 = vmatpush.msra.mxu0 0.0
    %4286 = vmatpush.msra.mxu0 0.0
    %4287 = vmatpush.msra.mxu0 0.0
    %4288 = vmatpush.msra.mxu0 0.0
    %4289 = vmatpush.msra.mxu0 %v3743
    %4290 = vmatpush.msra.mxu0 %v3739
    %4291 = vmatmul.f32.gmra.mxu0 %v4253
    %v4292 = vpop.f32.mrf.mxu0
    %v4293 = vadd.f32 0.0, %v4292
    %4294 = vdwg.mxu0
    %4295 = vmatpush.msra.mxu0 0.0
    %4296 = vmatpush.msra.mxu0 0.0
    %4297 = vmatpush.msra.mxu0 0.0
    %4298 = vmatpush.msra.mxu0 0.0
    %4299 = vmatpush.msra.mxu0 0.0
    %4300 = vmatpush.msra.mxu0 0.0
    %4301 = vmatpush.msra.mxu0 0.0
    %4302 = vmatpush.msra.mxu0 0.0
    %4303 = vmatpush.msra.mxu0 0.0
    %4304 = vmatpush.msra.mxu0 0.0
    %4305 = vmatpush.msra.mxu0 0.0
    %4306 = vmatpush.msra.mxu0 0.0
    %4307 = vmatpush.msra.mxu0 0.0
    %4308 = vmatpush.msra.mxu0 0.0
    %4309 = vmatpush.msra.mxu0 %v3744
    %4310 = vmatpush.msra.mxu0 %v3740
    %4311 = vmatmul.f32.gmra.mxu0 %v4253
    %v4312 = vpop.f32.mrf.mxu0
    %v4313 = vadd.f32 0.0, %v4312
    %4314 = vdwg.mxu0
    %4315 = vmatpush.msra.mxu0 0.0
    %4316 = vmatpush.msra.mxu0 0.0
    %4317 = vmatpush.msra.mxu0 0.0
    %4318 = vmatpush.msra.mxu0 0.0
    %4319 = vmatpush.msra.mxu0 0.0
    %4320 = vmatpush.msra.mxu0 0.0
    %4321 = vmatpush.msra.mxu0 0.0
    %4322 = vmatpush.msra.mxu0 0.0
    %4323 = vmatpush.msra.mxu0 0.0
    %4324 = vmatpush.msra.mxu0 0.0
    %4325 = vmatpush.msra.mxu0 0.0
    %4326 = vmatpush.msra.mxu0 0.0
    %4327 = vmatpush.msra.mxu0 0.0
    %4328 = vmatpush.msra.mxu0 0.0
    %4329 = vmatpush.msra.mxu0 %v3745
    %4330 = vmatpush.msra.mxu0 %v3741
    %4331 = vmatmul.f32.gmra.mxu0 %v4253
    %v4332 = vpop.f32.mrf.mxu0
    %v4333 = vadd.f32 0.0, %v4332
    %4334 = vdwg.mxu0
    %v4335 = vadd.f32 %v4188, %v4273
    %v4336 = vadd.f32 %v4208, %v4293
    %v4337 = vadd.f32 %v4228, %v4313
    %v4338 = vadd.f32 %v4248, %v4333
    %v4339 = vadd.f32 %v4076, %v4335
    %v4340 = vadd.f32 %v4077, %v4336
    %v4341 = vadd.f32 %v4078, %v4337
    %v4342 = vadd.f32 %v4079, %v4338
    %4343 = vrot.lane.b32.xlu0 %v3706, 112
    %v4344 = vpop.permute.xlu0 %4343
    %4345 = vrot.lane.b32.xlu0 %v3710, 112
    %v4346 = vpop.permute.xlu0 %4345
    %4347 = vrot.lane.b32.xlu0 %v3707, 112
    %v4348 = vpop.permute.xlu0 %4347
    %4349 = vrot.lane.b32.xlu0 %v3711, 112
    %v4350 = vpop.permute.xlu0 %4349
    %4351 = vrot.lane.b32.xlu0 %v3708, 112
    %v4352 = vpop.permute.xlu0 %4351
    %4353 = vrot.lane.b32.xlu0 %v3712, 112
    %v4354 = vpop.permute.xlu0 %4353
    %4355 = vrot.lane.b32.xlu0 %v3709, 112
    %v4356 = vpop.permute.xlu0 %4355
    %4357 = vrot.lane.b32.xlu0 %v3713, 112
    %v4358 = vpop.permute.xlu0 %4357
    %v4359 = vsel %vm798, %v4352, %v4356
    %v4360 = vsel %vm798, %v4354, %v4358
    %v4361 = vsel %vm798, %v4348, %v4352
    %v4362 = vsel %vm798, %v4350, %v4354
    %v4363 = vsel %vm798, %v4344, %v4348
    %v4364 = vsel %vm798, %v4346, %v4350
    %v4365 = vsel %vm798, %v4356, %v4344
    %v4366 = vsel %vm798, %v4358, %v4346
    %s4367 = scalar_lea.vmem %s3, 48
    %v4368 = vld [vmem:[%s4367] sm:$0xff]
    %4369 = vrot.lane.b32.xlu0 %v3673, 112
    %v4370 = vpop.permute.xlu0 %4369
    %4371 = vrot.lane.b32.xlu0 %v3677, 112
    %v4372 = vpop.permute.xlu0 %4371
    %4373 = vrot.lane.b32.xlu0 %v3674, 112
    %v4374 = vpop.permute.xlu0 %4373
    %4375 = vrot.lane.b32.xlu0 %v3678, 112
    %v4376 = vpop.permute.xlu0 %4375
    %4377 = vrot.lane.b32.xlu0 %v3675, 112
    %v4378 = vpop.permute.xlu0 %4377
    %4379 = vrot.lane.b32.xlu0 %v3679, 112
    %v4380 = vpop.permute.xlu0 %4379
    %4381 = vrot.lane.b32.xlu0 %v3676, 112
    %v4382 = vpop.permute.xlu0 %4381
    %4383 = vrot.lane.b32.xlu0 %v3680, 112
    %v4384 = vpop.permute.xlu0 %4383
    %v4385 = vsel %vm798, %v4378, %v4382
    %v4386 = vsel %vm798, %v4380, %v4384
    %v4387 = vsel %vm798, %v4374, %v4378
    %v4388 = vsel %vm798, %v4376, %v4380
    %v4389 = vsel %vm798, %v4370, %v4374
    %v4390 = vsel %vm798, %v4372, %v4376
    %v4391 = vsel %vm798, %v4382, %v4370
    %v4392 = vsel %vm798, %v4384, %v4372
    %s4393 = scalar_lea.vmem %s3, 56
    %v4394 = vld [vmem:[%s4393] sm:$0xff]
    %v4396 = vsel %vm1339, %v4394, 0
    %4398 = vmatpush.msra.mxu0 0.0
    %4399 = vmatpush.msra.mxu0 0.0
    %4400 = vmatpush.msra.mxu0 0.0
    %4401 = vmatpush.msra.mxu0 0.0
    %4402 = vmatpush.msra.mxu0 0.0
    %4403 = vmatpush.msra.mxu0 0.0
    %4404 = vmatpush.msra.mxu0 0.0
    %4405 = vmatpush.msra.mxu0 0.0
    %4406 = vmatpush.msra.mxu0 0.0
    %4407 = vmatpush.msra.mxu0 0.0
    %4408 = vmatpush.msra.mxu0 0.0
    %4409 = vmatpush.msra.mxu0 0.0
    %4410 = vmatpush.msra.mxu0 0.0
    %4411 = vmatpush.msra.mxu0 0.0
    %4412 = vmatpush.msra.mxu0 %v4390
    %4413 = vmatpush.msra.mxu0 %v4389
    %4414 = vmatmul.f32.gmra.mxu0 %v4396
    %v4415 = vpop.f32.mrf.mxu0
    %v4416 = vadd.f32 0.0, %v4415
    %4417 = vdwg.mxu0
    %4418 = vmatpush.msra.mxu0 0.0
    %4419 = vmatpush.msra.mxu0 0.0
    %4420 = vmatpush.msra.mxu0 0.0
    %4421 = vmatpush.msra.mxu0 0.0
    %4422 = vmatpush.msra.mxu0 0.0
    %4423 = vmatpush.msra.mxu0 0.0
    %4424 = vmatpush.msra.mxu0 0.0
    %4425 = vmatpush.msra.mxu0 0.0
    %4426 = vmatpush.msra.mxu0 0.0
    %4427 = vmatpush.msra.mxu0 0.0
    %4428 = vmatpush.msra.mxu0 0.0
    %4429 = vmatpush.msra.mxu0 0.0
    %4430 = vmatpush.msra.mxu0 0.0
    %4431 = vmatpush.msra.mxu0 0.0
    %4432 = vmatpush.msra.mxu0 %v4388
    %4433 = vmatpush.msra.mxu0 %v4387
    %4434 = vmatmul.f32.gmra.mxu0 %v4396
    %v4435 = vpop.f32.mrf.mxu0
    %v4436 = vadd.f32 0.0, %v4435
    %4437 = vdwg.mxu0
    %4438 = vmatpush.msra.mxu0 0.0
    %4439 = vmatpush.msra.mxu0 0.0
    %4440 = vmatpush.msra.mxu0 0.0
    %4441 = vmatpush.msra.mxu0 0.0
    %4442 = vmatpush.msra.mxu0 0.0
    %4443 = vmatpush.msra.mxu0 0.0
    %4444 = vmatpush.msra.mxu0 0.0
    %4445 = vmatpush.msra.mxu0 0.0
    %4446 = vmatpush.msra.mxu0 0.0
    %4447 = vmatpush.msra.mxu0 0.0
    %4448 = vmatpush.msra.mxu0 0.0
    %4449 = vmatpush.msra.mxu0 0.0
    %4450 = vmatpush.msra.mxu0 0.0
    %4451 = vmatpush.msra.mxu0 0.0
    %4452 = vmatpush.msra.mxu0 %v4386
    %4453 = vmatpush.msra.mxu0 %v4385
    %4454 = vmatmul.f32.gmra.mxu0 %v4396
    %v4455 = vpop.f32.mrf.mxu0
    %v4456 = vadd.f32 0.0, %v4455
    %4457 = vdwg.mxu0
    %4458 = vmatpush.msra.mxu0 0.0
    %4459 = vmatpush.msra.mxu0 0.0
    %4460 = vmatpush.msra.mxu0 0.0
    %4461 = vmatpush.msra.mxu0 0.0
    %4462 = vmatpush.msra.mxu0 0.0
    %4463 = vmatpush.msra.mxu0 0.0
    %4464 = vmatpush.msra.mxu0 0.0
    %4465 = vmatpush.msra.mxu0 0.0
    %4466 = vmatpush.msra.mxu0 0.0
    %4467 = vmatpush.msra.mxu0 0.0
    %4468 = vmatpush.msra.mxu0 0.0
    %4469 = vmatpush.msra.mxu0 0.0
    %4470 = vmatpush.msra.mxu0 0.0
    %4471 = vmatpush.msra.mxu0 0.0
    %4472 = vmatpush.msra.mxu0 %v4392
    %4473 = vmatpush.msra.mxu0 %v4391
    %4474 = vmatmul.f32.gmra.mxu0 %v4396
    %v4475 = vpop.f32.mrf.mxu0
    %v4476 = vadd.f32 0.0, %v4475
    %4477 = vdwg.mxu0
    %v4479 = vsel %vm1339, %v4368, 0
    %4481 = vmatpush.msra.mxu0 0.0
    %4482 = vmatpush.msra.mxu0 0.0
    %4483 = vmatpush.msra.mxu0 0.0
    %4484 = vmatpush.msra.mxu0 0.0
    %4485 = vmatpush.msra.mxu0 0.0
    %4486 = vmatpush.msra.mxu0 0.0
    %4487 = vmatpush.msra.mxu0 0.0
    %4488 = vmatpush.msra.mxu0 0.0
    %4489 = vmatpush.msra.mxu0 0.0
    %4490 = vmatpush.msra.mxu0 0.0
    %4491 = vmatpush.msra.mxu0 0.0
    %4492 = vmatpush.msra.mxu0 0.0
    %4493 = vmatpush.msra.mxu0 0.0
    %4494 = vmatpush.msra.mxu0 0.0
    %4495 = vmatpush.msra.mxu0 %v4364
    %4496 = vmatpush.msra.mxu0 %v4363
    %4497 = vmatmul.f32.gmra.mxu0 %v4479
    %v4498 = vpop.f32.mrf.mxu0
    %v4499 = vadd.f32 %v4416, %v4498
    %4500 = vdwg.mxu0
    %4501 = vmatpush.msra.mxu0 0.0
    %4502 = vmatpush.msra.mxu0 0.0
    %4503 = vmatpush.msra.mxu0 0.0
    %4504 = vmatpush.msra.mxu0 0.0
    %4505 = vmatpush.msra.mxu0 0.0
    %4506 = vmatpush.msra.mxu0 0.0
    %4507 = vmatpush.msra.mxu0 0.0
    %4508 = vmatpush.msra.mxu0 0.0
    %4509 = vmatpush.msra.mxu0 0.0
    %4510 = vmatpush.msra.mxu0 0.0
    %4511 = vmatpush.msra.mxu0 0.0
    %4512 = vmatpush.msra.mxu0 0.0
    %4513 = vmatpush.msra.mxu0 0.0
    %4514 = vmatpush.msra.mxu0 0.0
    %4515 = vmatpush.msra.mxu0 %v4362
    %4516 = vmatpush.msra.mxu0 %v4361
    %4517 = vmatmul.f32.gmra.mxu0 %v4479
    %v4518 = vpop.f32.mrf.mxu0
    %v4519 = vadd.f32 %v4436, %v4518
    %4520 = vdwg.mxu0
    %4521 = vmatpush.msra.mxu0 0.0
    %4522 = vmatpush.msra.mxu0 0.0
    %4523 = vmatpush.msra.mxu0 0.0
    %4524 = vmatpush.msra.mxu0 0.0
    %4525 = vmatpush.msra.mxu0 0.0
    %4526 = vmatpush.msra.mxu0 0.0
    %4527 = vmatpush.msra.mxu0 0.0
    %4528 = vmatpush.msra.mxu0 0.0
    %4529 = vmatpush.msra.mxu0 0.0
    %4530 = vmatpush.msra.mxu0 0.0
    %4531 = vmatpush.msra.mxu0 0.0
    %4532 = vmatpush.msra.mxu0 0.0
    %4533 = vmatpush.msra.mxu0 0.0
    %4534 = vmatpush.msra.mxu0 0.0
    %4535 = vmatpush.msra.mxu0 %v4360
    %4536 = vmatpush.msra.mxu0 %v4359
    %4537 = vmatmul.f32.gmra.mxu0 %v4479
    %v4538 = vpop.f32.mrf.mxu0
    %v4539 = vadd.f32 %v4456, %v4538
    %4540 = vdwg.mxu0
    %4541 = vmatpush.msra.mxu0 0.0
    %4542 = vmatpush.msra.mxu0 0.0
    %4543 = vmatpush.msra.mxu0 0.0
    %4544 = vmatpush.msra.mxu0 0.0
    %4545 = vmatpush.msra.mxu0 0.0
    %4546 = vmatpush.msra.mxu0 0.0
    %4547 = vmatpush.msra.mxu0 0.0
    %4548 = vmatpush.msra.mxu0 0.0
    %4549 = vmatpush.msra.mxu0 0.0
    %4550 = vmatpush.msra.mxu0 0.0
    %4551 = vmatpush.msra.mxu0 0.0
    %4552 = vmatpush.msra.mxu0 0.0
    %4553 = vmatpush.msra.mxu0 0.0
    %4554 = vmatpush.msra.mxu0 0.0
    %4555 = vmatpush.msra.mxu0 %v4366
    %4556 = vmatpush.msra.mxu0 %v4365
    %4557 = vmatmul.f32.gmra.mxu0 %v4479
    %v4558 = vpop.f32.mrf.mxu0
    %v4559 = vadd.f32 %v4476, %v4558
    %4560 = vdwg.mxu0
    %4561 = vrot.lane.b32.xlu0 %v3738, 112
    %v4562 = vpop.permute.xlu0 %4561
    %4563 = vrot.lane.b32.xlu0 %v3742, 112
    %v4564 = vpop.permute.xlu0 %4563
    %4565 = vrot.lane.b32.xlu0 %v3739, 112
    %v4566 = vpop.permute.xlu0 %4565
    %4567 = vrot.lane.b32.xlu0 %v3743, 112
    %v4568 = vpop.permute.xlu0 %4567
    %4569 = vrot.lane.b32.xlu0 %v3740, 112
    %v4570 = vpop.permute.xlu0 %4569
    %4571 = vrot.lane.b32.xlu0 %v3744, 112
    %v4572 = vpop.permute.xlu0 %4571
    %4573 = vrot.lane.b32.xlu0 %v3741, 112
    %v4574 = vpop.permute.xlu0 %4573
    %4575 = vrot.lane.b32.xlu0 %v3745, 112
    %v4576 = vpop.permute.xlu0 %4575
    %v4577 = vsel %vm798, %v4570, %v4574
    %v4578 = vsel %vm798, %v4572, %v4576
    %v4579 = vsel %vm798, %v4566, %v4570
    %v4580 = vsel %vm798, %v4568, %v4572
    %v4581 = vsel %vm798, %v4562, %v4566
    %v4582 = vsel %vm798, %v4564, %v4568
    %v4583 = vsel %vm798, %v4574, %v4562
    %v4584 = vsel %vm798, %v4576, %v4564
    %s4585 = scalar_lea.vmem %s3, 64
    %v4586 = vld [vmem:[%s4585] sm:$0xff]
    %v4588 = vsel %vm1339, %v4586, 0
    %4590 = vmatpush.msra.mxu0 0.0
    %4591 = vmatpush.msra.mxu0 0.0
    %4592 = vmatpush.msra.mxu0 0.0
    %4593 = vmatpush.msra.mxu0 0.0
    %4594 = vmatpush.msra.mxu0 0.0
    %4595 = vmatpush.msra.mxu0 0.0
    %4596 = vmatpush.msra.mxu0 0.0
    %4597 = vmatpush.msra.mxu0 0.0
    %4598 = vmatpush.msra.mxu0 0.0
    %4599 = vmatpush.msra.mxu0 0.0
    %4600 = vmatpush.msra.mxu0 0.0
    %4601 = vmatpush.msra.mxu0 0.0
    %4602 = vmatpush.msra.mxu0 0.0
    %4603 = vmatpush.msra.mxu0 0.0
    %4604 = vmatpush.msra.mxu0 %v4582
    %4605 = vmatpush.msra.mxu0 %v4581
    %4606 = vmatmul.f32.gmra.mxu0 %v4588
    %v4607 = vpop.f32.mrf.mxu0
    %v4608 = vadd.f32 0.0, %v4607
    %4609 = vdwg.mxu0
    %4610 = vmatpush.msra.mxu0 0.0
    %4611 = vmatpush.msra.mxu0 0.0
    %4612 = vmatpush.msra.mxu0 0.0
    %4613 = vmatpush.msra.mxu0 0.0
    %4614 = vmatpush.msra.mxu0 0.0
    %4615 = vmatpush.msra.mxu0 0.0
    %4616 = vmatpush.msra.mxu0 0.0
    %4617 = vmatpush.msra.mxu0 0.0
    %4618 = vmatpush.msra.mxu0 0.0
    %4619 = vmatpush.msra.mxu0 0.0
    %4620 = vmatpush.msra.mxu0 0.0
    %4621 = vmatpush.msra.mxu0 0.0
    %4622 = vmatpush.msra.mxu0 0.0
    %4623 = vmatpush.msra.mxu0 0.0
    %4624 = vmatpush.msra.mxu0 %v4580
    %4625 = vmatpush.msra.mxu0 %v4579
    %4626 = vmatmul.f32.gmra.mxu0 %v4588
    %v4627 = vpop.f32.mrf.mxu0
    %v4628 = vadd.f32 0.0, %v4627
    %4629 = vdwg.mxu0
    %4630 = vmatpush.msra.mxu0 0.0
    %4631 = vmatpush.msra.mxu0 0.0
    %4632 = vmatpush.msra.mxu0 0.0
    %4633 = vmatpush.msra.mxu0 0.0
    %4634 = vmatpush.msra.mxu0 0.0
    %4635 = vmatpush.msra.mxu0 0.0
    %4636 = vmatpush.msra.mxu0 0.0
    %4637 = vmatpush.msra.mxu0 0.0
    %4638 = vmatpush.msra.mxu0 0.0
    %4639 = vmatpush.msra.mxu0 0.0
    %4640 = vmatpush.msra.mxu0 0.0
    %4641 = vmatpush.msra.mxu0 0.0
    %4642 = vmatpush.msra.mxu0 0.0
    %4643 = vmatpush.msra.mxu0 0.0
    %4644 = vmatpush.msra.mxu0 %v4578
    %4645 = vmatpush.msra.mxu0 %v4577
    %4646 = vmatmul.f32.gmra.mxu0 %v4588
    %v4647 = vpop.f32.mrf.mxu0
    %v4648 = vadd.f32 0.0, %v4647
    %4649 = vdwg.mxu0
    %4650 = vmatpush.msra.mxu0 0.0
    %4651 = vmatpush.msra.mxu0 0.0
    %4652 = vmatpush.msra.mxu0 0.0
    %4653 = vmatpush.msra.mxu0 0.0
    %4654 = vmatpush.msra.mxu0 0.0
    %4655 = vmatpush.msra.mxu0 0.0
    %4656 = vmatpush.msra.mxu0 0.0
    %4657 = vmatpush.msra.mxu0 0.0
    %4658 = vmatpush.msra.mxu0 0.0
    %4659 = vmatpush.msra.mxu0 0.0
    %4660 = vmatpush.msra.mxu0 0.0
    %4661 = vmatpush.msra.mxu0 0.0
    %4662 = vmatpush.msra.mxu0 0.0
    %4663 = vmatpush.msra.mxu0 0.0
    %4664 = vmatpush.msra.mxu0 %v4584
    %4665 = vmatpush.msra.mxu0 %v4583
    %4666 = vmatmul.f32.gmra.mxu0 %v4588
    %v4667 = vpop.f32.mrf.mxu0
    %v4668 = vadd.f32 0.0, %v4667
    %4669 = vdwg.mxu0
    %v4670 = vadd.f32 %v4499, %v4608
    %v4671 = vadd.f32 %v4519, %v4628
    %v4672 = vadd.f32 %v4539, %v4648
    %v4673 = vadd.f32 %v4559, %v4668
    %v4674 = vmul.f32 %v4670, %v1146
    %v4675 = vmul.f32 %v4671, %v1147
    %v4676 = vmul.f32 %v4672, %v1148
    %v4677 = vmul.f32 %v4673, %v1149
    %v4678 = vadd.f32 %v4339, %v4674
    %v4679 = vadd.f32 %v4340, %v4675
    %v4680 = vadd.f32 %v4341, %v4676
    %v4681 = vadd.f32 %v4342, %v4677
    %4683 = vset.pattern.permute.xlu0 0
    %4684 = vperm.xlu0 %4683, %v3681
    %v4685 = vpop.permute.xlu0 %4684
    %v4687 = vadd.f32 %v4678, %v4685
    %v4688 = vadd.f32 %v4679, %v4685
    %v4689 = vadd.f32 %v4680, %v4685
    %v4690 = vadd.f32 %v4681, %v4685
    %4691 = vst [vmem:[#allocation2] sm:$0xff] %v4687
    %4692 = vst [vmem:[#allocation2 + $0x8] sm:$0xff] %v4688
    %4693 = vst [vmem:[#allocation2 + $0x10] sm:$0xff] %v4689
    %4694 = vst [vmem:[#allocation2 + $0x18] sm:$0xff] %v4690
    // Predicated region
    $region38: #{tpu_custom_call.1} parent=1 // pred_check
      _
    $region39: #{tpu_custom_call.1} parent=1 // pred_check_branch
      %4696 = sbr.rel (0) target = $region41
    $region40: #{tpu_custom_call.1} parent=1 // pred_region
      %4698 = vsyncadd [#allocation3], 0
      %s4700 = sshll.u32 [#allocation2], 4
      %s4701 = int_to_ptr.vmem [resolvable:$true] %s4700
      %s4702 = sshll.u32 %s9, 4
      %s4703 = int_to_ptr.hbm [resolvable:$true] %s4702
      %4705 = dma.vmem_to_hbm [thread:$0]  %s4701, 512, %s4703, [#allocation3]
    $region41: #{tpu_custom_call.1} parent=1 // pred_fallthru
      _
    // Predicated region
    $region42: #{tpu_custom_call.1} parent=1 // pred_check
      _
    $region43: #{tpu_custom_call.1} parent=1 // pred_check_branch
      %4707 = sbr.rel (0) target = $region45
    $region44: #{tpu_custom_call.1} parent=1 // pred_region
      %4709 = dma.done [#allocation3], 512
    $region45: #{tpu_custom_call.1} parent=1 // pred_fallthru
      _
    %4710 = vsyncpa [#allocation3], 1

</llo_original>
